<compile_context>
chip_gen: v7x
topology: tpu7x:2x2x1
jax: 0.10.0
libtpu: 0.0.40
codegen_flags: <defaults>
</compile_context>

<pallas_src>
import functools

import jax
import jax.numpy as jnp
from jax import lax
from jax.experimental import pallas as pl
from jax.experimental.pallas import tpu as pltpu


# ------------------------------ fused kernel --------------------------------

def policy_head_kernel(xcol_ref, wcol_ref, shift_ref, w1_ref, b1_ref,
                       w2_ref, b2_ref, o_ref, *, block_n, hw, compute_dtype):
    # xcol_ref : (block_n*HW, 9*C)  im2col rows for block_n samples
    # wcol_ref : (9*C, OC)          conv weight with BN scale folded in
    # shift_ref: (1, OC)            folded conv-bias + BN shift (f32)
    # w1_ref   : (HW*OC, hidden)    fc1 weight, rows permuted to (hw*OC + c) order
    # b1_ref   : (1, hidden)        f32
    # w2_ref   : (hidden, A)
    # b2_ref   : (1, A)             f32
    # o_ref    : (block_n, A)       f32 logits
    oc = wcol_ref.shape[-1]

    # --- 3x3 conv for the whole sample block as ONE MXU matmul (K = 9*C) ---
    acc = jnp.dot(xcol_ref[...], wcol_ref[...],
                  preferred_element_type=jnp.float32)          # (block_n*HW, OC)

    # --- fused conv-bias + eval-mode BatchNorm shift + ReLU (f32 VPU) ---
    act = jnp.maximum(acc + shift_ref[...], 0.0)

    # --- flatten: single relayout to (block_n, HW*OC); row order (hw-major,
    #     channel-minor) matches the host-side permutation of fc1's rows ---
    a = act.astype(compute_dtype).reshape(block_n, hw * oc)

    # --- FC1 -> ReLU -> FC2, batched over block_n on the MXU ---
    h = jnp.dot(a, w1_ref[...], preferred_element_type=jnp.float32)
    h = jnp.maximum(h + b1_ref[...], 0.0).astype(compute_dtype)   # (block_n, hidden)
    logits = jnp.dot(h, w2_ref[...], preferred_element_type=jnp.float32)
    o_ref[...] = (logits + b2_ref[...]).astype(o_ref.dtype)       # (block_n, A)


# ------------------------------ host wrapper --------------------------------

def policy_head_forward(x_nchw, params, *, block_n=8, compute_dtype=jnp.float32):
    """Forward pass equivalent to PolicyHead.forward (BatchNorm in eval mode)."""
    N, C, H, W = x_nchw.shape
    w_conv = params["conv_w"]                               # (OC, C, 3, 3)
    b_conv = params["conv_b"]                               # (OC,)
    gamma, beta = params["bn_gamma"], params["bn_beta"]
    mean, var = params["bn_mean"], params["bn_var"]
    eps = 1e-5
    OC = w_conv.shape[0]
    hidden = params["fc1_w"].shape[0]
    A = params["fc2_w"].shape[0]
    HW = H * W
    F = OC * HW
    K9C = 9 * C

    assert block_n % 8 == 0, "block_n must be a multiple of 8 (sublane tile)"

    # ---- trace-time weight preparation (constant-foldable) ----
    scale = (gamma / jnp.sqrt(var + eps)).astype(jnp.float32)
    # conv weight as (9*C, OC) with row index (kh*3+kw)*C + c; BN scale folded in.
    w_col = (jnp.transpose(w_conv, (2, 3, 1, 0)).reshape(K9C, OC)
             * scale[None, :]).astype(compute_dtype)
    shift = (scale * (b_conv - mean) + beta).reshape(1, OC).astype(jnp.float32)
    # permute FC1 rows: PyTorch flatten index (c*HW + hw) -> kernel order (hw*OC + c)
    w1_perm = (params["fc1_w"].reshape(hidden, OC, HW)
               .transpose(2, 1, 0).reshape(F, hidden).astype(compute_dtype))
    b1 = params["fc1_b"].reshape(1, hidden).astype(jnp.float32)
    w2t = params["fc2_w"].T.astype(compute_dtype)           # (hidden, A)
    b2 = params["fc2_b"].reshape(1, A).astype(jnp.float32)

    # ---- trace-time im2col: (N, HW, 9*C), column index (kh*3+kw)*C + c ----
    x_nhwc = jnp.transpose(x_nchw, (0, 2, 3, 1))
    x_pad = jnp.pad(x_nhwc, ((0, 0), (1, 1), (1, 1), (0, 0)))   # (N, H+2, W+2, C)
    cols = [x_pad[:, kh:kh + H, kw:kw + W, :]
            for kh in range(3) for kw in range(3)]
    x_col = jnp.concatenate(cols, axis=-1).reshape(N, HW, K9C)

    # ---- pad batch to a multiple of the block so the last grid step is full ----
    n_pad = pl.cdiv(N, block_n) * block_n
    if n_pad != N:
        x_col = jnp.pad(x_col, ((0, n_pad - N), (0, 0), (0, 0)))
    x_rows = x_col.reshape(n_pad * HW, K9C).astype(compute_dtype)

    kernel = functools.partial(policy_head_kernel, block_n=block_n, hw=HW,
                               compute_dtype=compute_dtype)

    out = pl.pallas_call(
        kernel,
        out_shape=jax.ShapeDtypeStruct((n_pad, A), jnp.float32),
        grid_spec=pltpu.PrefetchScalarGridSpec(
            num_scalar_prefetch=0,
            grid=(n_pad // block_n,),
            in_specs=[
                pl.BlockSpec((block_n * HW, K9C), lambda n: (n, 0)),  # per-block rows
                pl.BlockSpec((K9C, OC),        lambda n: (0, 0)),     # resident weights
                pl.BlockSpec((1, OC),          lambda n: (0, 0)),
                pl.BlockSpec((F, hidden),      lambda n: (0, 0)),
                pl.BlockSpec((1, hidden),      lambda n: (0, 0)),
                pl.BlockSpec((hidden, A),      lambda n: (0, 0)),
                pl.BlockSpec((1, A),           lambda n: (0, 0)),
            ],
            out_specs=pl.BlockSpec((block_n, A), lambda n: (n, 0)),
        ),
        compiler_params=pltpu.CompilerParams(
            dimension_semantics=("parallel",),        # batch blocks across TCs (v7x)
            vmem_limit_bytes=32 * 1024 * 1024,
        ),
    )(x_rows, w_col, shift, w1_perm, b1, w2t, b2)
    return out[:N]


# ------------------------- pure-JAX reference (check) -----------------------

def policy_head_reference(x_nchw, params):
    eps = 1e-5
    y = lax.conv_general_dilated(
        x_nchw, params["conv_w"], window_strides=(1, 1), padding=((1, 1), (1, 1)),
        dimension_numbers=("NCHW", "OIHW", "NCHW"))
    y = y + params["conv_b"].reshape(1, -1, 1, 1)
    scale = params["bn_gamma"] / jnp.sqrt(params["bn_var"] + eps)
    y = scale.reshape(1, -1, 1, 1) * (y - params["bn_mean"].reshape(1, -1, 1, 1)) \
        + params["bn_beta"].reshape(1, -1, 1, 1)
    y = jnp.maximum(y, 0.0)
    flat = y.reshape(y.shape[0], -1)
    h = jnp.maximum(flat @ params["fc1_w"].T + params["fc1_b"], 0.0)
    return h @ params["fc2_w"].T + params["fc2_b"]


# ----------------------------------- main ------------------------------------

if __name__ == "__main__":
    # PolicyHead(num_channels=4, action_space_size=128, board 8x8, hidden_size=128)
    N, C, H, W = 16, 4, 8, 8
    HIDDEN = 128          # conv out channels == fc hidden (lane-dense on TPU)
    ACTIONS = 128

    key = jax.random.PRNGKey(0)
    ks = jax.random.split(key, 11)
    params = {
        "conv_w":  0.1 * jax.random.normal(ks[0], (HIDDEN, C, 3, 3), jnp.float32),
        "conv_b":  0.1 * jax.random.normal(ks[1], (HIDDEN,), jnp.float32),
        # BatchNorm2d in eval mode with deterministic (non-trivial) stats/affine
        "bn_gamma": 1.0 + 0.1 * jax.random.normal(ks[2], (HIDDEN,), jnp.float32),
        "bn_beta":  0.1 * jax.random.normal(ks[3], (HIDDEN,), jnp.float32),
        "bn_mean":  0.1 * jax.random.normal(ks[4], (HIDDEN,), jnp.float32),
        "bn_var":   jnp.abs(1.0 + 0.1 * jax.random.normal(ks[5], (HIDDEN,), jnp.float32)),
        "fc1_w":   0.02 * jax.random.normal(ks[6], (HIDDEN, HIDDEN * H * W), jnp.float32),
        "fc1_b":   0.05 * jax.random.normal(ks[7], (HIDDEN,), jnp.float32),
        "fc2_w":   0.05 * jax.random.normal(ks[8], (ACTIONS, HIDDEN), jnp.float32),
        "fc2_b":   0.05 * jax.random.normal(ks[9], (ACTIONS,), jnp.float32),
    }
    x = jax.random.normal(ks[10], (N, C, H, W), jnp.float32)

    # f32 compute for parity with the f32 reference; pass compute_dtype=jnp.bfloat16
    # on v6e/v7x for MXU throughput (accumulation stays f32).
    out = jax.block_until_ready(policy_head_forward(x, params, block_n=8))
    ref = jax.block_until_ready(policy_head_reference(x, params))

    assert out.shape == (N, ACTIONS), out.shape
    # Tolerance accounts for TPU default matmul precision differences between
    # the fused kernel and the XLA reference (structural bugs would be >> this).
    assert jnp.allclose(out, ref, atol=2e-2, rtol=2e-2), float(jnp.max(jnp.abs(out - ref)))
    print("KERNEL_OK")
</pallas_src>

<mosaic_0001>
module attributes {stable_mosaic.version = 11 : i64} {
  func.func @policy_head_kernel(%arg0: i32, %arg1: memref<512x36xf32, #tpu.memory_space<vmem>>, %arg2: memref<36x128xf32, #tpu.memory_space<vmem>>, %arg3: memref<1x128xf32, #tpu.memory_space<vmem>>, %arg4: memref<8192x128xf32, #tpu.memory_space<vmem>>, %arg5: memref<1x128xf32, #tpu.memory_space<vmem>>, %arg6: memref<128x128xf32, #tpu.memory_space<vmem>>, %arg7: memref<1x128xf32, #tpu.memory_space<vmem>>, %arg8: memref<8x128xf32, #tpu.memory_space<vmem>>) attributes {dimension_semantics = [#tpu.dimension_semantics<parallel>], iteration_bounds = array<i64: 2>, scalar_prefetch = 0 : i64, scratch_operands = 0 : i64, tpu.core_type = #tpu.core_type<tc>, window_params = [{transform_indices = @transform_0, window_bounds = array<i64: 512, 36>}, {pipeline_mode = #tpu.pipeline_mode<synchronous>, transform_indices = @transform_1, window_bounds = array<i64: 36, 128>}, {pipeline_mode = #tpu.pipeline_mode<synchronous>, transform_indices = @transform_2, window_bounds = array<i64: 1, 128>}, {pipeline_mode = #tpu.pipeline_mode<synchronous>, transform_indices = @transform_3, window_bounds = array<i64: 8192, 128>}, {pipeline_mode = #tpu.pipeline_mode<synchronous>, transform_indices = @transform_4, window_bounds = array<i64: 1, 128>}, {pipeline_mode = #tpu.pipeline_mode<synchronous>, transform_indices = @transform_5, window_bounds = array<i64: 128, 128>}, {pipeline_mode = #tpu.pipeline_mode<synchronous>, transform_indices = @transform_6, window_bounds = array<i64: 1, 128>}, {transform_indices = @transform_7, window_bounds = array<i64: 8, 128>}]} {
    %c0 = arith.constant 0 : index
    %c0_0 = arith.constant 0 : index
    %0 = vector.load %arg1[%c0, %c0_0] : memref<512x36xf32, #tpu.memory_space<vmem>>, vector<512x36xf32>
    %c0_1 = arith.constant 0 : index
    %c0_2 = arith.constant 0 : index
    %1 = vector.load %arg2[%c0_1, %c0_2] : memref<36x128xf32, #tpu.memory_space<vmem>>, vector<36x128xf32>
    %cst = arith.constant dense<0.000000e+00> : vector<512x128xf32>
    %2 = tpu.matmul %0, %1, %cst {dimension_numbers = #tpu.dot_dimension_numbers<[1], [0], [0], [1], [0, 0, 1, 1], [], []>} : vector<512x36xf32>, vector<36x128xf32>, vector<512x128xf32> -> vector<512x128xf32>
    %c0_3 = arith.constant 0 : index
    %c0_4 = arith.constant 0 : index
    %3 = vector.load %arg3[%c0_3, %c0_4] : memref<1x128xf32, #tpu.memory_space<vmem>>, vector<1x128xf32>
    %4 = vector.broadcast %3 : vector<1x128xf32> to vector<512x128xf32>
    %5 = arith.addf %2, %4 : vector<512x128xf32>
    %cst_5 = arith.constant 0.000000e+00 : f32
    %6 = vector.broadcast %cst_5 : f32 to vector<512x128xf32>
    %7 = arith.maximumf %5, %6 : vector<512x128xf32>
    %8 = vector.shape_cast %7 : vector<512x128xf32> to vector<8x8192xf32>
    %c0_6 = arith.constant 0 : index
    %c0_7 = arith.constant 0 : index
    %9 = vector.load %arg4[%c0_6, %c0_7] : memref<8192x128xf32, #tpu.memory_space<vmem>>, vector<8192x128xf32>
    %cst_8 = arith.constant dense<0.000000e+00> : vector<8x128xf32>
    %10 = tpu.matmul %8, %9, %cst_8 {dimension_numbers = #tpu.dot_dimension_numbers<[1], [0], [0], [1], [0, 0, 1, 1], [], []>} : vector<8x8192xf32>, vector<8192x128xf32>, vector<8x128xf32> -> vector<8x128xf32>
    %c0_9 = arith.constant 0 : index
    %c0_10 = arith.constant 0 : index
    %11 = vector.load %arg5[%c0_9, %c0_10] : memref<1x128xf32, #tpu.memory_space<vmem>>, vector<1x128xf32>
    %12 = vector.broadcast %11 : vector<1x128xf32> to vector<8x128xf32>
    %13 = arith.addf %10, %12 : vector<8x128xf32>
    %cst_11 = arith.constant 0.000000e+00 : f32
    %14 = vector.broadcast %cst_11 : f32 to vector<8x128xf32>
    %15 = arith.maximumf %13, %14 : vector<8x128xf32>
    %c0_12 = arith.constant 0 : index
    %c0_13 = arith.constant 0 : index
    %16 = vector.load %arg6[%c0_12, %c0_13] : memref<128x128xf32, #tpu.memory_space<vmem>>, vector<128x128xf32>
    %cst_14 = arith.constant dense<0.000000e+00> : vector<8x128xf32>
    %17 = tpu.matmul %15, %16, %cst_14 {dimension_numbers = #tpu.dot_dimension_numbers<[1], [0], [0], [1], [0, 0, 1, 1], [], []>} : vector<8x128xf32>, vector<128x128xf32>, vector<8x128xf32> -> vector<8x128xf32>
    %c0_15 = arith.constant 0 : index
    %c0_16 = arith.constant 0 : index
    %18 = vector.load %arg7[%c0_15, %c0_16] : memref<1x128xf32, #tpu.memory_space<vmem>>, vector<1x128xf32>
    %19 = vector.broadcast %18 : vector<1x128xf32> to vector<8x128xf32>
    %20 = arith.addf %17, %19 : vector<8x128xf32>
    %c0_17 = arith.constant 0 : index
    %c0_18 = arith.constant 0 : index
    %21 = vector.load %arg8[%c0_17, %c0_18] : memref<8x128xf32, #tpu.memory_space<vmem>>, vector<8x128xf32>
    tpu.vector_store %arg8[%c0_17, %c0_18], %20 {strides = array<i32>} : memref<8x128xf32, #tpu.memory_space<vmem>>, vector<8x128xf32>,
    return
  }
  func.func @transform_0(%arg0: i32) -> (i32, i32) {
    %c0_i32 = arith.constant 0 : i32
    %c0_i32_0 = arith.constant 0 : i32
    return %arg0, %c0_i32 : i32, i32
  }
  func.func @transform_1(%arg0: i32) -> (i32, i32) {
    %c0_i32 = arith.constant 0 : i32
    %c0_i32_0 = arith.constant 0 : i32
    %c0_i32_1 = arith.constant 0 : i32
    return %c0_i32, %c0_i32_0 : i32, i32
  }
  func.func @transform_2(%arg0: i32) -> (i32, i32) {
    %c0_i32 = arith.constant 0 : i32
    %c0_i32_0 = arith.constant 0 : i32
    %c0_i32_1 = arith.constant 0 : i32
    return %c0_i32, %c0_i32_0 : i32, i32
  }
  func.func @transform_3(%arg0: i32) -> (i32, i32) {
    %c0_i32 = arith.constant 0 : i32
    %c0_i32_0 = arith.constant 0 : i32
    %c0_i32_1 = arith.constant 0 : i32
    return %c0_i32, %c0_i32_0 : i32, i32
  }
  func.func @transform_4(%arg0: i32) -> (i32, i32) {
    %c0_i32 = arith.constant 0 : i32
    %c0_i32_0 = arith.constant 0 : i32
    %c0_i32_1 = arith.constant 0 : i32
    return %c0_i32, %c0_i32_0 : i32, i32
  }
  func.func @transform_5(%arg0: i32) -> (i32, i32) {
    %c0_i32 = arith.constant 0 : i32
    %c0_i32_0 = arith.constant 0 : i32
    %c0_i32_1 = arith.constant 0 : i32
    return %c0_i32, %c0_i32_0 : i32, i32
  }
  func.func @transform_6(%arg0: i32) -> (i32, i32) {
    %c0_i32 = arith.constant 0 : i32
    %c0_i32_0 = arith.constant 0 : i32
    %c0_i32_1 = arith.constant 0 : i32
    return %c0_i32, %c0_i32_0 : i32, i32
  }
  func.func @transform_7(%arg0: i32) -> (i32, i32) {
    %c0_i32 = arith.constant 0 : i32
    %c0_i32_0 = arith.constant 0 : i32
    return %arg0, %c0_i32 : i32, i32
  }
}

</mosaic_0001>

<llo_original>
// kernel: tpu_custom_call.1
$region0: #{tpu_custom_call.1}
  #allocation0 [shape = 'u32[]', space=smem, size = 0x4, offset = 0x4, fixed_abs, tag = 'smem constant byte address 0x4 - core index']
  #allocation1 [shape = 'u32[144,128]{1,0:T(1,128)}', space=vmem, size = 0x12000, scoped, tag = 'internal scratch']
  %s0 = inlined_call_operand.vmem [shape: f32[1024,36], index: 0, kind: input, shape index: {}]
  %s1 = inlined_call_operand.hbm [shape: f32[36,128], index: 1, kind: input, shape index: {}]
  %s2 = inlined_call_operand.hbm [shape: f32[1,128], index: 2, kind: input, shape index: {}]
  %s3 = inlined_call_operand.hbm [shape: f32[8192,128], index: 3, kind: input, shape index: {}]
  %s4 = inlined_call_operand.hbm [shape: f32[1,128], index: 4, kind: input, shape index: {}]
  %s5 = inlined_call_operand.hbm [shape: f32[128,128], index: 5, kind: input, shape index: {}]
  %s6 = inlined_call_operand.hbm [shape: f32[1,128], index: 6, kind: input, shape index: {}]
  %s7 = inlined_call_operand.hbm [shape: f32[16,128], index: 7, kind: output, shape index: {}]
  %s8 = sld [smem:[#allocation0]]
  $region85: #{tpu_custom_call.1} parent=0
    _
  %s10 = ssub.s32 1, %s8
  %s11 = scalar_select 0, %s10, %s8
  $region1: #{tpu_custom_call.1} parent=0
    #allocation2 [shape = 'u8[20480]{0}', space=vmem, size = 0x5000, scoped, tag = 'input window, operand 1, single buffered']
    #allocation3 [shape = 's32[2]{0}', space=sflag, size = 0x8, scoped, tag = 'scoped memory for tpu_custom_call.1']
    #allocation4 [shape = 's32[2]{0}', space=sflag, size = 0x8, scoped, tag = 'scoped memory for tpu_custom_call.1']
    #allocation5 [shape = 'u8[512]{0}', space=vmem, size = 0x400, scoped, tag = 'input window, operand 2, single buffered']
    #allocation6 [shape = 's32[1]{0}', space=sflag, size = 0x4, scoped, tag = 'scoped memory for tpu_custom_call.1']
    #allocation7 [shape = 'u8[4194304]{0}', space=vmem, size = 0x400000, scoped, tag = 'input window, operand 3, single buffered']
    #allocation8 [shape = 'u8[512]{0}', space=vmem, size = 0x400, scoped, tag = 'input window, operand 4, single buffered']
    #allocation9 [shape = 's32[1]{0}', space=sflag, size = 0x4, scoped, tag = 'scoped memory for tpu_custom_call.1']
    #allocation10 [shape = 'u8[65536]{0}', space=vmem, size = 0x10000, scoped, tag = 'input window, operand 5, single buffered']
    #allocation11 [shape = 'u8[512]{0}', space=vmem, size = 0x400, scoped, tag = 'input window, operand 6, single buffered']
    #allocation12 [shape = 's32[1]{0}', space=sflag, size = 0x4, scoped, tag = 'scoped memory for tpu_custom_call.1']
    #allocation13 [shape = 'u8[8192]{0}', space=vmem, size = 0x2000, scoped, tag = 'output window, operand 0']
    %12 = vsyncpa [#allocation3], 0
    %13 = vsyncpa [#allocation6], 0
    %14 = vsyncpa [#allocation9], 0
    %15 = vsyncpa [#allocation12], 0
    %16 = vsyncpa [#allocation4], 0
    %s17 = scalar_lea.sflag [#allocation4], 1
    %18 = vsyncpa %s17, 0
    loop: start=0, step=1, limit=4
    $region2: #{tpu_custom_call.1} parent=1 // loop_pre_header
      _
    $region3: #{tpu_custom_call.1} parent=1 // loop_header
      %s20 = sphi 0, %s24
      %p21 = scmp.ge.s32.totalorder %s20, 4
      %s30 = sphi 0, %s32
      %s33 = sphi 0, %s30
      %s34 = sphi 0, %s33
      %s50 = sphi 0, %s34
      %s54 = sphi 0, %s54
      %s56 = sphi 0, %s54
      %s57 = sphi 0, %s56
      %s71 = sphi 0, %s57
      %s75 = sphi 0, %s75
      %s77 = sphi 0, %s75
      %s78 = sphi 0, %s77
      %s92 = sphi 0, %s78
      %s96 = sphi 0, %s96
      %s98 = sphi 0, %s96
      %s99 = sphi 0, %s98
      %s113 = sphi 0, %s99
      %s117 = sphi 0, %s117
      %s119 = sphi 0, %s117
      %s120 = sphi 0, %s119
      %s134 = sphi 0, %s120
      %s138 = sphi 0, %s138
      %s140 = sphi 0, %s138
      %s141 = sphi 0, %s140
      %s155 = sphi 0, %s141
      %s159 = sphi 0, %s159
      %s161 = sphi 0, %s159
      %s162 = sphi 0, %s161
      %s176 = sphi 0, %s162
      %s182 = sphi 0, %s184
      %s185 = sphi 0, %s182
      %s186 = sphi 0, %s185
      %s202 = sphi 0, %s186
    $region4: #{tpu_custom_call.1} parent=1 // loop_header_branch
      %23 = sbr.rel (%p21) target = $region8
    $region5: #{tpu_custom_call.1} parent=1 // loop_body
      %s25 = ssub.s32 %s20, 1
      %s26 = ssub.s32 %s20, 2
      %s27 = sadd.s32 %s20, 1
      %s28 = ssub.s32 %s20, %s27
      %p29 = scmp.eq.s32.totalorder %s28, 0
      %s31 = sadd.s32 %s30, 1
      %s32 = scalar_select %p29, %s30, %s31
      %p35 = pneg %p29
      %p36 = scmp.eq.s32.totalorder %s20, 1
      %p37 = por %p35, %p36
      %p38 = scmp.ne.s32.totalorder %s30, %s33
      %p39 = scmp.eq.s32.totalorder %s20, 0
      %p40 = por %p38, %p39
      %p41 = scmp.ne.s32.totalorder %s30, %s33
      %p42 = scmp.eq.s32.totalorder %s25, 1
      %p43 = por %p41, %p42
      %p44 = scmp.ne.s32.totalorder %s33, %s34
      %p45 = scmp.eq.s32.totalorder %s25, 0
      %p46 = por %p44, %p45
      %p47 = scmp.ne.s32.totalorder %s33, %s34
      %p48 = scmp.eq.s32.totalorder %s26, 1
      %p49 = por %p47, %p48
      %p51 = scmp.ne.s32.totalorder %s34, %s50
      %p52 = scmp.eq.s32.totalorder %s26, 0
      %p53 = por %p51, %p52
      %s55 = sadd.s32 %s54, 1
      %p58 = scmp.eq.s32.totalorder %s20, 1
      %p59 = scmp.ne.s32.totalorder %s54, %s56
      %p60 = scmp.eq.s32.totalorder %s20, 0
      %p61 = por %p59, %p60
      %p62 = scmp.ne.s32.totalorder %s54, %s56
      %p63 = scmp.eq.s32.totalorder %s25, 1
      %p64 = por %p62, %p63
      %p65 = scmp.ne.s32.totalorder %s56, %s57
      %p66 = scmp.eq.s32.totalorder %s25, 0
      %p67 = por %p65, %p66
      %p68 = scmp.ne.s32.totalorder %s56, %s57
      %p69 = scmp.eq.s32.totalorder %s26, 1
      %p70 = por %p68, %p69
      %p72 = scmp.ne.s32.totalorder %s57, %s71
      %p73 = scmp.eq.s32.totalorder %s26, 0
      %p74 = por %p72, %p73
      %s76 = sadd.s32 %s75, 1
      %p79 = scmp.eq.s32.totalorder %s20, 1
      %p80 = scmp.ne.s32.totalorder %s75, %s77
      %p81 = scmp.eq.s32.totalorder %s20, 0
      %p82 = por %p80, %p81
      %p83 = scmp.ne.s32.totalorder %s75, %s77
      %p84 = scmp.eq.s32.totalorder %s25, 1
      %p85 = por %p83, %p84
      %p86 = scmp.ne.s32.totalorder %s77, %s78
      %p87 = scmp.eq.s32.totalorder %s25, 0
      %p88 = por %p86, %p87
      %p89 = scmp.ne.s32.totalorder %s77, %s78
      %p90 = scmp.eq.s32.totalorder %s26, 1
      %p91 = por %p89, %p90
      %p93 = scmp.ne.s32.totalorder %s78, %s92
      %p94 = scmp.eq.s32.totalorder %s26, 0
      %p95 = por %p93, %p94
      %s97 = sadd.s32 %s96, 1
      %p100 = scmp.eq.s32.totalorder %s20, 1
      %p101 = scmp.ne.s32.totalorder %s96, %s98
      %p102 = scmp.eq.s32.totalorder %s20, 0
      %p103 = por %p101, %p102
      %p104 = scmp.ne.s32.totalorder %s96, %s98
      %p105 = scmp.eq.s32.totalorder %s25, 1
      %p106 = por %p104, %p105
      %p107 = scmp.ne.s32.totalorder %s98, %s99
      %p108 = scmp.eq.s32.totalorder %s25, 0
      %p109 = por %p107, %p108
      %p110 = scmp.ne.s32.totalorder %s98, %s99
      %p111 = scmp.eq.s32.totalorder %s26, 1
      %p112 = por %p110, %p111
      %p114 = scmp.ne.s32.totalorder %s99, %s113
      %p115 = scmp.eq.s32.totalorder %s26, 0
      %p116 = por %p114, %p115
      %s118 = sadd.s32 %s117, 1
      %p121 = scmp.eq.s32.totalorder %s20, 1
      %p122 = scmp.ne.s32.totalorder %s117, %s119
      %p123 = scmp.eq.s32.totalorder %s20, 0
      %p124 = por %p122, %p123
      %p125 = scmp.ne.s32.totalorder %s117, %s119
      %p126 = scmp.eq.s32.totalorder %s25, 1
      %p127 = por %p125, %p126
      %p128 = scmp.ne.s32.totalorder %s119, %s120
      %p129 = scmp.eq.s32.totalorder %s25, 0
      %p130 = por %p128, %p129
      %p131 = scmp.ne.s32.totalorder %s119, %s120
      %p132 = scmp.eq.s32.totalorder %s26, 1
      %p133 = por %p131, %p132
      %p135 = scmp.ne.s32.totalorder %s120, %s134
      %p136 = scmp.eq.s32.totalorder %s26, 0
      %p137 = por %p135, %p136
      %s139 = sadd.s32 %s138, 1
      %p142 = scmp.eq.s32.totalorder %s20, 1
      %p143 = scmp.ne.s32.totalorder %s138, %s140
      %p144 = scmp.eq.s32.totalorder %s20, 0
      %p145 = por %p143, %p144
      %p146 = scmp.ne.s32.totalorder %s138, %s140
      %p147 = scmp.eq.s32.totalorder %s25, 1
      %p148 = por %p146, %p147
      %p149 = scmp.ne.s32.totalorder %s140, %s141
      %p150 = scmp.eq.s32.totalorder %s25, 0
      %p151 = por %p149, %p150
      %p152 = scmp.ne.s32.totalorder %s140, %s141
      %p153 = scmp.eq.s32.totalorder %s26, 1
      %p154 = por %p152, %p153
      %p156 = scmp.ne.s32.totalorder %s141, %s155
      %p157 = scmp.eq.s32.totalorder %s26, 0
      %p158 = por %p156, %p157
      %s160 = sadd.s32 %s159, 1
      %p163 = scmp.eq.s32.totalorder %s20, 1
      %p164 = scmp.ne.s32.totalorder %s159, %s161
      %p165 = scmp.eq.s32.totalorder %s20, 0
      %p166 = por %p164, %p165
      %p167 = scmp.ne.s32.totalorder %s159, %s161
      %p168 = scmp.eq.s32.totalorder %s25, 1
      %p169 = por %p167, %p168
      %p170 = scmp.ne.s32.totalorder %s161, %s162
      %p171 = scmp.eq.s32.totalorder %s25, 0
      %p172 = por %p170, %p171
      %p173 = scmp.ne.s32.totalorder %s161, %s162
      %p174 = scmp.eq.s32.totalorder %s26, 1
      %p175 = por %p173, %p174
      %p177 = scmp.ne.s32.totalorder %s162, %s176
      %p178 = scmp.eq.s32.totalorder %s26, 0
      %p179 = por %p177, %p178
      %s180 = ssub.s32 %s20, %s27
      %p181 = scmp.eq.s32.totalorder %s180, 0
      %s183 = sadd.s32 %s182, 1
      %s184 = scalar_select %p181, %s182, %s183
      %p187 = pneg %p181
      %p188 = scmp.eq.s32.totalorder %s20, 1
      %p189 = por %p187, %p188
      %p190 = scmp.ne.s32.totalorder %s182, %s185
      %p191 = scmp.eq.s32.totalorder %s20, 0
      %p192 = por %p190, %p191
      %p193 = scmp.ne.s32.totalorder %s182, %s185
      %p194 = scmp.eq.s32.totalorder %s25, 1
      %p195 = por %p193, %p194
      %p196 = scmp.ne.s32.totalorder %s185, %s186
      %p197 = scmp.eq.s32.totalorder %s25, 0
      %p198 = por %p196, %p197
      %p199 = scmp.ne.s32.totalorder %s185, %s186
      %p200 = scmp.eq.s32.totalorder %s26, 1
      %p201 = por %p199, %p200
      %p203 = scmp.ne.s32.totalorder %s186, %s202
      %p204 = scmp.eq.s32.totalorder %s26, 0
      %p205 = por %p203, %p204
      %p206 = scmp.le.s32.totalorder 1, %s20
      %p207 = scmp.lt.s32.totalorder %s20, 3
      %p208 = pnand %p206, %p207
      %p209 = pneg %p208
      // Predicated region
      $region9: #{tpu_custom_call.1} parent=5 // pred_check
        _
      $region10: #{tpu_custom_call.1} parent=5 // pred_check_branch
        %211 = sbr.rel (%p208) target = $region12
      $region11: #{tpu_custom_call.1} parent=5 // pred_region
        %s212 = ssub.s32 %s20, 1
        // Predicated region
        $region13: #{tpu_custom_call.1} parent=11 // pred_check
          %p213 = pneg %p67
        $region14: #{tpu_custom_call.1} parent=11 // pred_check_branch
          %215 = sbr.rel (%p213) target = $region16
        $region15: #{tpu_custom_call.1} parent=11 // pred_region
          %s217 = ssub.s32 640, 640
          %218 = vsyncadd [#allocation3], %s217
          %s219 = sshll.u32 [#allocation2], 4
          %s220 = int_to_ptr.vmem [resolvable:$true] %s219
          %225 = dma.hbm_to_vmem [thread:$0]  %s1, 640, %s220, [#allocation3], 128, 128, 8
        $region16: #{tpu_custom_call.1} parent=11 // pred_fallthru
          _
        // Predicated region
        $region17: #{tpu_custom_call.1} parent=11 // pred_check
          %p226 = pneg %p88
        $region18: #{tpu_custom_call.1} parent=11 // pred_check_branch
          %228 = sbr.rel (%p226) target = $region20
        $region19: #{tpu_custom_call.1} parent=11 // pred_region
          %s230 = ssub.s32 16, 16
          %231 = vsyncadd [#allocation6], %s230
          %s233 = sshll.u32 [#allocation5], 4
          %s234 = int_to_ptr.vmem [resolvable:$true] %s233
          %236 = dma.hbm_to_vmem [thread:$0]  %s2, 16, %s234, [#allocation6]
        $region20: #{tpu_custom_call.1} parent=11 // pred_fallthru
          _
        // Predicated region
        $region21: #{tpu_custom_call.1} parent=11 // pred_check
          %p237 = pneg %p109
        $region22: #{tpu_custom_call.1} parent=11 // pred_check_branch
          %239 = sbr.rel (%p237) target = $region24
        $region23: #{tpu_custom_call.1} parent=11 // pred_region
          %s241 = ssub.s32 131072, 131072
          %242 = vsyncadd [#allocation6], %s241
          %s243 = sshll.u32 [#allocation7], 4
          %s244 = int_to_ptr.vmem [resolvable:$true] %s243
          %249 = dma.hbm_to_vmem [thread:$0]  %s3, 131072, %s244, [#allocation6], 128, 128, 8
        $region24: #{tpu_custom_call.1} parent=11 // pred_fallthru
          _
        // Predicated region
        $region25: #{tpu_custom_call.1} parent=11 // pred_check
          %p250 = pneg %p130
        $region26: #{tpu_custom_call.1} parent=11 // pred_check_branch
          %252 = sbr.rel (%p250) target = $region28
        $region27: #{tpu_custom_call.1} parent=11 // pred_region
          %s254 = ssub.s32 16, 16
          %255 = vsyncadd [#allocation9], %s254
          %s257 = sshll.u32 [#allocation8], 4
          %s258 = int_to_ptr.vmem [resolvable:$true] %s257
          %260 = dma.hbm_to_vmem [thread:$0]  %s4, 16, %s258, [#allocation9]
        $region28: #{tpu_custom_call.1} parent=11 // pred_fallthru
          _
        // Predicated region
        $region29: #{tpu_custom_call.1} parent=11 // pred_check
          %p261 = pneg %p151
        $region30: #{tpu_custom_call.1} parent=11 // pred_check_branch
          %263 = sbr.rel (%p261) target = $region32
        $region31: #{tpu_custom_call.1} parent=11 // pred_region
          %s265 = ssub.s32 2048, 2048
          %266 = vsyncadd [#allocation9], %s265
          %s267 = sshll.u32 [#allocation10], 4
          %s268 = int_to_ptr.vmem [resolvable:$true] %s267
          %273 = dma.hbm_to_vmem [thread:$0]  %s5, 2048, %s268, [#allocation9], 128, 128, 8
        $region32: #{tpu_custom_call.1} parent=11 // pred_fallthru
          _
        // Predicated region
        $region33: #{tpu_custom_call.1} parent=11 // pred_check
          %p274 = pneg %p172
        $region34: #{tpu_custom_call.1} parent=11 // pred_check_branch
          %276 = sbr.rel (%p274) target = $region36
        $region35: #{tpu_custom_call.1} parent=11 // pred_region
          %s278 = ssub.s32 16, 16
          %279 = vsyncadd [#allocation12], %s278
          %s281 = sshll.u32 [#allocation11], 4
          %s282 = int_to_ptr.vmem [resolvable:$true] %s281
          %284 = dma.hbm_to_vmem [thread:$0]  %s6, 16, %s282, [#allocation12]
        $region36: #{tpu_custom_call.1} parent=11 // pred_fallthru
          _
      $region12: #{tpu_custom_call.1} parent=5 // pred_fallthru
        _
      %p285 = scmp.lt.s32.totalorder %s20, 2
      // Predicated region
      $region37: #{tpu_custom_call.1} parent=5 // pred_check
        %p286 = pneg %p285
      $region38: #{tpu_custom_call.1} parent=5 // pred_check_branch
        %288 = sbr.rel (%p286) target = $region40
      $region39: #{tpu_custom_call.1} parent=5 // pred_region
        // Predicated region
        $region41: #{tpu_custom_call.1} parent=39 // pred_check
          %p289 = pneg %p40
        $region42: #{tpu_custom_call.1} parent=39 // pred_check_branch
          %291 = sbr.rel (%p289) target = $region44
        $region43: #{tpu_custom_call.1} parent=39 // pred_region
          %s292 = smul.u32 64, %s20
          %p293 = scmp.lt.s32.totalorder %s292, 127
          %s294 = scalar_select %p293, %s292, 127
          %s295 = smul.addr %s294, 8
          %s296 = scalar_lea.vmem %s0, %s295
          %s297 = smul.u32 64, %s20
        $region44: #{tpu_custom_call.1} parent=39 // pred_fallthru
          _
      $region40: #{tpu_custom_call.1} parent=5 // pred_fallthru
        _
      %p298 = scmp.le.s32.totalorder 1, %s20
      %p299 = scmp.lt.s32.totalorder %s20, 3
      %p300 = pnand %p298, %p299
      %p301 = pneg %p300
      // Predicated region
      $region45: #{tpu_custom_call.1} parent=5 // pred_check
        _
      $region46: #{tpu_custom_call.1} parent=5 // pred_check_branch
        %303 = sbr.rel (%p300) target = $region48
      $region47: #{tpu_custom_call.1} parent=5 // pred_region
        %s304 = ssub.s32 %s20, 1
        // Predicated region
        $region49: #{tpu_custom_call.1} parent=47 // pred_check
          %p305 = pneg %p67
        $region50: #{tpu_custom_call.1} parent=47 // pred_check_branch
          %307 = sbr.rel (%p305) target = $region52
        $region51: #{tpu_custom_call.1} parent=47 // pred_region
          %308 = dma.done [#allocation3], 640
        $region52: #{tpu_custom_call.1} parent=47 // pred_fallthru
          _
        // Predicated region
        $region53: #{tpu_custom_call.1} parent=47 // pred_check
          %p309 = pneg %p88
        $region54: #{tpu_custom_call.1} parent=47 // pred_check_branch
          %311 = sbr.rel (%p309) target = $region56
        $region55: #{tpu_custom_call.1} parent=47 // pred_region
          %312 = dma.done [#allocation6], 16
        $region56: #{tpu_custom_call.1} parent=47 // pred_fallthru
          _
        // Predicated region
        $region57: #{tpu_custom_call.1} parent=47 // pred_check
          %p313 = pneg %p109
        $region58: #{tpu_custom_call.1} parent=47 // pred_check_branch
          %315 = sbr.rel (%p313) target = $region60
        $region59: #{tpu_custom_call.1} parent=47 // pred_region
          %316 = dma.done [#allocation6], 131072
        $region60: #{tpu_custom_call.1} parent=47 // pred_fallthru
          _
        // Predicated region
        $region61: #{tpu_custom_call.1} parent=47 // pred_check
          %p317 = pneg %p130
        $region62: #{tpu_custom_call.1} parent=47 // pred_check_branch
          %319 = sbr.rel (%p317) target = $region64
        $region63: #{tpu_custom_call.1} parent=47 // pred_region
          %320 = dma.done [#allocation9], 16
        $region64: #{tpu_custom_call.1} parent=47 // pred_fallthru
          _
        // Predicated region
        $region65: #{tpu_custom_call.1} parent=47 // pred_check
          %p321 = pneg %p151
        $region66: #{tpu_custom_call.1} parent=47 // pred_check_branch
          %323 = sbr.rel (%p321) target = $region68
        $region67: #{tpu_custom_call.1} parent=47 // pred_region
          %324 = dma.done [#allocation9], 2048
        $region68: #{tpu_custom_call.1} parent=47 // pred_fallthru
          _
        // Predicated region
        $region69: #{tpu_custom_call.1} parent=47 // pred_check
          %p325 = pneg %p172
        $region70: #{tpu_custom_call.1} parent=47 // pred_check_branch
          %327 = sbr.rel (%p325) target = $region72
        $region71: #{tpu_custom_call.1} parent=47 // pred_region
          %328 = dma.done [#allocation12], 16
        $region72: #{tpu_custom_call.1} parent=47 // pred_fallthru
          _
        %s329 = smul.u32 64, %s25
        %p330 = scmp.lt.s32.totalorder %s329, 127
        %s331 = scalar_select %p330, %s329, 127
        %s332 = smul.addr %s331, 8
        %s333 = scalar_lea.vmem %s0, %s332
        %p334 = pneg %p46
        %p335 = pneg %p43
        %p336 = pneg %p67
        %p337 = pneg %p64
        %p338 = pneg %p88
        %p339 = pneg %p85
        %p340 = pneg %p109
        %p341 = pneg %p106
        %p342 = pneg %p130
        %p343 = pneg %p127
        %p344 = pneg %p151
        %p345 = pneg %p148
        %p346 = pneg %p172
        %p347 = pneg %p169
        %p348 = pneg %p198
        %p349 = pneg %p195
        %s350 = sand.u32 %s185, 1
        %s351 = scalar_lea.sflag [#allocation4], %s350
        %s352 = sand.u32 %s185, 1
        %s353 = smul.addr %s352, 8
        %s354 = scalar_lea.vmem [#allocation13], %s353
        %s355 = smul.u32 64, %s25
        %p356 = scmp.lt.s32.totalorder %s355, 127
        %s357 = scalar_select %p356, %s355, 127
        %s358 = smul.addr %s357, 8
        %s359 = scalar_lea.vmem %s0, %s358
        %s360 = smul.u32 64, %s25
        %v361 = vld [vmem:[%s359] sm:$0xff]
        %v362 = vld [vmem:[%s359 + $0x8] sm:$0xff]
        %v363 = vld [vmem:[%s359 + $0x10] sm:$0xff]
        %v364 = vld [vmem:[%s359 + $0x18] sm:$0xff]
        %v365 = vld [vmem:[%s359 + $0x20] sm:$0xff]
        %v366 = vld [vmem:[%s359 + $0x28] sm:$0xff]
        %v367 = vld [vmem:[%s359 + $0x30] sm:$0xff]
        %v368 = vld [vmem:[%s359 + $0x38] sm:$0xff]
        %v369 = vld [vmem:[%s359 + $0x40] sm:$0xff]
        %v370 = vld [vmem:[%s359 + $0x48] sm:$0xff]
        %v371 = vld [vmem:[%s359 + $0x50] sm:$0xff]
        %v372 = vld [vmem:[%s359 + $0x58] sm:$0xff]
        %v373 = vld [vmem:[%s359 + $0x60] sm:$0xff]
        %v374 = vld [vmem:[%s359 + $0x68] sm:$0xff]
        %v375 = vld [vmem:[%s359 + $0x70] sm:$0xff]
        %v376 = vld [vmem:[%s359 + $0x78] sm:$0xff]
        %v377 = vld [vmem:[%s359 + $0x80] sm:$0xff]
        %v378 = vld [vmem:[%s359 + $0x88] sm:$0xff]
        %v379 = vld [vmem:[%s359 + $0x90] sm:$0xff]
        %v380 = vld [vmem:[%s359 + $0x98] sm:$0xff]
        %v381 = vld [vmem:[%s359 + $0xa0] sm:$0xff]
        %v382 = vld [vmem:[%s359 + $0xa8] sm:$0xff]
        %v383 = vld [vmem:[%s359 + $0xb0] sm:$0xff]
        %v384 = vld [vmem:[%s359 + $0xb8] sm:$0xff]
        %v385 = vld [vmem:[%s359 + $0xc0] sm:$0xff]
        %v386 = vld [vmem:[%s359 + $0xc8] sm:$0xff]
        %v387 = vld [vmem:[%s359 + $0xd0] sm:$0xff]
        %v388 = vld [vmem:[%s359 + $0xd8] sm:$0xff]
        %v389 = vld [vmem:[%s359 + $0xe0] sm:$0xff]
        %v390 = vld [vmem:[%s359 + $0xe8] sm:$0xff]
        %v391 = vld [vmem:[%s359 + $0xf0] sm:$0xff]
        %v392 = vld [vmem:[%s359 + $0xf8] sm:$0xff]
        %v393 = vld [vmem:[%s359 + $0x100] sm:$0xff]
        %v394 = vld [vmem:[%s359 + $0x108] sm:$0xff]
        %v395 = vld [vmem:[%s359 + $0x110] sm:$0xff]
        %v396 = vld [vmem:[%s359 + $0x118] sm:$0xff]
        %v397 = vld [vmem:[%s359 + $0x120] sm:$0xff]
        %v398 = vld [vmem:[%s359 + $0x128] sm:$0xff]
        %v399 = vld [vmem:[%s359 + $0x130] sm:$0xff]
        %v400 = vld [vmem:[%s359 + $0x138] sm:$0xff]
        %v401 = vld [vmem:[%s359 + $0x140] sm:$0xff]
        %v402 = vld [vmem:[%s359 + $0x148] sm:$0xff]
        %v403 = vld [vmem:[%s359 + $0x150] sm:$0xff]
        %v404 = vld [vmem:[%s359 + $0x158] sm:$0xff]
        %v405 = vld [vmem:[%s359 + $0x160] sm:$0xff]
        %v406 = vld [vmem:[%s359 + $0x168] sm:$0xff]
        %v407 = vld [vmem:[%s359 + $0x170] sm:$0xff]
        %v408 = vld [vmem:[%s359 + $0x178] sm:$0xff]
        %v409 = vld [vmem:[%s359 + $0x180] sm:$0xff]
        %v410 = vld [vmem:[%s359 + $0x188] sm:$0xff]
        %v411 = vld [vmem:[%s359 + $0x190] sm:$0xff]
        %v412 = vld [vmem:[%s359 + $0x198] sm:$0xff]
        %v413 = vld [vmem:[%s359 + $0x1a0] sm:$0xff]
        %v414 = vld [vmem:[%s359 + $0x1a8] sm:$0xff]
        %v415 = vld [vmem:[%s359 + $0x1b0] sm:$0xff]
        %v416 = vld [vmem:[%s359 + $0x1b8] sm:$0xff]
        %v417 = vld [vmem:[%s359 + $0x1c0] sm:$0xff]
        %v418 = vld [vmem:[%s359 + $0x1c8] sm:$0xff]
        %v419 = vld [vmem:[%s359 + $0x1d0] sm:$0xff]
        %v420 = vld [vmem:[%s359 + $0x1d8] sm:$0xff]
        %v421 = vld [vmem:[%s359 + $0x1e0] sm:$0xff]
        %v422 = vld [vmem:[%s359 + $0x1e8] sm:$0xff]
        %v423 = vld [vmem:[%s359 + $0x1f0] sm:$0xff]
        %v424 = vld [vmem:[%s359 + $0x1f8] sm:$0xff]
        %v425 = vld [vmem:[#allocation2] sm:$0xff]
        %v426 = vld [vmem:[#allocation2 + $0x8] sm:$0xff]
        %v427 = vld [vmem:[#allocation2 + $0x10] sm:$0xff]
        %v428 = vld [vmem:[#allocation2 + $0x18] sm:$0xff]
        %v429 = vld [vmem:[#allocation2 + $0x20] sm:$0xf]
        %v430 = vld [vmem:[#allocation5] sm:$0x1]
        %v432 = vlaneseq
        %v433 = vshrl.u32 %v432, 7
        %v434 = vsub.s32 0, %v433
        %v435 = vrot.slane %v430, %v434
        %vm437 = vcmask 293888
        %v439 = vsel %vm437, %v361, 0
        %v442 = vsel %vm437, %v362, 0
        %v445 = vsel %vm437, %v363, 0
        %v448 = vsel %vm437, %v364, 0
        %v451 = vsel %vm437, %v365, 0
        %v454 = vsel %vm437, %v366, 0
        %v457 = vsel %vm437, %v367, 0
        %v460 = vsel %vm437, %v368, 0
        %v463 = vsel %vm437, %v369, 0
        %v466 = vsel %vm437, %v370, 0
        %v469 = vsel %vm437, %v371, 0
        %v472 = vsel %vm437, %v372, 0
        %v475 = vsel %vm437, %v373, 0
        %v478 = vsel %vm437, %v374, 0
        %v481 = vsel %vm437, %v375, 0
        %v484 = vsel %vm437, %v376, 0
        %v487 = vsel %vm437, %v377, 0
        %v490 = vsel %vm437, %v378, 0
        %v493 = vsel %vm437, %v379, 0
        %v496 = vsel %vm437, %v380, 0
        %v499 = vsel %vm437, %v381, 0
        %v502 = vsel %vm437, %v382, 0
        %v505 = vsel %vm437, %v383, 0
        %v508 = vsel %vm437, %v384, 0
        %v511 = vsel %vm437, %v385, 0
        %v514 = vsel %vm437, %v386, 0
        %v517 = vsel %vm437, %v387, 0
        %v520 = vsel %vm437, %v388, 0
        %v523 = vsel %vm437, %v389, 0
        %v526 = vsel %vm437, %v390, 0
        %v529 = vsel %vm437, %v391, 0
        %v532 = vsel %vm437, %v392, 0
        %v535 = vsel %vm437, %v393, 0
        %v538 = vsel %vm437, %v394, 0
        %v541 = vsel %vm437, %v395, 0
        %v544 = vsel %vm437, %v396, 0
        %v547 = vsel %vm437, %v397, 0
        %v550 = vsel %vm437, %v398, 0
        %v553 = vsel %vm437, %v399, 0
        %v556 = vsel %vm437, %v400, 0
        %v559 = vsel %vm437, %v401, 0
        %v562 = vsel %vm437, %v402, 0
        %v565 = vsel %vm437, %v403, 0
        %v568 = vsel %vm437, %v404, 0
        %v571 = vsel %vm437, %v405, 0
        %v574 = vsel %vm437, %v406, 0
        %v577 = vsel %vm437, %v407, 0
        %v580 = vsel %vm437, %v408, 0
        %v583 = vsel %vm437, %v409, 0
        %v586 = vsel %vm437, %v410, 0
        %v589 = vsel %vm437, %v411, 0
        %v592 = vsel %vm437, %v412, 0
        %v595 = vsel %vm437, %v413, 0
        %v598 = vsel %vm437, %v414, 0
        %v601 = vsel %vm437, %v415, 0
        %v604 = vsel %vm437, %v416, 0
        %v607 = vsel %vm437, %v417, 0
        %v610 = vsel %vm437, %v418, 0
        %v613 = vsel %vm437, %v419, 0
        %v616 = vsel %vm437, %v420, 0
        %v619 = vsel %vm437, %v421, 0
        %v622 = vsel %vm437, %v422, 0
        %v625 = vsel %vm437, %v423, 0
        %v628 = vsel %vm437, %v424, 0
        %vm630 = vcmask 1043456
        %v632 = vsel %vm630, %v429, 0
        %634 = vmatprep.subr.mxu0 0.0
        %635 = vmatpush1.msra.mxu0 %v425
        %636 = vmatprep.subr.mxu0 0.0
        %637 = vmatpush1.msra.mxu0 %v426
        %638 = vmatprep.subr.mxu0 0.0
        %639 = vmatpush1.msra.mxu0 %v427
        %640 = vmatprep.subr.mxu0 0.0
        %641 = vmatpush1.msra.mxu0 %v428
        %642 = vmatprep.subr.mxu0 0.0
        %643 = vmatpush1.msra.mxu0 %v632
        %644 = vmatprep.subr.mxu0 0.0
        %645 = vmatpush1.msra.mxu0 0.0
        %646 = vmatprep.subr.mxu0 0.0
        %647 = vmatpush1.msra.mxu0 0.0
        %648 = vmatprep.subr.mxu0 0.0
        %649 = vmatpush1.msra.mxu0 0.0
        %650 = vmatprep.subr.mxu0 0.0
        %651 = vmatpush1.msra.mxu0 0.0
        %652 = vmatprep.subr.mxu0 0.0
        %653 = vmatpush1.msra.mxu0 0.0
        %654 = vmatprep.subr.mxu0 0.0
        %655 = vmatpush1.msra.mxu0 0.0
        %656 = vmatprep.subr.mxu0 0.0
        %657 = vmatpush1.msra.mxu0 0.0
        %658 = vmatprep.subr.mxu0 0.0
        %659 = vmatpush1.msra.mxu0 0.0
        %660 = vmatprep.subr.mxu0 0.0
        %661 = vmatpush1.msra.mxu0 0.0
        %662 = vmatprep.subr.mxu0 0.0
        %663 = vmatpush1.msra.mxu0 0.0
        %664 = vmatprep.subr.mxu0 0.0
        %665 = vmatpush1.msra.mxu0 0.0
        %666 = vmatprep.subr.mxu0 0.0
        %667 = vmatpush1.msra.mxu0 0.0
        %668 = vmatprep.subr.mxu0 0.0
        %669 = vmatpush1.msra.mxu0 0.0
        %670 = vmatprep.subr.mxu0 0.0
        %671 = vmatpush1.msra.mxu0 0.0
        %672 = vmatprep.subr.mxu0 0.0
        %673 = vmatpush1.msra.mxu0 0.0
        %674 = vmatprep.subr.mxu0 0.0
        %675 = vmatpush1.msra.mxu0 0.0
        %676 = vmatprep.subr.mxu0 0.0
        %677 = vmatpush1.msra.mxu0 0.0
        %678 = vmatprep.subr.mxu0 0.0
        %679 = vmatpush1.msra.mxu0 0.0
        %680 = vmatprep.subr.mxu0 0.0
        %681 = vmatpush1.msra.mxu0 0.0
        %682 = vmatprep.subr.mxu0 0.0
        %683 = vmatpush1.msra.mxu0 0.0
        %684 = vmatprep.subr.mxu0 0.0
        %685 = vmatpush1.msra.mxu0 0.0
        %686 = vmatprep.subr.mxu0 0.0
        %687 = vmatpush1.msra.mxu0 0.0
        %688 = vmatprep.subr.mxu0 0.0
        %689 = vmatpush1.msra.mxu0 0.0
        %690 = vmatprep.subr.mxu0 0.0
        %691 = vmatpush1.msra.mxu0 0.0
        %692 = vmatprep.subr.mxu0 0.0
        %693 = vmatpush1.msra.mxu0 0.0
        %694 = vmatprep.subr.mxu0 0.0
        %695 = vmatpush1.msra.mxu0 0.0
        %696 = vmatprep.subr.mxu0 0.0
        %697 = vmatpush1.msra.mxu0 0.0
        %698 = vmatprep.mubr.f32.mxu0 0.0
        %699 = vmatmul.mubr.f32.gmra.mrb[0].mxu0 %v439
        %v700 = vpop.f32.mrb[0].mxu0
        %v701 = vadd.f32 %v435, %v700
        %v702 = vpop.f32.mrb[0].mxu0
        %703 = vmatprep.mubr.f32.mxu0 0.0
        %704 = vmatmul.mubr.f32.gmra.mrb[0].mxu0 %v442
        %v705 = vpop.f32.mrb[0].mxu0
        %v706 = vadd.f32 %v435, %v705
        %v707 = vpop.f32.mrb[0].mxu0
        %708 = vmatprep.mubr.f32.mxu0 0.0
        %709 = vmatmul.mubr.f32.gmra.mrb[0].mxu0 %v445
        %v710 = vpop.f32.mrb[0].mxu0
        %v711 = vadd.f32 %v435, %v710
        %v712 = vpop.f32.mrb[0].mxu0
        %713 = vmatprep.mubr.f32.mxu0 0.0
        %714 = vmatmul.mubr.f32.gmra.mrb[0].mxu0 %v448
        %v715 = vpop.f32.mrb[0].mxu0
        %v716 = vadd.f32 %v435, %v715
        %v717 = vpop.f32.mrb[0].mxu0
        %718 = vmatprep.mubr.f32.mxu0 0.0
        %719 = vmatmul.mubr.f32.gmra.mrb[0].mxu0 %v451
        %v720 = vpop.f32.mrb[0].mxu0
        %v721 = vadd.f32 %v435, %v720
        %v722 = vpop.f32.mrb[0].mxu0
        %723 = vmatprep.mubr.f32.mxu0 0.0
        %724 = vmatmul.mubr.f32.gmra.mrb[0].mxu0 %v454
        %v725 = vpop.f32.mrb[0].mxu0
        %v726 = vadd.f32 %v435, %v725
        %v727 = vpop.f32.mrb[0].mxu0
        %728 = vmatprep.mubr.f32.mxu0 0.0
        %729 = vmatmul.mubr.f32.gmra.mrb[0].mxu0 %v457
        %v730 = vpop.f32.mrb[0].mxu0
        %v731 = vadd.f32 %v435, %v730
        %v732 = vpop.f32.mrb[0].mxu0
        %733 = vmatprep.mubr.f32.mxu0 0.0
        %734 = vmatmul.mubr.f32.gmra.mrb[0].mxu0 %v460
        %v735 = vpop.f32.mrb[0].mxu0
        %v736 = vadd.f32 %v435, %v735
        %v737 = vpop.f32.mrb[0].mxu0
        %738 = vmatprep.mubr.f32.mxu0 0.0
        %739 = vmatmul.mubr.f32.gmra.mrb[0].mxu0 %v463
        %v740 = vpop.f32.mrb[0].mxu0
        %v741 = vadd.f32 %v435, %v740
        %v742 = vpop.f32.mrb[0].mxu0
        %743 = vmatprep.mubr.f32.mxu0 0.0
        %744 = vmatmul.mubr.f32.gmra.mrb[0].mxu0 %v466
        %v745 = vpop.f32.mrb[0].mxu0
        %v746 = vadd.f32 %v435, %v745
        %v747 = vpop.f32.mrb[0].mxu0
        %748 = vmatprep.mubr.f32.mxu0 0.0
        %749 = vmatmul.mubr.f32.gmra.mrb[0].mxu0 %v469
        %v750 = vpop.f32.mrb[0].mxu0
        %v751 = vadd.f32 %v435, %v750
        %v752 = vpop.f32.mrb[0].mxu0
        %753 = vmatprep.mubr.f32.mxu0 0.0
        %754 = vmatmul.mubr.f32.gmra.mrb[0].mxu0 %v472
        %v755 = vpop.f32.mrb[0].mxu0
        %v756 = vadd.f32 %v435, %v755
        %v757 = vpop.f32.mrb[0].mxu0
        %758 = vmatprep.mubr.f32.mxu0 0.0
        %759 = vmatmul.mubr.f32.gmra.mrb[0].mxu0 %v475
        %v760 = vpop.f32.mrb[0].mxu0
        %v761 = vadd.f32 %v435, %v760
        %v762 = vpop.f32.mrb[0].mxu0
        %763 = vmatprep.mubr.f32.mxu0 0.0
        %764 = vmatmul.mubr.f32.gmra.mrb[0].mxu0 %v478
        %v765 = vpop.f32.mrb[0].mxu0
        %v766 = vadd.f32 %v435, %v765
        %v767 = vpop.f32.mrb[0].mxu0
        %768 = vmatprep.mubr.f32.mxu0 0.0
        %769 = vmatmul.mubr.f32.gmra.mrb[0].mxu0 %v481
        %v770 = vpop.f32.mrb[0].mxu0
        %v771 = vadd.f32 %v435, %v770
        %v772 = vpop.f32.mrb[0].mxu0
        %773 = vmatprep.mubr.f32.mxu0 0.0
        %774 = vmatmul.mubr.f32.gmra.mrb[0].mxu0 %v484
        %v775 = vpop.f32.mrb[0].mxu0
        %v776 = vadd.f32 %v435, %v775
        %v777 = vpop.f32.mrb[0].mxu0
        %778 = vmatprep.mubr.f32.mxu0 0.0
        %779 = vmatmul.mubr.f32.gmra.mrb[0].mxu0 %v487
        %v780 = vpop.f32.mrb[0].mxu0
        %v781 = vadd.f32 %v435, %v780
        %v782 = vpop.f32.mrb[0].mxu0
        %783 = vmatprep.mubr.f32.mxu0 0.0
        %784 = vmatmul.mubr.f32.gmra.mrb[0].mxu0 %v490
        %v785 = vpop.f32.mrb[0].mxu0
        %v786 = vadd.f32 %v435, %v785
        %v787 = vpop.f32.mrb[0].mxu0
        %788 = vmatprep.mubr.f32.mxu0 0.0
        %789 = vmatmul.mubr.f32.gmra.mrb[0].mxu0 %v493
        %v790 = vpop.f32.mrb[0].mxu0
        %v791 = vadd.f32 %v435, %v790
        %v792 = vpop.f32.mrb[0].mxu0
        %793 = vmatprep.mubr.f32.mxu0 0.0
        %794 = vmatmul.mubr.f32.gmra.mrb[0].mxu0 %v496
        %v795 = vpop.f32.mrb[0].mxu0
        %v796 = vadd.f32 %v435, %v795
        %v797 = vpop.f32.mrb[0].mxu0
        %798 = vmatprep.mubr.f32.mxu0 0.0
        %799 = vmatmul.mubr.f32.gmra.mrb[0].mxu0 %v499
        %v800 = vpop.f32.mrb[0].mxu0
        %v801 = vadd.f32 %v435, %v800
        %v802 = vpop.f32.mrb[0].mxu0
        %803 = vmatprep.mubr.f32.mxu0 0.0
        %804 = vmatmul.mubr.f32.gmra.mrb[0].mxu0 %v502
        %v805 = vpop.f32.mrb[0].mxu0
        %v806 = vadd.f32 %v435, %v805
        %v807 = vpop.f32.mrb[0].mxu0
        %808 = vmatprep.mubr.f32.mxu0 0.0
        %809 = vmatmul.mubr.f32.gmra.mrb[0].mxu0 %v505
        %v810 = vpop.f32.mrb[0].mxu0
        %v811 = vadd.f32 %v435, %v810
        %v812 = vpop.f32.mrb[0].mxu0
        %813 = vmatprep.mubr.f32.mxu0 0.0
        %814 = vmatmul.mubr.f32.gmra.mrb[0].mxu0 %v508
        %v815 = vpop.f32.mrb[0].mxu0
        %v816 = vadd.f32 %v435, %v815
        %v817 = vpop.f32.mrb[0].mxu0
        %818 = vmatprep.mubr.f32.mxu0 0.0
        %819 = vmatmul.mubr.f32.gmra.mrb[0].mxu0 %v511
        %v820 = vpop.f32.mrb[0].mxu0
        %v821 = vadd.f32 %v435, %v820
        %v822 = vpop.f32.mrb[0].mxu0
        %823 = vmatprep.mubr.f32.mxu0 0.0
        %824 = vmatmul.mubr.f32.gmra.mrb[0].mxu0 %v514
        %v825 = vpop.f32.mrb[0].mxu0
        %v826 = vadd.f32 %v435, %v825
        %v827 = vpop.f32.mrb[0].mxu0
        %828 = vmatprep.mubr.f32.mxu0 0.0
        %829 = vmatmul.mubr.f32.gmra.mrb[0].mxu0 %v517
        %v830 = vpop.f32.mrb[0].mxu0
        %v831 = vadd.f32 %v435, %v830
        %v832 = vpop.f32.mrb[0].mxu0
        %833 = vmatprep.mubr.f32.mxu0 0.0
        %834 = vmatmul.mubr.f32.gmra.mrb[0].mxu0 %v520
        %v835 = vpop.f32.mrb[0].mxu0
        %v836 = vadd.f32 %v435, %v835
        %v837 = vpop.f32.mrb[0].mxu0
        %838 = vmatprep.mubr.f32.mxu0 0.0
        %839 = vmatmul.mubr.f32.gmra.mrb[0].mxu0 %v523
        %v840 = vpop.f32.mrb[0].mxu0
        %v841 = vadd.f32 %v435, %v840
        %v842 = vpop.f32.mrb[0].mxu0
        %843 = vmatprep.mubr.f32.mxu0 0.0
        %844 = vmatmul.mubr.f32.gmra.mrb[0].mxu0 %v526
        %v845 = vpop.f32.mrb[0].mxu0
        %v846 = vadd.f32 %v435, %v845
        %v847 = vpop.f32.mrb[0].mxu0
        %848 = vmatprep.mubr.f32.mxu0 0.0
        %849 = vmatmul.mubr.f32.gmra.mrb[0].mxu0 %v529
        %v850 = vpop.f32.mrb[0].mxu0
        %v851 = vadd.f32 %v435, %v850
        %v852 = vpop.f32.mrb[0].mxu0
        %853 = vmatprep.mubr.f32.mxu0 0.0
        %854 = vmatmul.mubr.f32.gmra.mrb[0].mxu0 %v532
        %v855 = vpop.f32.mrb[0].mxu0
        %v856 = vadd.f32 %v435, %v855
        %v857 = vpop.f32.mrb[0].mxu0
        %858 = vmatprep.mubr.f32.mxu0 0.0
        %859 = vmatmul.mubr.f32.gmra.mrb[0].mxu0 %v535
        %v860 = vpop.f32.mrb[0].mxu0
        %v861 = vadd.f32 %v435, %v860
        %v862 = vpop.f32.mrb[0].mxu0
        %863 = vmatprep.mubr.f32.mxu0 0.0
        %864 = vmatmul.mubr.f32.gmra.mrb[0].mxu0 %v538
        %v865 = vpop.f32.mrb[0].mxu0
        %v866 = vadd.f32 %v435, %v865
        %v867 = vpop.f32.mrb[0].mxu0
        %868 = vmatprep.mubr.f32.mxu0 0.0
        %869 = vmatmul.mubr.f32.gmra.mrb[0].mxu0 %v541
        %v870 = vpop.f32.mrb[0].mxu0
        %v871 = vadd.f32 %v435, %v870
        %v872 = vpop.f32.mrb[0].mxu0
        %873 = vmatprep.mubr.f32.mxu0 0.0
        %874 = vmatmul.mubr.f32.gmra.mrb[0].mxu0 %v544
        %v875 = vpop.f32.mrb[0].mxu0
        %v876 = vadd.f32 %v435, %v875
        %v877 = vpop.f32.mrb[0].mxu0
        %878 = vmatprep.mubr.f32.mxu0 0.0
        %879 = vmatmul.mubr.f32.gmra.mrb[0].mxu0 %v547
        %v880 = vpop.f32.mrb[0].mxu0
        %v881 = vadd.f32 %v435, %v880
        %v882 = vpop.f32.mrb[0].mxu0
        %883 = vmatprep.mubr.f32.mxu0 0.0
        %884 = vmatmul.mubr.f32.gmra.mrb[0].mxu0 %v550
        %v885 = vpop.f32.mrb[0].mxu0
        %v886 = vadd.f32 %v435, %v885
        %v887 = vpop.f32.mrb[0].mxu0
        %888 = vmatprep.mubr.f32.mxu0 0.0
        %889 = vmatmul.mubr.f32.gmra.mrb[0].mxu0 %v553
        %v890 = vpop.f32.mrb[0].mxu0
        %v891 = vadd.f32 %v435, %v890
        %v892 = vpop.f32.mrb[0].mxu0
        %893 = vmatprep.mubr.f32.mxu0 0.0
        %894 = vmatmul.mubr.f32.gmra.mrb[0].mxu0 %v556
        %v895 = vpop.f32.mrb[0].mxu0
        %v896 = vadd.f32 %v435, %v895
        %v897 = vpop.f32.mrb[0].mxu0
        %898 = vmatprep.mubr.f32.mxu0 0.0
        %899 = vmatmul.mubr.f32.gmra.mrb[0].mxu0 %v559
        %v900 = vpop.f32.mrb[0].mxu0
        %v901 = vadd.f32 %v435, %v900
        %v902 = vpop.f32.mrb[0].mxu0
        %903 = vmatprep.mubr.f32.mxu0 0.0
        %904 = vmatmul.mubr.f32.gmra.mrb[0].mxu0 %v562
        %v905 = vpop.f32.mrb[0].mxu0
        %v906 = vadd.f32 %v435, %v905
        %v907 = vpop.f32.mrb[0].mxu0
        %908 = vmatprep.mubr.f32.mxu0 0.0
        %909 = vmatmul.mubr.f32.gmra.mrb[0].mxu0 %v565
        %v910 = vpop.f32.mrb[0].mxu0
        %v911 = vadd.f32 %v435, %v910
        %v912 = vpop.f32.mrb[0].mxu0
        %913 = vmatprep.mubr.f32.mxu0 0.0
        %914 = vmatmul.mubr.f32.gmra.mrb[0].mxu0 %v568
        %v915 = vpop.f32.mrb[0].mxu0
        %v916 = vadd.f32 %v435, %v915
        %v917 = vpop.f32.mrb[0].mxu0
        %918 = vmatprep.mubr.f32.mxu0 0.0
        %919 = vmatmul.mubr.f32.gmra.mrb[0].mxu0 %v571
        %v920 = vpop.f32.mrb[0].mxu0
        %v921 = vadd.f32 %v435, %v920
        %v922 = vpop.f32.mrb[0].mxu0
        %923 = vmatprep.mubr.f32.mxu0 0.0
        %924 = vmatmul.mubr.f32.gmra.mrb[0].mxu0 %v574
        %v925 = vpop.f32.mrb[0].mxu0
        %v926 = vadd.f32 %v435, %v925
        %v927 = vpop.f32.mrb[0].mxu0
        %928 = vmatprep.mubr.f32.mxu0 0.0
        %929 = vmatmul.mubr.f32.gmra.mrb[0].mxu0 %v577
        %v930 = vpop.f32.mrb[0].mxu0
        %v931 = vadd.f32 %v435, %v930
        %v932 = vpop.f32.mrb[0].mxu0
        %933 = vmatprep.mubr.f32.mxu0 0.0
        %934 = vmatmul.mubr.f32.gmra.mrb[0].mxu0 %v580
        %v935 = vpop.f32.mrb[0].mxu0
        %v936 = vadd.f32 %v435, %v935
        %v937 = vpop.f32.mrb[0].mxu0
        %938 = vmatprep.mubr.f32.mxu0 0.0
        %939 = vmatmul.mubr.f32.gmra.mrb[0].mxu0 %v583
        %v940 = vpop.f32.mrb[0].mxu0
        %v941 = vadd.f32 %v435, %v940
        %v942 = vpop.f32.mrb[0].mxu0
        %943 = vmatprep.mubr.f32.mxu0 0.0
        %944 = vmatmul.mubr.f32.gmra.mrb[0].mxu0 %v586
        %v945 = vpop.f32.mrb[0].mxu0
        %v946 = vadd.f32 %v435, %v945
        %v947 = vpop.f32.mrb[0].mxu0
        %948 = vmatprep.mubr.f32.mxu0 0.0
        %949 = vmatmul.mubr.f32.gmra.mrb[0].mxu0 %v589
        %v950 = vpop.f32.mrb[0].mxu0
        %v951 = vadd.f32 %v435, %v950
        %v952 = vpop.f32.mrb[0].mxu0
        %953 = vmatprep.mubr.f32.mxu0 0.0
        %954 = vmatmul.mubr.f32.gmra.mrb[0].mxu0 %v592
        %v955 = vpop.f32.mrb[0].mxu0
        %v956 = vadd.f32 %v435, %v955
        %v957 = vpop.f32.mrb[0].mxu0
        %958 = vmatprep.mubr.f32.mxu0 0.0
        %959 = vmatmul.mubr.f32.gmra.mrb[0].mxu0 %v595
        %v960 = vpop.f32.mrb[0].mxu0
        %v961 = vadd.f32 %v435, %v960
        %v962 = vpop.f32.mrb[0].mxu0
        %963 = vmatprep.mubr.f32.mxu0 0.0
        %964 = vmatmul.mubr.f32.gmra.mrb[0].mxu0 %v598
        %v965 = vpop.f32.mrb[0].mxu0
        %v966 = vadd.f32 %v435, %v965
        %v967 = vpop.f32.mrb[0].mxu0
        %968 = vmatprep.mubr.f32.mxu0 0.0
        %969 = vmatmul.mubr.f32.gmra.mrb[0].mxu0 %v601
        %v970 = vpop.f32.mrb[0].mxu0
        %v971 = vadd.f32 %v435, %v970
        %v972 = vpop.f32.mrb[0].mxu0
        %973 = vmatprep.mubr.f32.mxu0 0.0
        %974 = vmatmul.mubr.f32.gmra.mrb[0].mxu0 %v604
        %v975 = vpop.f32.mrb[0].mxu0
        %v976 = vadd.f32 %v435, %v975
        %v977 = vpop.f32.mrb[0].mxu0
        %978 = vmatprep.mubr.f32.mxu0 0.0
        %979 = vmatmul.mubr.f32.gmra.mrb[0].mxu0 %v607
        %v980 = vpop.f32.mrb[0].mxu0
        %v981 = vadd.f32 %v435, %v980
        %v982 = vpop.f32.mrb[0].mxu0
        %983 = vmatprep.mubr.f32.mxu0 0.0
        %984 = vmatmul.mubr.f32.gmra.mrb[0].mxu0 %v610
        %v985 = vpop.f32.mrb[0].mxu0
        %v986 = vadd.f32 %v435, %v985
        %v987 = vpop.f32.mrb[0].mxu0
        %988 = vmatprep.mubr.f32.mxu0 0.0
        %989 = vmatmul.mubr.f32.gmra.mrb[0].mxu0 %v613
        %v990 = vpop.f32.mrb[0].mxu0
        %v991 = vadd.f32 %v435, %v990
        %v992 = vpop.f32.mrb[0].mxu0
        %993 = vmatprep.mubr.f32.mxu0 0.0
        %994 = vmatmul.mubr.f32.gmra.mrb[0].mxu0 %v616
        %v995 = vpop.f32.mrb[0].mxu0
        %v996 = vadd.f32 %v435, %v995
        %v997 = vpop.f32.mrb[0].mxu0
        %998 = vmatprep.mubr.f32.mxu0 0.0
        %999 = vmatmul.mubr.f32.gmra.mrb[0].mxu0 %v619
        %v1000 = vpop.f32.mrb[0].mxu0
        %v1001 = vadd.f32 %v435, %v1000
        %v1002 = vpop.f32.mrb[0].mxu0
        %1003 = vmatprep.mubr.f32.mxu0 0.0
        %1004 = vmatmul.mubr.f32.gmra.mrb[0].mxu0 %v622
        %v1005 = vpop.f32.mrb[0].mxu0
        %v1006 = vadd.f32 %v435, %v1005
        %v1007 = vpop.f32.mrb[0].mxu0
        %1008 = vmatprep.mubr.f32.mxu0 0.0
        %1009 = vmatmul.mubr.f32.gmra.mrb[0].mxu0 %v625
        %v1010 = vpop.f32.mrb[0].mxu0
        %v1011 = vadd.f32 %v435, %v1010
        %v1012 = vpop.f32.mrb[0].mxu0
        %1013 = vmatprep.mubr.f32.mxu0 0.0
        %1014 = vmatmul.mubr.f32.gmra.mrb[0].mxu0 %v628
        %v1015 = vpop.f32.mrb[0].mxu0
        %v1016 = vadd.f32 %v435, %v1015
        %v1017 = vpop.f32.mrb[0].mxu0
        %1018 = vdwg.mxu0
        %v1019 = vmax.f32 %v701, 0.0
        %v1020 = vmax.f32 %v706, 0.0
        %v1021 = vmax.f32 %v711, 0.0
        %v1022 = vmax.f32 %v716, 0.0
        %v1023 = vmax.f32 %v721, 0.0
        %v1024 = vmax.f32 %v726, 0.0
        %v1025 = vmax.f32 %v731, 0.0
        %v1026 = vmax.f32 %v736, 0.0
        %v1027 = vmax.f32 %v741, 0.0
        %v1028 = vmax.f32 %v746, 0.0
        %v1029 = vmax.f32 %v751, 0.0
        %v1030 = vmax.f32 %v756, 0.0
        %v1031 = vmax.f32 %v761, 0.0
        %v1032 = vmax.f32 %v766, 0.0
        %v1033 = vmax.f32 %v771, 0.0
        %v1034 = vmax.f32 %v776, 0.0
        %v1035 = vmax.f32 %v781, 0.0
        %v1036 = vmax.f32 %v786, 0.0
        %v1037 = vmax.f32 %v791, 0.0
        %v1038 = vmax.f32 %v796, 0.0
        %v1039 = vmax.f32 %v801, 0.0
        %v1040 = vmax.f32 %v806, 0.0
        %v1041 = vmax.f32 %v811, 0.0
        %v1042 = vmax.f32 %v816, 0.0
        %v1043 = vmax.f32 %v821, 0.0
        %v1044 = vmax.f32 %v826, 0.0
        %v1045 = vmax.f32 %v831, 0.0
        %v1046 = vmax.f32 %v836, 0.0
        %v1047 = vmax.f32 %v841, 0.0
        %v1048 = vmax.f32 %v846, 0.0
        %v1049 = vmax.f32 %v851, 0.0
        %v1050 = vmax.f32 %v856, 0.0
        %v1051 = vmax.f32 %v861, 0.0
        %v1052 = vmax.f32 %v866, 0.0
        %v1053 = vmax.f32 %v871, 0.0
        %v1054 = vmax.f32 %v876, 0.0
        %v1055 = vmax.f32 %v881, 0.0
        %v1056 = vmax.f32 %v886, 0.0
        %v1057 = vmax.f32 %v891, 0.0
        %v1058 = vmax.f32 %v896, 0.0
        %v1059 = vmax.f32 %v901, 0.0
        %v1060 = vmax.f32 %v906, 0.0
        %v1061 = vmax.f32 %v911, 0.0
        %v1062 = vmax.f32 %v916, 0.0
        %v1063 = vmax.f32 %v921, 0.0
        %v1064 = vmax.f32 %v926, 0.0
        %v1065 = vmax.f32 %v931, 0.0
        %v1066 = vmax.f32 %v936, 0.0
        %v1067 = vmax.f32 %v941, 0.0
        %v1068 = vmax.f32 %v946, 0.0
        %v1069 = vmax.f32 %v951, 0.0
        %v1070 = vmax.f32 %v956, 0.0
        %v1071 = vmax.f32 %v961, 0.0
        %v1072 = vmax.f32 %v966, 0.0
        %v1073 = vmax.f32 %v971, 0.0
        %v1074 = vmax.f32 %v976, 0.0
        %v1075 = vmax.f32 %v981, 0.0
        %v1076 = vmax.f32 %v986, 0.0
        %v1077 = vmax.f32 %v991, 0.0
        %v1078 = vmax.f32 %v996, 0.0
        %v1079 = vmax.f32 %v1001, 0.0
        %v1080 = vmax.f32 %v1006, 0.0
        %v1081 = vmax.f32 %v1011, 0.0
        %v1082 = vmax.f32 %v1016, 0.0
        %v1083 = vld [vmem:[#allocation7] sm:$0xff]
        %v1084 = vld [vmem:[#allocation7 + $0x8] sm:$0xff]
        %v1085 = vld [vmem:[#allocation7 + $0x10] sm:$0xff]
        %v1086 = vld [vmem:[#allocation7 + $0x18] sm:$0xff]
        %v1087 = vld [vmem:[#allocation7 + $0x20] sm:$0xff]
        %v1088 = vld [vmem:[#allocation7 + $0x28] sm:$0xff]
        %v1089 = vld [vmem:[#allocation7 + $0x30] sm:$0xff]
        %v1090 = vld [vmem:[#allocation7 + $0x38] sm:$0xff]
        %v1091 = vld [vmem:[#allocation7 + $0x40] sm:$0xff]
        %v1092 = vld [vmem:[#allocation7 + $0x48] sm:$0xff]
        %v1093 = vld [vmem:[#allocation7 + $0x50] sm:$0xff]
        %v1094 = vld [vmem:[#allocation7 + $0x58] sm:$0xff]
        %v1095 = vld [vmem:[#allocation7 + $0x60] sm:$0xff]
        %v1096 = vld [vmem:[#allocation7 + $0x68] sm:$0xff]
        %v1097 = vld [vmem:[#allocation7 + $0x70] sm:$0xff]
        %v1098 = vld [vmem:[#allocation7 + $0x78] sm:$0xff]
        %v1099 = vld [vmem:[#allocation7 + $0x80] sm:$0xff]
        %v1100 = vld [vmem:[#allocation7 + $0x88] sm:$0xff]
        %v1101 = vld [vmem:[#allocation7 + $0x90] sm:$0xff]
        %v1102 = vld [vmem:[#allocation7 + $0x98] sm:$0xff]
        %v1103 = vld [vmem:[#allocation7 + $0xa0] sm:$0xff]
        %v1104 = vld [vmem:[#allocation7 + $0xa8] sm:$0xff]
        %v1105 = vld [vmem:[#allocation7 + $0xb0] sm:$0xff]
        %v1106 = vld [vmem:[#allocation7 + $0xb8] sm:$0xff]
        %v1107 = vld [vmem:[#allocation7 + $0xc0] sm:$0xff]
        %v1108 = vld [vmem:[#allocation7 + $0xc8] sm:$0xff]
        %v1109 = vld [vmem:[#allocation7 + $0xd0] sm:$0xff]
        %v1110 = vld [vmem:[#allocation7 + $0xd8] sm:$0xff]
        %v1111 = vld [vmem:[#allocation7 + $0xe0] sm:$0xff]
        %v1112 = vld [vmem:[#allocation7 + $0xe8] sm:$0xff]
        %v1113 = vld [vmem:[#allocation7 + $0xf0] sm:$0xff]
        %v1114 = vld [vmem:[#allocation7 + $0xf8] sm:$0xff]
        %v1115 = vld [vmem:[#allocation7 + $0x100] sm:$0xff]
        %v1116 = vld [vmem:[#allocation7 + $0x108] sm:$0xff]
        %v1117 = vld [vmem:[#allocation7 + $0x110] sm:$0xff]
        %v1118 = vld [vmem:[#allocation7 + $0x118] sm:$0xff]
        %v1119 = vld [vmem:[#allocation7 + $0x120] sm:$0xff]
        %v1120 = vld [vmem:[#allocation7 + $0x128] sm:$0xff]
        %v1121 = vld [vmem:[#allocation7 + $0x130] sm:$0xff]
        %v1122 = vld [vmem:[#allocation7 + $0x138] sm:$0xff]
        %v1123 = vld [vmem:[#allocation7 + $0x140] sm:$0xff]
        %v1124 = vld [vmem:[#allocation7 + $0x148] sm:$0xff]
        %v1125 = vld [vmem:[#allocation7 + $0x150] sm:$0xff]
        %v1126 = vld [vmem:[#allocation7 + $0x158] sm:$0xff]
        %v1127 = vld [vmem:[#allocation7 + $0x160] sm:$0xff]
        %v1128 = vld [vmem:[#allocation7 + $0x168] sm:$0xff]
        %v1129 = vld [vmem:[#allocation7 + $0x170] sm:$0xff]
        %v1130 = vld [vmem:[#allocation7 + $0x178] sm:$0xff]
        %v1131 = vld [vmem:[#allocation7 + $0x180] sm:$0xff]
        %v1132 = vld [vmem:[#allocation7 + $0x188] sm:$0xff]
        %v1133 = vld [vmem:[#allocation7 + $0x190] sm:$0xff]
        %v1134 = vld [vmem:[#allocation7 + $0x198] sm:$0xff]
        %v1135 = vld [vmem:[#allocation7 + $0x1a0] sm:$0xff]
        %v1136 = vld [vmem:[#allocation7 + $0x1a8] sm:$0xff]
        %v1137 = vld [vmem:[#allocation7 + $0x1b0] sm:$0xff]
        %v1138 = vld [vmem:[#allocation7 + $0x1b8] sm:$0xff]
        %v1139 = vld [vmem:[#allocation7 + $0x1c0] sm:$0xff]
        %v1140 = vld [vmem:[#allocation7 + $0x1c8] sm:$0xff]
        %v1141 = vld [vmem:[#allocation7 + $0x1d0] sm:$0xff]
        %v1142 = vld [vmem:[#allocation7 + $0x1d8] sm:$0xff]
        %v1143 = vld [vmem:[#allocation7 + $0x1e0] sm:$0xff]
        %v1144 = vld [vmem:[#allocation7 + $0x1e8] sm:$0xff]
        %v1145 = vld [vmem:[#allocation7 + $0x1f0] sm:$0xff]
        %v1146 = vld [vmem:[#allocation7 + $0x1f8] sm:$0xff]
        %v1147 = vld [vmem:[#allocation7 + $0x200] sm:$0xff]
        %v1148 = vld [vmem:[#allocation7 + $0x208] sm:$0xff]
        %v1149 = vld [vmem:[#allocation7 + $0x210] sm:$0xff]
        %v1150 = vld [vmem:[#allocation7 + $0x218] sm:$0xff]
        %v1151 = vld [vmem:[#allocation7 + $0x220] sm:$0xff]
        %v1152 = vld [vmem:[#allocation7 + $0x228] sm:$0xff]
        %v1153 = vld [vmem:[#allocation7 + $0x230] sm:$0xff]
        %v1154 = vld [vmem:[#allocation7 + $0x238] sm:$0xff]
        %v1155 = vld [vmem:[#allocation7 + $0x240] sm:$0xff]
        %v1156 = vld [vmem:[#allocation7 + $0x248] sm:$0xff]
        %v1157 = vld [vmem:[#allocation7 + $0x250] sm:$0xff]
        %v1158 = vld [vmem:[#allocation7 + $0x258] sm:$0xff]
        %v1159 = vld [vmem:[#allocation7 + $0x260] sm:$0xff]
        %v1160 = vld [vmem:[#allocation7 + $0x268] sm:$0xff]
        %v1161 = vld [vmem:[#allocation7 + $0x270] sm:$0xff]
        %v1162 = vld [vmem:[#allocation7 + $0x278] sm:$0xff]
        %v1163 = vld [vmem:[#allocation7 + $0x280] sm:$0xff]
        %v1164 = vld [vmem:[#allocation7 + $0x288] sm:$0xff]
        %v1165 = vld [vmem:[#allocation7 + $0x290] sm:$0xff]
        %v1166 = vld [vmem:[#allocation7 + $0x298] sm:$0xff]
        %v1167 = vld [vmem:[#allocation7 + $0x2a0] sm:$0xff]
        %v1168 = vld [vmem:[#allocation7 + $0x2a8] sm:$0xff]
        %v1169 = vld [vmem:[#allocation7 + $0x2b0] sm:$0xff]
        %v1170 = vld [vmem:[#allocation7 + $0x2b8] sm:$0xff]
        %v1171 = vld [vmem:[#allocation7 + $0x2c0] sm:$0xff]
        %v1172 = vld [vmem:[#allocation7 + $0x2c8] sm:$0xff]
        %v1173 = vld [vmem:[#allocation7 + $0x2d0] sm:$0xff]
        %v1174 = vld [vmem:[#allocation7 + $0x2d8] sm:$0xff]
        %v1175 = vld [vmem:[#allocation7 + $0x2e0] sm:$0xff]
        %v1176 = vld [vmem:[#allocation7 + $0x2e8] sm:$0xff]
        %v1177 = vld [vmem:[#allocation7 + $0x2f0] sm:$0xff]
        %v1178 = vld [vmem:[#allocation7 + $0x2f8] sm:$0xff]
        %v1179 = vld [vmem:[#allocation7 + $0x300] sm:$0xff]
        %v1180 = vld [vmem:[#allocation7 + $0x308] sm:$0xff]
        %v1181 = vld [vmem:[#allocation7 + $0x310] sm:$0xff]
        %v1182 = vld [vmem:[#allocation7 + $0x318] sm:$0xff]
        %v1183 = vld [vmem:[#allocation7 + $0x320] sm:$0xff]
        %v1184 = vld [vmem:[#allocation7 + $0x328] sm:$0xff]
        %v1185 = vld [vmem:[#allocation7 + $0x330] sm:$0xff]
        %v1186 = vld [vmem:[#allocation7 + $0x338] sm:$0xff]
        %v1187 = vld [vmem:[#allocation7 + $0x340] sm:$0xff]
        %v1188 = vld [vmem:[#allocation7 + $0x348] sm:$0xff]
        %v1189 = vld [vmem:[#allocation7 + $0x350] sm:$0xff]
        %v1190 = vld [vmem:[#allocation7 + $0x358] sm:$0xff]
        %v1191 = vld [vmem:[#allocation7 + $0x360] sm:$0xff]
        %v1192 = vld [vmem:[#allocation7 + $0x368] sm:$0xff]
        %v1193 = vld [vmem:[#allocation7 + $0x370] sm:$0xff]
        %v1194 = vld [vmem:[#allocation7 + $0x378] sm:$0xff]
        %v1195 = vld [vmem:[#allocation7 + $0x380] sm:$0xff]
        %v1196 = vld [vmem:[#allocation7 + $0x388] sm:$0xff]
        %v1197 = vld [vmem:[#allocation7 + $0x390] sm:$0xff]
        %v1198 = vld [vmem:[#allocation7 + $0x398] sm:$0xff]
        %v1199 = vld [vmem:[#allocation7 + $0x3a0] sm:$0xff]
        %v1200 = vld [vmem:[#allocation7 + $0x3a8] sm:$0xff]
        %v1201 = vld [vmem:[#allocation7 + $0x3b0] sm:$0xff]
        %v1202 = vld [vmem:[#allocation7 + $0x3b8] sm:$0xff]
        %v1203 = vld [vmem:[#allocation7 + $0x3c0] sm:$0xff]
        %v1204 = vld [vmem:[#allocation7 + $0x3c8] sm:$0xff]
        %v1205 = vld [vmem:[#allocation7 + $0x3d0] sm:$0xff]
        %v1206 = vld [vmem:[#allocation7 + $0x3d8] sm:$0xff]
        %v1207 = vld [vmem:[#allocation7 + $0x3e0] sm:$0xff]
        %v1208 = vld [vmem:[#allocation7 + $0x3e8] sm:$0xff]
        %v1209 = vld [vmem:[#allocation7 + $0x3f0] sm:$0xff]
        %v1210 = vld [vmem:[#allocation7 + $0x3f8] sm:$0xff]
        %v1211 = vld [vmem:[#allocation7 + $0x400] sm:$0xff]
        %v1212 = vld [vmem:[#allocation7 + $0x408] sm:$0xff]
        %v1213 = vld [vmem:[#allocation7 + $0x410] sm:$0xff]
        %v1214 = vld [vmem:[#allocation7 + $0x418] sm:$0xff]
        %v1215 = vld [vmem:[#allocation7 + $0x420] sm:$0xff]
        %v1216 = vld [vmem:[#allocation7 + $0x428] sm:$0xff]
        %v1217 = vld [vmem:[#allocation7 + $0x430] sm:$0xff]
        %v1218 = vld [vmem:[#allocation7 + $0x438] sm:$0xff]
        %v1219 = vld [vmem:[#allocation7 + $0x440] sm:$0xff]
        %v1220 = vld [vmem:[#allocation7 + $0x448] sm:$0xff]
        %v1221 = vld [vmem:[#allocation7 + $0x450] sm:$0xff]
        %v1222 = vld [vmem:[#allocation7 + $0x458] sm:$0xff]
        %v1223 = vld [vmem:[#allocation7 + $0x460] sm:$0xff]
        %v1224 = vld [vmem:[#allocation7 + $0x468] sm:$0xff]
        %v1225 = vld [vmem:[#allocation7 + $0x470] sm:$0xff]
        %v1226 = vld [vmem:[#allocation7 + $0x478] sm:$0xff]
        %v1227 = vld [vmem:[#allocation7 + $0x480] sm:$0xff]
        %v1228 = vld [vmem:[#allocation7 + $0x488] sm:$0xff]
        %v1229 = vld [vmem:[#allocation7 + $0x490] sm:$0xff]
        %v1230 = vld [vmem:[#allocation7 + $0x498] sm:$0xff]
        %v1231 = vld [vmem:[#allocation7 + $0x4a0] sm:$0xff]
        %v1232 = vld [vmem:[#allocation7 + $0x4a8] sm:$0xff]
        %v1233 = vld [vmem:[#allocation7 + $0x4b0] sm:$0xff]
        %v1234 = vld [vmem:[#allocation7 + $0x4b8] sm:$0xff]
        %v1235 = vld [vmem:[#allocation7 + $0x4c0] sm:$0xff]
        %v1236 = vld [vmem:[#allocation7 + $0x4c8] sm:$0xff]
        %v1237 = vld [vmem:[#allocation7 + $0x4d0] sm:$0xff]
        %v1238 = vld [vmem:[#allocation7 + $0x4d8] sm:$0xff]
        %v1239 = vld [vmem:[#allocation7 + $0x4e0] sm:$0xff]
        %v1240 = vld [vmem:[#allocation7 + $0x4e8] sm:$0xff]
        %v1241 = vld [vmem:[#allocation7 + $0x4f0] sm:$0xff]
        %v1242 = vld [vmem:[#allocation7 + $0x4f8] sm:$0xff]
        %v1243 = vld [vmem:[#allocation7 + $0x500] sm:$0xff]
        %v1244 = vld [vmem:[#allocation7 + $0x508] sm:$0xff]
        %v1245 = vld [vmem:[#allocation7 + $0x510] sm:$0xff]
        %v1246 = vld [vmem:[#allocation7 + $0x518] sm:$0xff]
        %v1247 = vld [vmem:[#allocation7 + $0x520] sm:$0xff]
        %v1248 = vld [vmem:[#allocation7 + $0x528] sm:$0xff]
        %v1249 = vld [vmem:[#allocation7 + $0x530] sm:$0xff]
        %v1250 = vld [vmem:[#allocation7 + $0x538] sm:$0xff]
        %v1251 = vld [vmem:[#allocation7 + $0x540] sm:$0xff]
        %v1252 = vld [vmem:[#allocation7 + $0x548] sm:$0xff]
        %v1253 = vld [vmem:[#allocation7 + $0x550] sm:$0xff]
        %v1254 = vld [vmem:[#allocation7 + $0x558] sm:$0xff]
        %v1255 = vld [vmem:[#allocation7 + $0x560] sm:$0xff]
        %v1256 = vld [vmem:[#allocation7 + $0x568] sm:$0xff]
        %v1257 = vld [vmem:[#allocation7 + $0x570] sm:$0xff]
        %v1258 = vld [vmem:[#allocation7 + $0x578] sm:$0xff]
        %v1259 = vld [vmem:[#allocation7 + $0x580] sm:$0xff]
        %v1260 = vld [vmem:[#allocation7 + $0x588] sm:$0xff]
        %v1261 = vld [vmem:[#allocation7 + $0x590] sm:$0xff]
        %v1262 = vld [vmem:[#allocation7 + $0x598] sm:$0xff]
        %v1263 = vld [vmem:[#allocation7 + $0x5a0] sm:$0xff]
        %v1264 = vld [vmem:[#allocation7 + $0x5a8] sm:$0xff]
        %v1265 = vld [vmem:[#allocation7 + $0x5b0] sm:$0xff]
        %v1266 = vld [vmem:[#allocation7 + $0x5b8] sm:$0xff]
        %v1267 = vld [vmem:[#allocation7 + $0x5c0] sm:$0xff]
        %v1268 = vld [vmem:[#allocation7 + $0x5c8] sm:$0xff]
        %v1269 = vld [vmem:[#allocation7 + $0x5d0] sm:$0xff]
        %v1270 = vld [vmem:[#allocation7 + $0x5d8] sm:$0xff]
        %v1271 = vld [vmem:[#allocation7 + $0x5e0] sm:$0xff]
        %v1272 = vld [vmem:[#allocation7 + $0x5e8] sm:$0xff]
        %v1273 = vld [vmem:[#allocation7 + $0x5f0] sm:$0xff]
        %v1274 = vld [vmem:[#allocation7 + $0x5f8] sm:$0xff]
        %v1275 = vld [vmem:[#allocation7 + $0x600] sm:$0xff]
        %v1276 = vld [vmem:[#allocation7 + $0x608] sm:$0xff]
        %v1277 = vld [vmem:[#allocation7 + $0x610] sm:$0xff]
        %v1278 = vld [vmem:[#allocation7 + $0x618] sm:$0xff]
        %v1279 = vld [vmem:[#allocation7 + $0x620] sm:$0xff]
        %v1280 = vld [vmem:[#allocation7 + $0x628] sm:$0xff]
        %v1281 = vld [vmem:[#allocation7 + $0x630] sm:$0xff]
        %v1282 = vld [vmem:[#allocation7 + $0x638] sm:$0xff]
        %v1283 = vld [vmem:[#allocation7 + $0x640] sm:$0xff]
        %v1284 = vld [vmem:[#allocation7 + $0x648] sm:$0xff]
        %v1285 = vld [vmem:[#allocation7 + $0x650] sm:$0xff]
        %v1286 = vld [vmem:[#allocation7 + $0x658] sm:$0xff]
        %v1287 = vld [vmem:[#allocation7 + $0x660] sm:$0xff]
        %v1288 = vld [vmem:[#allocation7 + $0x668] sm:$0xff]
        %v1289 = vld [vmem:[#allocation7 + $0x670] sm:$0xff]
        %v1290 = vld [vmem:[#allocation7 + $0x678] sm:$0xff]
        %v1291 = vld [vmem:[#allocation7 + $0x680] sm:$0xff]
        %v1292 = vld [vmem:[#allocation7 + $0x688] sm:$0xff]
        %v1293 = vld [vmem:[#allocation7 + $0x690] sm:$0xff]
        %v1294 = vld [vmem:[#allocation7 + $0x698] sm:$0xff]
        %v1295 = vld [vmem:[#allocation7 + $0x6a0] sm:$0xff]
        %v1296 = vld [vmem:[#allocation7 + $0x6a8] sm:$0xff]
        %v1297 = vld [vmem:[#allocation7 + $0x6b0] sm:$0xff]
        %v1298 = vld [vmem:[#allocation7 + $0x6b8] sm:$0xff]
        %v1299 = vld [vmem:[#allocation7 + $0x6c0] sm:$0xff]
        %v1300 = vld [vmem:[#allocation7 + $0x6c8] sm:$0xff]
        %v1301 = vld [vmem:[#allocation7 + $0x6d0] sm:$0xff]
        %v1302 = vld [vmem:[#allocation7 + $0x6d8] sm:$0xff]
        %v1303 = vld [vmem:[#allocation7 + $0x6e0] sm:$0xff]
        %v1304 = vld [vmem:[#allocation7 + $0x6e8] sm:$0xff]
        %v1305 = vld [vmem:[#allocation7 + $0x6f0] sm:$0xff]
        %v1306 = vld [vmem:[#allocation7 + $0x6f8] sm:$0xff]
        %v1307 = vld [vmem:[#allocation7 + $0x700] sm:$0xff]
        %v1308 = vld [vmem:[#allocation7 + $0x708] sm:$0xff]
        %v1309 = vld [vmem:[#allocation7 + $0x710] sm:$0xff]
        %v1310 = vld [vmem:[#allocation7 + $0x718] sm:$0xff]
        %v1311 = vld [vmem:[#allocation7 + $0x720] sm:$0xff]
        %v1312 = vld [vmem:[#allocation7 + $0x728] sm:$0xff]
        %v1313 = vld [vmem:[#allocation7 + $0x730] sm:$0xff]
        %v1314 = vld [vmem:[#allocation7 + $0x738] sm:$0xff]
        %v1315 = vld [vmem:[#allocation7 + $0x740] sm:$0xff]
        %v1316 = vld [vmem:[#allocation7 + $0x748] sm:$0xff]
        %v1317 = vld [vmem:[#allocation7 + $0x750] sm:$0xff]
        %v1318 = vld [vmem:[#allocation7 + $0x758] sm:$0xff]
        %v1319 = vld [vmem:[#allocation7 + $0x760] sm:$0xff]
        %v1320 = vld [vmem:[#allocation7 + $0x768] sm:$0xff]
        %v1321 = vld [vmem:[#allocation7 + $0x770] sm:$0xff]
        %v1322 = vld [vmem:[#allocation7 + $0x778] sm:$0xff]
        %v1323 = vld [vmem:[#allocation7 + $0x780] sm:$0xff]
        %v1324 = vld [vmem:[#allocation7 + $0x788] sm:$0xff]
        %v1325 = vld [vmem:[#allocation7 + $0x790] sm:$0xff]
        %v1326 = vld [vmem:[#allocation7 + $0x798] sm:$0xff]
        %v1327 = vld [vmem:[#allocation7 + $0x7a0] sm:$0xff]
        %v1328 = vld [vmem:[#allocation7 + $0x7a8] sm:$0xff]
        %v1329 = vld [vmem:[#allocation7 + $0x7b0] sm:$0xff]
        %v1330 = vld [vmem:[#allocation7 + $0x7b8] sm:$0xff]
        %v1331 = vld [vmem:[#allocation7 + $0x7c0] sm:$0xff]
        %v1332 = vld [vmem:[#allocation7 + $0x7c8] sm:$0xff]
        %v1333 = vld [vmem:[#allocation7 + $0x7d0] sm:$0xff]
        %v1334 = vld [vmem:[#allocation7 + $0x7d8] sm:$0xff]
        %v1335 = vld [vmem:[#allocation7 + $0x7e0] sm:$0xff]
        %v1336 = vld [vmem:[#allocation7 + $0x7e8] sm:$0xff]
        %v1337 = vld [vmem:[#allocation7 + $0x7f0] sm:$0xff]
        %v1338 = vld [vmem:[#allocation7 + $0x7f8] sm:$0xff]
        %v1339 = vld [vmem:[#allocation7 + $0x800] sm:$0xff]
        %v1340 = vld [vmem:[#allocation7 + $0x808] sm:$0xff]
        %v1341 = vld [vmem:[#allocation7 + $0x810] sm:$0xff]
        %v1342 = vld [vmem:[#allocation7 + $0x818] sm:$0xff]
        %v1343 = vld [vmem:[#allocation7 + $0x820] sm:$0xff]
        %v1344 = vld [vmem:[#allocation7 + $0x828] sm:$0xff]
        %v1345 = vld [vmem:[#allocation7 + $0x830] sm:$0xff]
        %v1346 = vld [vmem:[#allocation7 + $0x838] sm:$0xff]
        %v1347 = vld [vmem:[#allocation7 + $0x840] sm:$0xff]
        %v1348 = vld [vmem:[#allocation7 + $0x848] sm:$0xff]
        %v1349 = vld [vmem:[#allocation7 + $0x850] sm:$0xff]
        %v1350 = vld [vmem:[#allocation7 + $0x858] sm:$0xff]
        %v1351 = vld [vmem:[#allocation7 + $0x860] sm:$0xff]
        %v1352 = vld [vmem:[#allocation7 + $0x868] sm:$0xff]
        %v1353 = vld [vmem:[#allocation7 + $0x870] sm:$0xff]
        %v1354 = vld [vmem:[#allocation7 + $0x878] sm:$0xff]
        %v1355 = vld [vmem:[#allocation7 + $0x880] sm:$0xff]
        %v1356 = vld [vmem:[#allocation7 + $0x888] sm:$0xff]
        %v1357 = vld [vmem:[#allocation7 + $0x890] sm:$0xff]
        %v1358 = vld [vmem:[#allocation7 + $0x898] sm:$0xff]
        %v1359 = vld [vmem:[#allocation7 + $0x8a0] sm:$0xff]
        %v1360 = vld [vmem:[#allocation7 + $0x8a8] sm:$0xff]
        %v1361 = vld [vmem:[#allocation7 + $0x8b0] sm:$0xff]
        %v1362 = vld [vmem:[#allocation7 + $0x8b8] sm:$0xff]
        %v1363 = vld [vmem:[#allocation7 + $0x8c0] sm:$0xff]
        %v1364 = vld [vmem:[#allocation7 + $0x8c8] sm:$0xff]
        %v1365 = vld [vmem:[#allocation7 + $0x8d0] sm:$0xff]
        %v1366 = vld [vmem:[#allocation7 + $0x8d8] sm:$0xff]
        %v1367 = vld [vmem:[#allocation7 + $0x8e0] sm:$0xff]
        %v1368 = vld [vmem:[#allocation7 + $0x8e8] sm:$0xff]
        %v1369 = vld [vmem:[#allocation7 + $0x8f0] sm:$0xff]
        %v1370 = vld [vmem:[#allocation7 + $0x8f8] sm:$0xff]
        %v1371 = vld [vmem:[#allocation7 + $0x900] sm:$0xff]
        %v1372 = vld [vmem:[#allocation7 + $0x908] sm:$0xff]
        %v1373 = vld [vmem:[#allocation7 + $0x910] sm:$0xff]
        %v1374 = vld [vmem:[#allocation7 + $0x918] sm:$0xff]
        %v1375 = vld [vmem:[#allocation7 + $0x920] sm:$0xff]
        %v1376 = vld [vmem:[#allocation7 + $0x928] sm:$0xff]
        %v1377 = vld [vmem:[#allocation7 + $0x930] sm:$0xff]
        %v1378 = vld [vmem:[#allocation7 + $0x938] sm:$0xff]
        %v1379 = vld [vmem:[#allocation7 + $0x940] sm:$0xff]
        %v1380 = vld [vmem:[#allocation7 + $0x948] sm:$0xff]
        %v1381 = vld [vmem:[#allocation7 + $0x950] sm:$0xff]
        %v1382 = vld [vmem:[#allocation7 + $0x958] sm:$0xff]
        %v1383 = vld [vmem:[#allocation7 + $0x960] sm:$0xff]
        %v1384 = vld [vmem:[#allocation7 + $0x968] sm:$0xff]
        %v1385 = vld [vmem:[#allocation7 + $0x970] sm:$0xff]
        %v1386 = vld [vmem:[#allocation7 + $0x978] sm:$0xff]
        %v1387 = vld [vmem:[#allocation7 + $0x980] sm:$0xff]
        %v1388 = vld [vmem:[#allocation7 + $0x988] sm:$0xff]
        %v1389 = vld [vmem:[#allocation7 + $0x990] sm:$0xff]
        %v1390 = vld [vmem:[#allocation7 + $0x998] sm:$0xff]
        %v1391 = vld [vmem:[#allocation7 + $0x9a0] sm:$0xff]
        %v1392 = vld [vmem:[#allocation7 + $0x9a8] sm:$0xff]
        %v1393 = vld [vmem:[#allocation7 + $0x9b0] sm:$0xff]
        %v1394 = vld [vmem:[#allocation7 + $0x9b8] sm:$0xff]
        %v1395 = vld [vmem:[#allocation7 + $0x9c0] sm:$0xff]
        %v1396 = vld [vmem:[#allocation7 + $0x9c8] sm:$0xff]
        %v1397 = vld [vmem:[#allocation7 + $0x9d0] sm:$0xff]
        %v1398 = vld [vmem:[#allocation7 + $0x9d8] sm:$0xff]
        %v1399 = vld [vmem:[#allocation7 + $0x9e0] sm:$0xff]
        %v1400 = vld [vmem:[#allocation7 + $0x9e8] sm:$0xff]
        %v1401 = vld [vmem:[#allocation7 + $0x9f0] sm:$0xff]
        %v1402 = vld [vmem:[#allocation7 + $0x9f8] sm:$0xff]
        %v1403 = vld [vmem:[#allocation7 + $0xa00] sm:$0xff]
        %v1404 = vld [vmem:[#allocation7 + $0xa08] sm:$0xff]
        %v1405 = vld [vmem:[#allocation7 + $0xa10] sm:$0xff]
        %v1406 = vld [vmem:[#allocation7 + $0xa18] sm:$0xff]
        %v1407 = vld [vmem:[#allocation7 + $0xa20] sm:$0xff]
        %v1408 = vld [vmem:[#allocation7 + $0xa28] sm:$0xff]
        %v1409 = vld [vmem:[#allocation7 + $0xa30] sm:$0xff]
        %v1410 = vld [vmem:[#allocation7 + $0xa38] sm:$0xff]
        %v1411 = vld [vmem:[#allocation7 + $0xa40] sm:$0xff]
        %v1412 = vld [vmem:[#allocation7 + $0xa48] sm:$0xff]
        %v1413 = vld [vmem:[#allocation7 + $0xa50] sm:$0xff]
        %v1414 = vld [vmem:[#allocation7 + $0xa58] sm:$0xff]
        %v1415 = vld [vmem:[#allocation7 + $0xa60] sm:$0xff]
        %v1416 = vld [vmem:[#allocation7 + $0xa68] sm:$0xff]
        %v1417 = vld [vmem:[#allocation7 + $0xa70] sm:$0xff]
        %v1418 = vld [vmem:[#allocation7 + $0xa78] sm:$0xff]
        %v1419 = vld [vmem:[#allocation7 + $0xa80] sm:$0xff]
        %v1420 = vld [vmem:[#allocation7 + $0xa88] sm:$0xff]
        %v1421 = vld [vmem:[#allocation7 + $0xa90] sm:$0xff]
        %v1422 = vld [vmem:[#allocation7 + $0xa98] sm:$0xff]
        %v1423 = vld [vmem:[#allocation7 + $0xaa0] sm:$0xff]
        %v1424 = vld [vmem:[#allocation7 + $0xaa8] sm:$0xff]
        %v1425 = vld [vmem:[#allocation7 + $0xab0] sm:$0xff]
        %v1426 = vld [vmem:[#allocation7 + $0xab8] sm:$0xff]
        %v1427 = vld [vmem:[#allocation7 + $0xac0] sm:$0xff]
        %v1428 = vld [vmem:[#allocation7 + $0xac8] sm:$0xff]
        %v1429 = vld [vmem:[#allocation7 + $0xad0] sm:$0xff]
        %v1430 = vld [vmem:[#allocation7 + $0xad8] sm:$0xff]
        %v1431 = vld [vmem:[#allocation7 + $0xae0] sm:$0xff]
        %v1432 = vld [vmem:[#allocation7 + $0xae8] sm:$0xff]
        %v1433 = vld [vmem:[#allocation7 + $0xaf0] sm:$0xff]
        %v1434 = vld [vmem:[#allocation7 + $0xaf8] sm:$0xff]
        %v1435 = vld [vmem:[#allocation7 + $0xb00] sm:$0xff]
        %v1436 = vld [vmem:[#allocation7 + $0xb08] sm:$0xff]
        %v1437 = vld [vmem:[#allocation7 + $0xb10] sm:$0xff]
        %v1438 = vld [vmem:[#allocation7 + $0xb18] sm:$0xff]
        %v1439 = vld [vmem:[#allocation7 + $0xb20] sm:$0xff]
        %v1440 = vld [vmem:[#allocation7 + $0xb28] sm:$0xff]
        %v1441 = vld [vmem:[#allocation7 + $0xb30] sm:$0xff]
        %v1442 = vld [vmem:[#allocation7 + $0xb38] sm:$0xff]
        %v1443 = vld [vmem:[#allocation7 + $0xb40] sm:$0xff]
        %v1444 = vld [vmem:[#allocation7 + $0xb48] sm:$0xff]
        %v1445 = vld [vmem:[#allocation7 + $0xb50] sm:$0xff]
        %v1446 = vld [vmem:[#allocation7 + $0xb58] sm:$0xff]
        %v1447 = vld [vmem:[#allocation7 + $0xb60] sm:$0xff]
        %v1448 = vld [vmem:[#allocation7 + $0xb68] sm:$0xff]
        %v1449 = vld [vmem:[#allocation7 + $0xb70] sm:$0xff]
        %v1450 = vld [vmem:[#allocation7 + $0xb78] sm:$0xff]
        %v1451 = vld [vmem:[#allocation7 + $0xb80] sm:$0xff]
        %v1452 = vld [vmem:[#allocation7 + $0xb88] sm:$0xff]
        %v1453 = vld [vmem:[#allocation7 + $0xb90] sm:$0xff]
        %v1454 = vld [vmem:[#allocation7 + $0xb98] sm:$0xff]
        %v1455 = vld [vmem:[#allocation7 + $0xba0] sm:$0xff]
        %v1456 = vld [vmem:[#allocation7 + $0xba8] sm:$0xff]
        %v1457 = vld [vmem:[#allocation7 + $0xbb0] sm:$0xff]
        %v1458 = vld [vmem:[#allocation7 + $0xbb8] sm:$0xff]
        %v1459 = vld [vmem:[#allocation7 + $0xbc0] sm:$0xff]
        %v1460 = vld [vmem:[#allocation7 + $0xbc8] sm:$0xff]
        %v1461 = vld [vmem:[#allocation7 + $0xbd0] sm:$0xff]
        %v1462 = vld [vmem:[#allocation7 + $0xbd8] sm:$0xff]
        %v1463 = vld [vmem:[#allocation7 + $0xbe0] sm:$0xff]
        %v1464 = vld [vmem:[#allocation7 + $0xbe8] sm:$0xff]
        %v1465 = vld [vmem:[#allocation7 + $0xbf0] sm:$0xff]
        %v1466 = vld [vmem:[#allocation7 + $0xbf8] sm:$0xff]
        %v1467 = vld [vmem:[#allocation7 + $0xc00] sm:$0xff]
        %v1468 = vld [vmem:[#allocation7 + $0xc08] sm:$0xff]
        %v1469 = vld [vmem:[#allocation7 + $0xc10] sm:$0xff]
        %v1470 = vld [vmem:[#allocation7 + $0xc18] sm:$0xff]
        %v1471 = vld [vmem:[#allocation7 + $0xc20] sm:$0xff]
        %v1472 = vld [vmem:[#allocation7 + $0xc28] sm:$0xff]
        %v1473 = vld [vmem:[#allocation7 + $0xc30] sm:$0xff]
        %v1474 = vld [vmem:[#allocation7 + $0xc38] sm:$0xff]
        %v1475 = vld [vmem:[#allocation7 + $0xc40] sm:$0xff]
        %v1476 = vld [vmem:[#allocation7 + $0xc48] sm:$0xff]
        %v1477 = vld [vmem:[#allocation7 + $0xc50] sm:$0xff]
        %v1478 = vld [vmem:[#allocation7 + $0xc58] sm:$0xff]
        %v1479 = vld [vmem:[#allocation7 + $0xc60] sm:$0xff]
        %v1480 = vld [vmem:[#allocation7 + $0xc68] sm:$0xff]
        %v1481 = vld [vmem:[#allocation7 + $0xc70] sm:$0xff]
        %v1482 = vld [vmem:[#allocation7 + $0xc78] sm:$0xff]
        %v1483 = vld [vmem:[#allocation7 + $0xc80] sm:$0xff]
        %v1484 = vld [vmem:[#allocation7 + $0xc88] sm:$0xff]
        %v1485 = vld [vmem:[#allocation7 + $0xc90] sm:$0xff]
        %v1486 = vld [vmem:[#allocation7 + $0xc98] sm:$0xff]
        %v1487 = vld [vmem:[#allocation7 + $0xca0] sm:$0xff]
        %v1488 = vld [vmem:[#allocation7 + $0xca8] sm:$0xff]
        %v1489 = vld [vmem:[#allocation7 + $0xcb0] sm:$0xff]
        %v1490 = vld [vmem:[#allocation7 + $0xcb8] sm:$0xff]
        %v1491 = vld [vmem:[#allocation7 + $0xcc0] sm:$0xff]
        %v1492 = vld [vmem:[#allocation7 + $0xcc8] sm:$0xff]
        %v1493 = vld [vmem:[#allocation7 + $0xcd0] sm:$0xff]
        %v1494 = vld [vmem:[#allocation7 + $0xcd8] sm:$0xff]
        %v1495 = vld [vmem:[#allocation7 + $0xce0] sm:$0xff]
        %v1496 = vld [vmem:[#allocation7 + $0xce8] sm:$0xff]
        %v1497 = vld [vmem:[#allocation7 + $0xcf0] sm:$0xff]
        %v1498 = vld [vmem:[#allocation7 + $0xcf8] sm:$0xff]
        %v1499 = vld [vmem:[#allocation7 + $0xd00] sm:$0xff]
        %v1500 = vld [vmem:[#allocation7 + $0xd08] sm:$0xff]
        %v1501 = vld [vmem:[#allocation7 + $0xd10] sm:$0xff]
        %v1502 = vld [vmem:[#allocation7 + $0xd18] sm:$0xff]
        %v1503 = vld [vmem:[#allocation7 + $0xd20] sm:$0xff]
        %v1504 = vld [vmem:[#allocation7 + $0xd28] sm:$0xff]
        %v1505 = vld [vmem:[#allocation7 + $0xd30] sm:$0xff]
        %v1506 = vld [vmem:[#allocation7 + $0xd38] sm:$0xff]
        %v1507 = vld [vmem:[#allocation7 + $0xd40] sm:$0xff]
        %v1508 = vld [vmem:[#allocation7 + $0xd48] sm:$0xff]
        %v1509 = vld [vmem:[#allocation7 + $0xd50] sm:$0xff]
        %v1510 = vld [vmem:[#allocation7 + $0xd58] sm:$0xff]
        %v1511 = vld [vmem:[#allocation7 + $0xd60] sm:$0xff]
        %v1512 = vld [vmem:[#allocation7 + $0xd68] sm:$0xff]
        %v1513 = vld [vmem:[#allocation7 + $0xd70] sm:$0xff]
        %v1514 = vld [vmem:[#allocation7 + $0xd78] sm:$0xff]
        %v1515 = vld [vmem:[#allocation7 + $0xd80] sm:$0xff]
        %v1516 = vld [vmem:[#allocation7 + $0xd88] sm:$0xff]
        %v1517 = vld [vmem:[#allocation7 + $0xd90] sm:$0xff]
        %v1518 = vld [vmem:[#allocation7 + $0xd98] sm:$0xff]
        %v1519 = vld [vmem:[#allocation7 + $0xda0] sm:$0xff]
        %v1520 = vld [vmem:[#allocation7 + $0xda8] sm:$0xff]
        %v1521 = vld [vmem:[#allocation7 + $0xdb0] sm:$0xff]
        %v1522 = vld [vmem:[#allocation7 + $0xdb8] sm:$0xff]
        %v1523 = vld [vmem:[#allocation7 + $0xdc0] sm:$0xff]
        %v1524 = vld [vmem:[#allocation7 + $0xdc8] sm:$0xff]
        %v1525 = vld [vmem:[#allocation7 + $0xdd0] sm:$0xff]
        %v1526 = vld [vmem:[#allocation7 + $0xdd8] sm:$0xff]
        %v1527 = vld [vmem:[#allocation7 + $0xde0] sm:$0xff]
        %v1528 = vld [vmem:[#allocation7 + $0xde8] sm:$0xff]
        %v1529 = vld [vmem:[#allocation7 + $0xdf0] sm:$0xff]
        %v1530 = vld [vmem:[#allocation7 + $0xdf8] sm:$0xff]
        %v1531 = vld [vmem:[#allocation7 + $0xe00] sm:$0xff]
        %v1532 = vld [vmem:[#allocation7 + $0xe08] sm:$0xff]
        %v1533 = vld [vmem:[#allocation7 + $0xe10] sm:$0xff]
        %v1534 = vld [vmem:[#allocation7 + $0xe18] sm:$0xff]
        %v1535 = vld [vmem:[#allocation7 + $0xe20] sm:$0xff]
        %v1536 = vld [vmem:[#allocation7 + $0xe28] sm:$0xff]
        %v1537 = vld [vmem:[#allocation7 + $0xe30] sm:$0xff]
        %v1538 = vld [vmem:[#allocation7 + $0xe38] sm:$0xff]
        %v1539 = vld [vmem:[#allocation7 + $0xe40] sm:$0xff]
        %v1540 = vld [vmem:[#allocation7 + $0xe48] sm:$0xff]
        %v1541 = vld [vmem:[#allocation7 + $0xe50] sm:$0xff]
        %v1542 = vld [vmem:[#allocation7 + $0xe58] sm:$0xff]
        %v1543 = vld [vmem:[#allocation7 + $0xe60] sm:$0xff]
        %v1544 = vld [vmem:[#allocation7 + $0xe68] sm:$0xff]
        %v1545 = vld [vmem:[#allocation7 + $0xe70] sm:$0xff]
        %v1546 = vld [vmem:[#allocation7 + $0xe78] sm:$0xff]
        %v1547 = vld [vmem:[#allocation7 + $0xe80] sm:$0xff]
        %v1548 = vld [vmem:[#allocation7 + $0xe88] sm:$0xff]
        %v1549 = vld [vmem:[#allocation7 + $0xe90] sm:$0xff]
        %v1550 = vld [vmem:[#allocation7 + $0xe98] sm:$0xff]
        %v1551 = vld [vmem:[#allocation7 + $0xea0] sm:$0xff]
        %v1552 = vld [vmem:[#allocation7 + $0xea8] sm:$0xff]
        %v1553 = vld [vmem:[#allocation7 + $0xeb0] sm:$0xff]
        %v1554 = vld [vmem:[#allocation7 + $0xeb8] sm:$0xff]
        %v1555 = vld [vmem:[#allocation7 + $0xec0] sm:$0xff]
        %v1556 = vld [vmem:[#allocation7 + $0xec8] sm:$0xff]
        %v1557 = vld [vmem:[#allocation7 + $0xed0] sm:$0xff]
        %v1558 = vld [vmem:[#allocation7 + $0xed8] sm:$0xff]
        %v1559 = vld [vmem:[#allocation7 + $0xee0] sm:$0xff]
        %v1560 = vld [vmem:[#allocation7 + $0xee8] sm:$0xff]
        %v1561 = vld [vmem:[#allocation7 + $0xef0] sm:$0xff]
        %v1562 = vld [vmem:[#allocation7 + $0xef8] sm:$0xff]
        %v1563 = vld [vmem:[#allocation7 + $0xf00] sm:$0xff]
        %v1564 = vld [vmem:[#allocation7 + $0xf08] sm:$0xff]
        %v1565 = vld [vmem:[#allocation7 + $0xf10] sm:$0xff]
        %v1566 = vld [vmem:[#allocation7 + $0xf18] sm:$0xff]
        %v1567 = vld [vmem:[#allocation7 + $0xf20] sm:$0xff]
        %v1568 = vld [vmem:[#allocation7 + $0xf28] sm:$0xff]
        %v1569 = vld [vmem:[#allocation7 + $0xf30] sm:$0xff]
        %v1570 = vld [vmem:[#allocation7 + $0xf38] sm:$0xff]
        %v1571 = vld [vmem:[#allocation7 + $0xf40] sm:$0xff]
        %v1572 = vld [vmem:[#allocation7 + $0xf48] sm:$0xff]
        %v1573 = vld [vmem:[#allocation7 + $0xf50] sm:$0xff]
        %v1574 = vld [vmem:[#allocation7 + $0xf58] sm:$0xff]
        %v1575 = vld [vmem:[#allocation7 + $0xf60] sm:$0xff]
        %v1576 = vld [vmem:[#allocation7 + $0xf68] sm:$0xff]
        %v1577 = vld [vmem:[#allocation7 + $0xf70] sm:$0xff]
        %v1578 = vld [vmem:[#allocation7 + $0xf78] sm:$0xff]
        %v1579 = vld [vmem:[#allocation7 + $0xf80] sm:$0xff]
        %v1580 = vld [vmem:[#allocation7 + $0xf88] sm:$0xff]
        %v1581 = vld [vmem:[#allocation7 + $0xf90] sm:$0xff]
        %v1582 = vld [vmem:[#allocation7 + $0xf98] sm:$0xff]
        %v1583 = vld [vmem:[#allocation7 + $0xfa0] sm:$0xff]
        %v1584 = vld [vmem:[#allocation7 + $0xfa8] sm:$0xff]
        %v1585 = vld [vmem:[#allocation7 + $0xfb0] sm:$0xff]
        %v1586 = vld [vmem:[#allocation7 + $0xfb8] sm:$0xff]
        %v1587 = vld [vmem:[#allocation7 + $0xfc0] sm:$0xff]
        %v1588 = vld [vmem:[#allocation7 + $0xfc8] sm:$0xff]
        %v1589 = vld [vmem:[#allocation7 + $0xfd0] sm:$0xff]
        %v1590 = vld [vmem:[#allocation7 + $0xfd8] sm:$0xff]
        %v1591 = vld [vmem:[#allocation7 + $0xfe0] sm:$0xff]
        %v1592 = vld [vmem:[#allocation7 + $0xfe8] sm:$0xff]
        %v1593 = vld [vmem:[#allocation7 + $0xff0] sm:$0xff]
        %v1594 = vld [vmem:[#allocation7 + $0xff8] sm:$0xff]
        %v1595 = vld [vmem:[#allocation7 + $0x1000] sm:$0xff]
        %v1596 = vld [vmem:[#allocation7 + $0x1008] sm:$0xff]
        %v1597 = vld [vmem:[#allocation7 + $0x1010] sm:$0xff]
        %v1598 = vld [vmem:[#allocation7 + $0x1018] sm:$0xff]
        %v1599 = vld [vmem:[#allocation7 + $0x1020] sm:$0xff]
        %v1600 = vld [vmem:[#allocation7 + $0x1028] sm:$0xff]
        %v1601 = vld [vmem:[#allocation7 + $0x1030] sm:$0xff]
        %v1602 = vld [vmem:[#allocation7 + $0x1038] sm:$0xff]
        %v1603 = vld [vmem:[#allocation7 + $0x1040] sm:$0xff]
        %v1604 = vld [vmem:[#allocation7 + $0x1048] sm:$0xff]
        %v1605 = vld [vmem:[#allocation7 + $0x1050] sm:$0xff]
        %v1606 = vld [vmem:[#allocation7 + $0x1058] sm:$0xff]
        %v1607 = vld [vmem:[#allocation7 + $0x1060] sm:$0xff]
        %v1608 = vld [vmem:[#allocation7 + $0x1068] sm:$0xff]
        %v1609 = vld [vmem:[#allocation7 + $0x1070] sm:$0xff]
        %v1610 = vld [vmem:[#allocation7 + $0x1078] sm:$0xff]
        %v1611 = vld [vmem:[#allocation7 + $0x1080] sm:$0xff]
        %v1612 = vld [vmem:[#allocation7 + $0x1088] sm:$0xff]
        %v1613 = vld [vmem:[#allocation7 + $0x1090] sm:$0xff]
        %v1614 = vld [vmem:[#allocation7 + $0x1098] sm:$0xff]
        %v1615 = vld [vmem:[#allocation7 + $0x10a0] sm:$0xff]
        %v1616 = vld [vmem:[#allocation7 + $0x10a8] sm:$0xff]
        %v1617 = vld [vmem:[#allocation7 + $0x10b0] sm:$0xff]
        %v1618 = vld [vmem:[#allocation7 + $0x10b8] sm:$0xff]
        %v1619 = vld [vmem:[#allocation7 + $0x10c0] sm:$0xff]
        %v1620 = vld [vmem:[#allocation7 + $0x10c8] sm:$0xff]
        %v1621 = vld [vmem:[#allocation7 + $0x10d0] sm:$0xff]
        %v1622 = vld [vmem:[#allocation7 + $0x10d8] sm:$0xff]
        %v1623 = vld [vmem:[#allocation7 + $0x10e0] sm:$0xff]
        %v1624 = vld [vmem:[#allocation7 + $0x10e8] sm:$0xff]
        %v1625 = vld [vmem:[#allocation7 + $0x10f0] sm:$0xff]
        %v1626 = vld [vmem:[#allocation7 + $0x10f8] sm:$0xff]
        %v1627 = vld [vmem:[#allocation7 + $0x1100] sm:$0xff]
        %v1628 = vld [vmem:[#allocation7 + $0x1108] sm:$0xff]
        %v1629 = vld [vmem:[#allocation7 + $0x1110] sm:$0xff]
        %v1630 = vld [vmem:[#allocation7 + $0x1118] sm:$0xff]
        %v1631 = vld [vmem:[#allocation7 + $0x1120] sm:$0xff]
        %v1632 = vld [vmem:[#allocation7 + $0x1128] sm:$0xff]
        %v1633 = vld [vmem:[#allocation7 + $0x1130] sm:$0xff]
        %v1634 = vld [vmem:[#allocation7 + $0x1138] sm:$0xff]
        %v1635 = vld [vmem:[#allocation7 + $0x1140] sm:$0xff]
        %v1636 = vld [vmem:[#allocation7 + $0x1148] sm:$0xff]
        %v1637 = vld [vmem:[#allocation7 + $0x1150] sm:$0xff]
        %v1638 = vld [vmem:[#allocation7 + $0x1158] sm:$0xff]
        %v1639 = vld [vmem:[#allocation7 + $0x1160] sm:$0xff]
        %v1640 = vld [vmem:[#allocation7 + $0x1168] sm:$0xff]
        %v1641 = vld [vmem:[#allocation7 + $0x1170] sm:$0xff]
        %v1642 = vld [vmem:[#allocation7 + $0x1178] sm:$0xff]
        %v1643 = vld [vmem:[#allocation7 + $0x1180] sm:$0xff]
        %v1644 = vld [vmem:[#allocation7 + $0x1188] sm:$0xff]
        %v1645 = vld [vmem:[#allocation7 + $0x1190] sm:$0xff]
        %v1646 = vld [vmem:[#allocation7 + $0x1198] sm:$0xff]
        %v1647 = vld [vmem:[#allocation7 + $0x11a0] sm:$0xff]
        %v1648 = vld [vmem:[#allocation7 + $0x11a8] sm:$0xff]
        %v1649 = vld [vmem:[#allocation7 + $0x11b0] sm:$0xff]
        %v1650 = vld [vmem:[#allocation7 + $0x11b8] sm:$0xff]
        %v1651 = vld [vmem:[#allocation7 + $0x11c0] sm:$0xff]
        %v1652 = vld [vmem:[#allocation7 + $0x11c8] sm:$0xff]
        %v1653 = vld [vmem:[#allocation7 + $0x11d0] sm:$0xff]
        %v1654 = vld [vmem:[#allocation7 + $0x11d8] sm:$0xff]
        %v1655 = vld [vmem:[#allocation7 + $0x11e0] sm:$0xff]
        %v1656 = vld [vmem:[#allocation7 + $0x11e8] sm:$0xff]
        %v1657 = vld [vmem:[#allocation7 + $0x11f0] sm:$0xff]
        %v1658 = vld [vmem:[#allocation7 + $0x11f8] sm:$0xff]
        %v1659 = vld [vmem:[#allocation7 + $0x1200] sm:$0xff]
        %v1660 = vld [vmem:[#allocation7 + $0x1208] sm:$0xff]
        %v1661 = vld [vmem:[#allocation7 + $0x1210] sm:$0xff]
        %v1662 = vld [vmem:[#allocation7 + $0x1218] sm:$0xff]
        %v1663 = vld [vmem:[#allocation7 + $0x1220] sm:$0xff]
        %v1664 = vld [vmem:[#allocation7 + $0x1228] sm:$0xff]
        %v1665 = vld [vmem:[#allocation7 + $0x1230] sm:$0xff]
        %v1666 = vld [vmem:[#allocation7 + $0x1238] sm:$0xff]
        %v1667 = vld [vmem:[#allocation7 + $0x1240] sm:$0xff]
        %v1668 = vld [vmem:[#allocation7 + $0x1248] sm:$0xff]
        %v1669 = vld [vmem:[#allocation7 + $0x1250] sm:$0xff]
        %v1670 = vld [vmem:[#allocation7 + $0x1258] sm:$0xff]
        %v1671 = vld [vmem:[#allocation7 + $0x1260] sm:$0xff]
        %v1672 = vld [vmem:[#allocation7 + $0x1268] sm:$0xff]
        %v1673 = vld [vmem:[#allocation7 + $0x1270] sm:$0xff]
        %v1674 = vld [vmem:[#allocation7 + $0x1278] sm:$0xff]
        %v1675 = vld [vmem:[#allocation7 + $0x1280] sm:$0xff]
        %v1676 = vld [vmem:[#allocation7 + $0x1288] sm:$0xff]
        %v1677 = vld [vmem:[#allocation7 + $0x1290] sm:$0xff]
        %v1678 = vld [vmem:[#allocation7 + $0x1298] sm:$0xff]
        %v1679 = vld [vmem:[#allocation7 + $0x12a0] sm:$0xff]
        %v1680 = vld [vmem:[#allocation7 + $0x12a8] sm:$0xff]
        %v1681 = vld [vmem:[#allocation7 + $0x12b0] sm:$0xff]
        %v1682 = vld [vmem:[#allocation7 + $0x12b8] sm:$0xff]
        %v1683 = vld [vmem:[#allocation7 + $0x12c0] sm:$0xff]
        %v1684 = vld [vmem:[#allocation7 + $0x12c8] sm:$0xff]
        %v1685 = vld [vmem:[#allocation7 + $0x12d0] sm:$0xff]
        %v1686 = vld [vmem:[#allocation7 + $0x12d8] sm:$0xff]
        %v1687 = vld [vmem:[#allocation7 + $0x12e0] sm:$0xff]
        %v1688 = vld [vmem:[#allocation7 + $0x12e8] sm:$0xff]
        %v1689 = vld [vmem:[#allocation7 + $0x12f0] sm:$0xff]
        %v1690 = vld [vmem:[#allocation7 + $0x12f8] sm:$0xff]
        %v1691 = vld [vmem:[#allocation7 + $0x1300] sm:$0xff]
        %v1692 = vld [vmem:[#allocation7 + $0x1308] sm:$0xff]
        %v1693 = vld [vmem:[#allocation7 + $0x1310] sm:$0xff]
        %v1694 = vld [vmem:[#allocation7 + $0x1318] sm:$0xff]
        %v1695 = vld [vmem:[#allocation7 + $0x1320] sm:$0xff]
        %v1696 = vld [vmem:[#allocation7 + $0x1328] sm:$0xff]
        %v1697 = vld [vmem:[#allocation7 + $0x1330] sm:$0xff]
        %v1698 = vld [vmem:[#allocation7 + $0x1338] sm:$0xff]
        %v1699 = vld [vmem:[#allocation7 + $0x1340] sm:$0xff]
        %v1700 = vld [vmem:[#allocation7 + $0x1348] sm:$0xff]
        %v1701 = vld [vmem:[#allocation7 + $0x1350] sm:$0xff]
        %v1702 = vld [vmem:[#allocation7 + $0x1358] sm:$0xff]
        %v1703 = vld [vmem:[#allocation7 + $0x1360] sm:$0xff]
        %v1704 = vld [vmem:[#allocation7 + $0x1368] sm:$0xff]
        %v1705 = vld [vmem:[#allocation7 + $0x1370] sm:$0xff]
        %v1706 = vld [vmem:[#allocation7 + $0x1378] sm:$0xff]
        %v1707 = vld [vmem:[#allocation7 + $0x1380] sm:$0xff]
        %v1708 = vld [vmem:[#allocation7 + $0x1388] sm:$0xff]
        %v1709 = vld [vmem:[#allocation7 + $0x1390] sm:$0xff]
        %v1710 = vld [vmem:[#allocation7 + $0x1398] sm:$0xff]
        %v1711 = vld [vmem:[#allocation7 + $0x13a0] sm:$0xff]
        %v1712 = vld [vmem:[#allocation7 + $0x13a8] sm:$0xff]
        %v1713 = vld [vmem:[#allocation7 + $0x13b0] sm:$0xff]
        %v1714 = vld [vmem:[#allocation7 + $0x13b8] sm:$0xff]
        %v1715 = vld [vmem:[#allocation7 + $0x13c0] sm:$0xff]
        %v1716 = vld [vmem:[#allocation7 + $0x13c8] sm:$0xff]
        %v1717 = vld [vmem:[#allocation7 + $0x13d0] sm:$0xff]
        %v1718 = vld [vmem:[#allocation7 + $0x13d8] sm:$0xff]
        %v1719 = vld [vmem:[#allocation7 + $0x13e0] sm:$0xff]
        %v1720 = vld [vmem:[#allocation7 + $0x13e8] sm:$0xff]
        %v1721 = vld [vmem:[#allocation7 + $0x13f0] sm:$0xff]
        %v1722 = vld [vmem:[#allocation7 + $0x13f8] sm:$0xff]
        %v1723 = vld [vmem:[#allocation7 + $0x1400] sm:$0xff]
        %v1724 = vld [vmem:[#allocation7 + $0x1408] sm:$0xff]
        %v1725 = vld [vmem:[#allocation7 + $0x1410] sm:$0xff]
        %v1726 = vld [vmem:[#allocation7 + $0x1418] sm:$0xff]
        %v1727 = vld [vmem:[#allocation7 + $0x1420] sm:$0xff]
        %v1728 = vld [vmem:[#allocation7 + $0x1428] sm:$0xff]
        %v1729 = vld [vmem:[#allocation7 + $0x1430] sm:$0xff]
        %v1730 = vld [vmem:[#allocation7 + $0x1438] sm:$0xff]
        %v1731 = vld [vmem:[#allocation7 + $0x1440] sm:$0xff]
        %v1732 = vld [vmem:[#allocation7 + $0x1448] sm:$0xff]
        %v1733 = vld [vmem:[#allocation7 + $0x1450] sm:$0xff]
        %v1734 = vld [vmem:[#allocation7 + $0x1458] sm:$0xff]
        %v1735 = vld [vmem:[#allocation7 + $0x1460] sm:$0xff]
        %v1736 = vld [vmem:[#allocation7 + $0x1468] sm:$0xff]
        %v1737 = vld [vmem:[#allocation7 + $0x1470] sm:$0xff]
        %v1738 = vld [vmem:[#allocation7 + $0x1478] sm:$0xff]
        %v1739 = vld [vmem:[#allocation7 + $0x1480] sm:$0xff]
        %v1740 = vld [vmem:[#allocation7 + $0x1488] sm:$0xff]
        %v1741 = vld [vmem:[#allocation7 + $0x1490] sm:$0xff]
        %v1742 = vld [vmem:[#allocation7 + $0x1498] sm:$0xff]
        %v1743 = vld [vmem:[#allocation7 + $0x14a0] sm:$0xff]
        %v1744 = vld [vmem:[#allocation7 + $0x14a8] sm:$0xff]
        %v1745 = vld [vmem:[#allocation7 + $0x14b0] sm:$0xff]
        %v1746 = vld [vmem:[#allocation7 + $0x14b8] sm:$0xff]
        %v1747 = vld [vmem:[#allocation7 + $0x14c0] sm:$0xff]
        %v1748 = vld [vmem:[#allocation7 + $0x14c8] sm:$0xff]
        %v1749 = vld [vmem:[#allocation7 + $0x14d0] sm:$0xff]
        %v1750 = vld [vmem:[#allocation7 + $0x14d8] sm:$0xff]
        %v1751 = vld [vmem:[#allocation7 + $0x14e0] sm:$0xff]
        %v1752 = vld [vmem:[#allocation7 + $0x14e8] sm:$0xff]
        %v1753 = vld [vmem:[#allocation7 + $0x14f0] sm:$0xff]
        %v1754 = vld [vmem:[#allocation7 + $0x14f8] sm:$0xff]
        %v1755 = vld [vmem:[#allocation7 + $0x1500] sm:$0xff]
        %v1756 = vld [vmem:[#allocation7 + $0x1508] sm:$0xff]
        %v1757 = vld [vmem:[#allocation7 + $0x1510] sm:$0xff]
        %v1758 = vld [vmem:[#allocation7 + $0x1518] sm:$0xff]
        %v1759 = vld [vmem:[#allocation7 + $0x1520] sm:$0xff]
        %v1760 = vld [vmem:[#allocation7 + $0x1528] sm:$0xff]
        %v1761 = vld [vmem:[#allocation7 + $0x1530] sm:$0xff]
        %v1762 = vld [vmem:[#allocation7 + $0x1538] sm:$0xff]
        %v1763 = vld [vmem:[#allocation7 + $0x1540] sm:$0xff]
        %v1764 = vld [vmem:[#allocation7 + $0x1548] sm:$0xff]
        %v1765 = vld [vmem:[#allocation7 + $0x1550] sm:$0xff]
        %v1766 = vld [vmem:[#allocation7 + $0x1558] sm:$0xff]
        %v1767 = vld [vmem:[#allocation7 + $0x1560] sm:$0xff]
        %v1768 = vld [vmem:[#allocation7 + $0x1568] sm:$0xff]
        %v1769 = vld [vmem:[#allocation7 + $0x1570] sm:$0xff]
        %v1770 = vld [vmem:[#allocation7 + $0x1578] sm:$0xff]
        %v1771 = vld [vmem:[#allocation7 + $0x1580] sm:$0xff]
        %v1772 = vld [vmem:[#allocation7 + $0x1588] sm:$0xff]
        %v1773 = vld [vmem:[#allocation7 + $0x1590] sm:$0xff]
        %v1774 = vld [vmem:[#allocation7 + $0x1598] sm:$0xff]
        %v1775 = vld [vmem:[#allocation7 + $0x15a0] sm:$0xff]
        %v1776 = vld [vmem:[#allocation7 + $0x15a8] sm:$0xff]
        %v1777 = vld [vmem:[#allocation7 + $0x15b0] sm:$0xff]
        %v1778 = vld [vmem:[#allocation7 + $0x15b8] sm:$0xff]
        %v1779 = vld [vmem:[#allocation7 + $0x15c0] sm:$0xff]
        %v1780 = vld [vmem:[#allocation7 + $0x15c8] sm:$0xff]
        %v1781 = vld [vmem:[#allocation7 + $0x15d0] sm:$0xff]
        %v1782 = vld [vmem:[#allocation7 + $0x15d8] sm:$0xff]
        %v1783 = vld [vmem:[#allocation7 + $0x15e0] sm:$0xff]
        %v1784 = vld [vmem:[#allocation7 + $0x15e8] sm:$0xff]
        %v1785 = vld [vmem:[#allocation7 + $0x15f0] sm:$0xff]
        %v1786 = vld [vmem:[#allocation7 + $0x15f8] sm:$0xff]
        %v1787 = vld [vmem:[#allocation7 + $0x1600] sm:$0xff]
        %v1788 = vld [vmem:[#allocation7 + $0x1608] sm:$0xff]
        %v1789 = vld [vmem:[#allocation7 + $0x1610] sm:$0xff]
        %v1790 = vld [vmem:[#allocation7 + $0x1618] sm:$0xff]
        %v1791 = vld [vmem:[#allocation7 + $0x1620] sm:$0xff]
        %v1792 = vld [vmem:[#allocation7 + $0x1628] sm:$0xff]
        %v1793 = vld [vmem:[#allocation7 + $0x1630] sm:$0xff]
        %v1794 = vld [vmem:[#allocation7 + $0x1638] sm:$0xff]
        %v1795 = vld [vmem:[#allocation7 + $0x1640] sm:$0xff]
        %v1796 = vld [vmem:[#allocation7 + $0x1648] sm:$0xff]
        %v1797 = vld [vmem:[#allocation7 + $0x1650] sm:$0xff]
        %v1798 = vld [vmem:[#allocation7 + $0x1658] sm:$0xff]
        %v1799 = vld [vmem:[#allocation7 + $0x1660] sm:$0xff]
        %v1800 = vld [vmem:[#allocation7 + $0x1668] sm:$0xff]
        %v1801 = vld [vmem:[#allocation7 + $0x1670] sm:$0xff]
        %v1802 = vld [vmem:[#allocation7 + $0x1678] sm:$0xff]
        %v1803 = vld [vmem:[#allocation7 + $0x1680] sm:$0xff]
        %v1804 = vld [vmem:[#allocation7 + $0x1688] sm:$0xff]
        %v1805 = vld [vmem:[#allocation7 + $0x1690] sm:$0xff]
        %v1806 = vld [vmem:[#allocation7 + $0x1698] sm:$0xff]
        %v1807 = vld [vmem:[#allocation7 + $0x16a0] sm:$0xff]
        %v1808 = vld [vmem:[#allocation7 + $0x16a8] sm:$0xff]
        %v1809 = vld [vmem:[#allocation7 + $0x16b0] sm:$0xff]
        %v1810 = vld [vmem:[#allocation7 + $0x16b8] sm:$0xff]
        %v1811 = vld [vmem:[#allocation7 + $0x16c0] sm:$0xff]
        %v1812 = vld [vmem:[#allocation7 + $0x16c8] sm:$0xff]
        %v1813 = vld [vmem:[#allocation7 + $0x16d0] sm:$0xff]
        %v1814 = vld [vmem:[#allocation7 + $0x16d8] sm:$0xff]
        %v1815 = vld [vmem:[#allocation7 + $0x16e0] sm:$0xff]
        %v1816 = vld [vmem:[#allocation7 + $0x16e8] sm:$0xff]
        %v1817 = vld [vmem:[#allocation7 + $0x16f0] sm:$0xff]
        %v1818 = vld [vmem:[#allocation7 + $0x16f8] sm:$0xff]
        %v1819 = vld [vmem:[#allocation7 + $0x1700] sm:$0xff]
        %v1820 = vld [vmem:[#allocation7 + $0x1708] sm:$0xff]
        %v1821 = vld [vmem:[#allocation7 + $0x1710] sm:$0xff]
        %v1822 = vld [vmem:[#allocation7 + $0x1718] sm:$0xff]
        %v1823 = vld [vmem:[#allocation7 + $0x1720] sm:$0xff]
        %v1824 = vld [vmem:[#allocation7 + $0x1728] sm:$0xff]
        %v1825 = vld [vmem:[#allocation7 + $0x1730] sm:$0xff]
        %v1826 = vld [vmem:[#allocation7 + $0x1738] sm:$0xff]
        %v1827 = vld [vmem:[#allocation7 + $0x1740] sm:$0xff]
        %v1828 = vld [vmem:[#allocation7 + $0x1748] sm:$0xff]
        %v1829 = vld [vmem:[#allocation7 + $0x1750] sm:$0xff]
        %v1830 = vld [vmem:[#allocation7 + $0x1758] sm:$0xff]
        %v1831 = vld [vmem:[#allocation7 + $0x1760] sm:$0xff]
        %v1832 = vld [vmem:[#allocation7 + $0x1768] sm:$0xff]
        %v1833 = vld [vmem:[#allocation7 + $0x1770] sm:$0xff]
        %v1834 = vld [vmem:[#allocation7 + $0x1778] sm:$0xff]
        %v1835 = vld [vmem:[#allocation7 + $0x1780] sm:$0xff]
        %v1836 = vld [vmem:[#allocation7 + $0x1788] sm:$0xff]
        %v1837 = vld [vmem:[#allocation7 + $0x1790] sm:$0xff]
        %v1838 = vld [vmem:[#allocation7 + $0x1798] sm:$0xff]
        %v1839 = vld [vmem:[#allocation7 + $0x17a0] sm:$0xff]
        %v1840 = vld [vmem:[#allocation7 + $0x17a8] sm:$0xff]
        %v1841 = vld [vmem:[#allocation7 + $0x17b0] sm:$0xff]
        %v1842 = vld [vmem:[#allocation7 + $0x17b8] sm:$0xff]
        %v1843 = vld [vmem:[#allocation7 + $0x17c0] sm:$0xff]
        %v1844 = vld [vmem:[#allocation7 + $0x17c8] sm:$0xff]
        %v1845 = vld [vmem:[#allocation7 + $0x17d0] sm:$0xff]
        %v1846 = vld [vmem:[#allocation7 + $0x17d8] sm:$0xff]
        %v1847 = vld [vmem:[#allocation7 + $0x17e0] sm:$0xff]
        %v1848 = vld [vmem:[#allocation7 + $0x17e8] sm:$0xff]
        %v1849 = vld [vmem:[#allocation7 + $0x17f0] sm:$0xff]
        %v1850 = vld [vmem:[#allocation7 + $0x17f8] sm:$0xff]
        %v1851 = vld [vmem:[#allocation7 + $0x1800] sm:$0xff]
        %v1852 = vld [vmem:[#allocation7 + $0x1808] sm:$0xff]
        %v1853 = vld [vmem:[#allocation7 + $0x1810] sm:$0xff]
        %v1854 = vld [vmem:[#allocation7 + $0x1818] sm:$0xff]
        %v1855 = vld [vmem:[#allocation7 + $0x1820] sm:$0xff]
        %v1856 = vld [vmem:[#allocation7 + $0x1828] sm:$0xff]
        %v1857 = vld [vmem:[#allocation7 + $0x1830] sm:$0xff]
        %v1858 = vld [vmem:[#allocation7 + $0x1838] sm:$0xff]
        %v1859 = vld [vmem:[#allocation7 + $0x1840] sm:$0xff]
        %v1860 = vld [vmem:[#allocation7 + $0x1848] sm:$0xff]
        %v1861 = vld [vmem:[#allocation7 + $0x1850] sm:$0xff]
        %v1862 = vld [vmem:[#allocation7 + $0x1858] sm:$0xff]
        %v1863 = vld [vmem:[#allocation7 + $0x1860] sm:$0xff]
        %v1864 = vld [vmem:[#allocation7 + $0x1868] sm:$0xff]
        %v1865 = vld [vmem:[#allocation7 + $0x1870] sm:$0xff]
        %v1866 = vld [vmem:[#allocation7 + $0x1878] sm:$0xff]
        %v1867 = vld [vmem:[#allocation7 + $0x1880] sm:$0xff]
        %v1868 = vld [vmem:[#allocation7 + $0x1888] sm:$0xff]
        %v1869 = vld [vmem:[#allocation7 + $0x1890] sm:$0xff]
        %v1870 = vld [vmem:[#allocation7 + $0x1898] sm:$0xff]
        %v1871 = vld [vmem:[#allocation7 + $0x18a0] sm:$0xff]
        %v1872 = vld [vmem:[#allocation7 + $0x18a8] sm:$0xff]
        %v1873 = vld [vmem:[#allocation7 + $0x18b0] sm:$0xff]
        %v1874 = vld [vmem:[#allocation7 + $0x18b8] sm:$0xff]
        %v1875 = vld [vmem:[#allocation7 + $0x18c0] sm:$0xff]
        %v1876 = vld [vmem:[#allocation7 + $0x18c8] sm:$0xff]
        %v1877 = vld [vmem:[#allocation7 + $0x18d0] sm:$0xff]
        %v1878 = vld [vmem:[#allocation7 + $0x18d8] sm:$0xff]
        %v1879 = vld [vmem:[#allocation7 + $0x18e0] sm:$0xff]
        %v1880 = vld [vmem:[#allocation7 + $0x18e8] sm:$0xff]
        %v1881 = vld [vmem:[#allocation7 + $0x18f0] sm:$0xff]
        %v1882 = vld [vmem:[#allocation7 + $0x18f8] sm:$0xff]
        %v1883 = vld [vmem:[#allocation7 + $0x1900] sm:$0xff]
        %v1884 = vld [vmem:[#allocation7 + $0x1908] sm:$0xff]
        %v1885 = vld [vmem:[#allocation7 + $0x1910] sm:$0xff]
        %v1886 = vld [vmem:[#allocation7 + $0x1918] sm:$0xff]
        %v1887 = vld [vmem:[#allocation7 + $0x1920] sm:$0xff]
        %v1888 = vld [vmem:[#allocation7 + $0x1928] sm:$0xff]
        %v1889 = vld [vmem:[#allocation7 + $0x1930] sm:$0xff]
        %v1890 = vld [vmem:[#allocation7 + $0x1938] sm:$0xff]
        %v1891 = vld [vmem:[#allocation7 + $0x1940] sm:$0xff]
        %v1892 = vld [vmem:[#allocation7 + $0x1948] sm:$0xff]
        %v1893 = vld [vmem:[#allocation7 + $0x1950] sm:$0xff]
        %v1894 = vld [vmem:[#allocation7 + $0x1958] sm:$0xff]
        %v1895 = vld [vmem:[#allocation7 + $0x1960] sm:$0xff]
        %v1896 = vld [vmem:[#allocation7 + $0x1968] sm:$0xff]
        %v1897 = vld [vmem:[#allocation7 + $0x1970] sm:$0xff]
        %v1898 = vld [vmem:[#allocation7 + $0x1978] sm:$0xff]
        %v1899 = vld [vmem:[#allocation7 + $0x1980] sm:$0xff]
        %v1900 = vld [vmem:[#allocation7 + $0x1988] sm:$0xff]
        %v1901 = vld [vmem:[#allocation7 + $0x1990] sm:$0xff]
        %v1902 = vld [vmem:[#allocation7 + $0x1998] sm:$0xff]
        %v1903 = vld [vmem:[#allocation7 + $0x19a0] sm:$0xff]
        %v1904 = vld [vmem:[#allocation7 + $0x19a8] sm:$0xff]
        %v1905 = vld [vmem:[#allocation7 + $0x19b0] sm:$0xff]
        %v1906 = vld [vmem:[#allocation7 + $0x19b8] sm:$0xff]
        %v1907 = vld [vmem:[#allocation7 + $0x19c0] sm:$0xff]
        %v1908 = vld [vmem:[#allocation7 + $0x19c8] sm:$0xff]
        %v1909 = vld [vmem:[#allocation7 + $0x19d0] sm:$0xff]
        %v1910 = vld [vmem:[#allocation7 + $0x19d8] sm:$0xff]
        %v1911 = vld [vmem:[#allocation7 + $0x19e0] sm:$0xff]
        %v1912 = vld [vmem:[#allocation7 + $0x19e8] sm:$0xff]
        %v1913 = vld [vmem:[#allocation7 + $0x19f0] sm:$0xff]
        %v1914 = vld [vmem:[#allocation7 + $0x19f8] sm:$0xff]
        %v1915 = vld [vmem:[#allocation7 + $0x1a00] sm:$0xff]
        %v1916 = vld [vmem:[#allocation7 + $0x1a08] sm:$0xff]
        %v1917 = vld [vmem:[#allocation7 + $0x1a10] sm:$0xff]
        %v1918 = vld [vmem:[#allocation7 + $0x1a18] sm:$0xff]
        %v1919 = vld [vmem:[#allocation7 + $0x1a20] sm:$0xff]
        %v1920 = vld [vmem:[#allocation7 + $0x1a28] sm:$0xff]
        %v1921 = vld [vmem:[#allocation7 + $0x1a30] sm:$0xff]
        %v1922 = vld [vmem:[#allocation7 + $0x1a38] sm:$0xff]
        %v1923 = vld [vmem:[#allocation7 + $0x1a40] sm:$0xff]
        %v1924 = vld [vmem:[#allocation7 + $0x1a48] sm:$0xff]
        %v1925 = vld [vmem:[#allocation7 + $0x1a50] sm:$0xff]
        %v1926 = vld [vmem:[#allocation7 + $0x1a58] sm:$0xff]
        %v1927 = vld [vmem:[#allocation7 + $0x1a60] sm:$0xff]
        %v1928 = vld [vmem:[#allocation7 + $0x1a68] sm:$0xff]
        %v1929 = vld [vmem:[#allocation7 + $0x1a70] sm:$0xff]
        %v1930 = vld [vmem:[#allocation7 + $0x1a78] sm:$0xff]
        %v1931 = vld [vmem:[#allocation7 + $0x1a80] sm:$0xff]
        %v1932 = vld [vmem:[#allocation7 + $0x1a88] sm:$0xff]
        %v1933 = vld [vmem:[#allocation7 + $0x1a90] sm:$0xff]
        %v1934 = vld [vmem:[#allocation7 + $0x1a98] sm:$0xff]
        %v1935 = vld [vmem:[#allocation7 + $0x1aa0] sm:$0xff]
        %v1936 = vld [vmem:[#allocation7 + $0x1aa8] sm:$0xff]
        %v1937 = vld [vmem:[#allocation7 + $0x1ab0] sm:$0xff]
        %v1938 = vld [vmem:[#allocation7 + $0x1ab8] sm:$0xff]
        %v1939 = vld [vmem:[#allocation7 + $0x1ac0] sm:$0xff]
        %v1940 = vld [vmem:[#allocation7 + $0x1ac8] sm:$0xff]
        %v1941 = vld [vmem:[#allocation7 + $0x1ad0] sm:$0xff]
        %v1942 = vld [vmem:[#allocation7 + $0x1ad8] sm:$0xff]
        %v1943 = vld [vmem:[#allocation7 + $0x1ae0] sm:$0xff]
        %v1944 = vld [vmem:[#allocation7 + $0x1ae8] sm:$0xff]
        %v1945 = vld [vmem:[#allocation7 + $0x1af0] sm:$0xff]
        %v1946 = vld [vmem:[#allocation7 + $0x1af8] sm:$0xff]
        %v1947 = vld [vmem:[#allocation7 + $0x1b00] sm:$0xff]
        %v1948 = vld [vmem:[#allocation7 + $0x1b08] sm:$0xff]
        %v1949 = vld [vmem:[#allocation7 + $0x1b10] sm:$0xff]
        %v1950 = vld [vmem:[#allocation7 + $0x1b18] sm:$0xff]
        %v1951 = vld [vmem:[#allocation7 + $0x1b20] sm:$0xff]
        %v1952 = vld [vmem:[#allocation7 + $0x1b28] sm:$0xff]
        %v1953 = vld [vmem:[#allocation7 + $0x1b30] sm:$0xff]
        %v1954 = vld [vmem:[#allocation7 + $0x1b38] sm:$0xff]
        %v1955 = vld [vmem:[#allocation7 + $0x1b40] sm:$0xff]
        %v1956 = vld [vmem:[#allocation7 + $0x1b48] sm:$0xff]
        %v1957 = vld [vmem:[#allocation7 + $0x1b50] sm:$0xff]
        %v1958 = vld [vmem:[#allocation7 + $0x1b58] sm:$0xff]
        %v1959 = vld [vmem:[#allocation7 + $0x1b60] sm:$0xff]
        %v1960 = vld [vmem:[#allocation7 + $0x1b68] sm:$0xff]
        %v1961 = vld [vmem:[#allocation7 + $0x1b70] sm:$0xff]
        %v1962 = vld [vmem:[#allocation7 + $0x1b78] sm:$0xff]
        %v1963 = vld [vmem:[#allocation7 + $0x1b80] sm:$0xff]
        %v1964 = vld [vmem:[#allocation7 + $0x1b88] sm:$0xff]
        %v1965 = vld [vmem:[#allocation7 + $0x1b90] sm:$0xff]
        %v1966 = vld [vmem:[#allocation7 + $0x1b98] sm:$0xff]
        %v1967 = vld [vmem:[#allocation7 + $0x1ba0] sm:$0xff]
        %v1968 = vld [vmem:[#allocation7 + $0x1ba8] sm:$0xff]
        %v1969 = vld [vmem:[#allocation7 + $0x1bb0] sm:$0xff]
        %v1970 = vld [vmem:[#allocation7 + $0x1bb8] sm:$0xff]
        %v1971 = vld [vmem:[#allocation7 + $0x1bc0] sm:$0xff]
        %v1972 = vld [vmem:[#allocation7 + $0x1bc8] sm:$0xff]
        %v1973 = vld [vmem:[#allocation7 + $0x1bd0] sm:$0xff]
        %v1974 = vld [vmem:[#allocation7 + $0x1bd8] sm:$0xff]
        %v1975 = vld [vmem:[#allocation7 + $0x1be0] sm:$0xff]
        %v1976 = vld [vmem:[#allocation7 + $0x1be8] sm:$0xff]
        %v1977 = vld [vmem:[#allocation7 + $0x1bf0] sm:$0xff]
        %v1978 = vld [vmem:[#allocation7 + $0x1bf8] sm:$0xff]
        %v1979 = vld [vmem:[#allocation7 + $0x1c00] sm:$0xff]
        %v1980 = vld [vmem:[#allocation7 + $0x1c08] sm:$0xff]
        %v1981 = vld [vmem:[#allocation7 + $0x1c10] sm:$0xff]
        %v1982 = vld [vmem:[#allocation7 + $0x1c18] sm:$0xff]
        %v1983 = vld [vmem:[#allocation7 + $0x1c20] sm:$0xff]
        %v1984 = vld [vmem:[#allocation7 + $0x1c28] sm:$0xff]
        %v1985 = vld [vmem:[#allocation7 + $0x1c30] sm:$0xff]
        %v1986 = vld [vmem:[#allocation7 + $0x1c38] sm:$0xff]
        %v1987 = vld [vmem:[#allocation7 + $0x1c40] sm:$0xff]
        %v1988 = vld [vmem:[#allocation7 + $0x1c48] sm:$0xff]
        %v1989 = vld [vmem:[#allocation7 + $0x1c50] sm:$0xff]
        %v1990 = vld [vmem:[#allocation7 + $0x1c58] sm:$0xff]
        %v1991 = vld [vmem:[#allocation7 + $0x1c60] sm:$0xff]
        %v1992 = vld [vmem:[#allocation7 + $0x1c68] sm:$0xff]
        %v1993 = vld [vmem:[#allocation7 + $0x1c70] sm:$0xff]
        %v1994 = vld [vmem:[#allocation7 + $0x1c78] sm:$0xff]
        %v1995 = vld [vmem:[#allocation7 + $0x1c80] sm:$0xff]
        %v1996 = vld [vmem:[#allocation7 + $0x1c88] sm:$0xff]
        %v1997 = vld [vmem:[#allocation7 + $0x1c90] sm:$0xff]
        %v1998 = vld [vmem:[#allocation7 + $0x1c98] sm:$0xff]
        %v1999 = vld [vmem:[#allocation7 + $0x1ca0] sm:$0xff]
        %v2000 = vld [vmem:[#allocation7 + $0x1ca8] sm:$0xff]
        %v2001 = vld [vmem:[#allocation7 + $0x1cb0] sm:$0xff]
        %v2002 = vld [vmem:[#allocation7 + $0x1cb8] sm:$0xff]
        %v2003 = vld [vmem:[#allocation7 + $0x1cc0] sm:$0xff]
        %v2004 = vld [vmem:[#allocation7 + $0x1cc8] sm:$0xff]
        %v2005 = vld [vmem:[#allocation7 + $0x1cd0] sm:$0xff]
        %v2006 = vld [vmem:[#allocation7 + $0x1cd8] sm:$0xff]
        %v2007 = vld [vmem:[#allocation7 + $0x1ce0] sm:$0xff]
        %v2008 = vld [vmem:[#allocation7 + $0x1ce8] sm:$0xff]
        %v2009 = vld [vmem:[#allocation7 + $0x1cf0] sm:$0xff]
        %v2010 = vld [vmem:[#allocation7 + $0x1cf8] sm:$0xff]
        %v2011 = vld [vmem:[#allocation7 + $0x1d00] sm:$0xff]
        %v2012 = vld [vmem:[#allocation7 + $0x1d08] sm:$0xff]
        %v2013 = vld [vmem:[#allocation7 + $0x1d10] sm:$0xff]
        %v2014 = vld [vmem:[#allocation7 + $0x1d18] sm:$0xff]
        %v2015 = vld [vmem:[#allocation7 + $0x1d20] sm:$0xff]
        %v2016 = vld [vmem:[#allocation7 + $0x1d28] sm:$0xff]
        %v2017 = vld [vmem:[#allocation7 + $0x1d30] sm:$0xff]
        %v2018 = vld [vmem:[#allocation7 + $0x1d38] sm:$0xff]
        %v2019 = vld [vmem:[#allocation7 + $0x1d40] sm:$0xff]
        %v2020 = vld [vmem:[#allocation7 + $0x1d48] sm:$0xff]
        %v2021 = vld [vmem:[#allocation7 + $0x1d50] sm:$0xff]
        %v2022 = vld [vmem:[#allocation7 + $0x1d58] sm:$0xff]
        %v2023 = vld [vmem:[#allocation7 + $0x1d60] sm:$0xff]
        %v2024 = vld [vmem:[#allocation7 + $0x1d68] sm:$0xff]
        %v2025 = vld [vmem:[#allocation7 + $0x1d70] sm:$0xff]
        %v2026 = vld [vmem:[#allocation7 + $0x1d78] sm:$0xff]
        %v2027 = vld [vmem:[#allocation7 + $0x1d80] sm:$0xff]
        %v2028 = vld [vmem:[#allocation7 + $0x1d88] sm:$0xff]
        %v2029 = vld [vmem:[#allocation7 + $0x1d90] sm:$0xff]
        %v2030 = vld [vmem:[#allocation7 + $0x1d98] sm:$0xff]
        %v2031 = vld [vmem:[#allocation7 + $0x1da0] sm:$0xff]
        %v2032 = vld [vmem:[#allocation7 + $0x1da8] sm:$0xff]
        %v2033 = vld [vmem:[#allocation7 + $0x1db0] sm:$0xff]
        %v2034 = vld [vmem:[#allocation7 + $0x1db8] sm:$0xff]
        %v2035 = vld [vmem:[#allocation7 + $0x1dc0] sm:$0xff]
        %v2036 = vld [vmem:[#allocation7 + $0x1dc8] sm:$0xff]
        %v2037 = vld [vmem:[#allocation7 + $0x1dd0] sm:$0xff]
        %v2038 = vld [vmem:[#allocation7 + $0x1dd8] sm:$0xff]
        %v2039 = vld [vmem:[#allocation7 + $0x1de0] sm:$0xff]
        %v2040 = vld [vmem:[#allocation7 + $0x1de8] sm:$0xff]
        %v2041 = vld [vmem:[#allocation7 + $0x1df0] sm:$0xff]
        %v2042 = vld [vmem:[#allocation7 + $0x1df8] sm:$0xff]
        %v2043 = vld [vmem:[#allocation7 + $0x1e00] sm:$0xff]
        %v2044 = vld [vmem:[#allocation7 + $0x1e08] sm:$0xff]
        %v2045 = vld [vmem:[#allocation7 + $0x1e10] sm:$0xff]
        %v2046 = vld [vmem:[#allocation7 + $0x1e18] sm:$0xff]
        %v2047 = vld [vmem:[#allocation7 + $0x1e20] sm:$0xff]
        %v2048 = vld [vmem:[#allocation7 + $0x1e28] sm:$0xff]
        %v2049 = vld [vmem:[#allocation7 + $0x1e30] sm:$0xff]
        %v2050 = vld [vmem:[#allocation7 + $0x1e38] sm:$0xff]
        %v2051 = vld [vmem:[#allocation7 + $0x1e40] sm:$0xff]
        %v2052 = vld [vmem:[#allocation7 + $0x1e48] sm:$0xff]
        %v2053 = vld [vmem:[#allocation7 + $0x1e50] sm:$0xff]
        %v2054 = vld [vmem:[#allocation7 + $0x1e58] sm:$0xff]
        %v2055 = vld [vmem:[#allocation7 + $0x1e60] sm:$0xff]
        %v2056 = vld [vmem:[#allocation7 + $0x1e68] sm:$0xff]
        %v2057 = vld [vmem:[#allocation7 + $0x1e70] sm:$0xff]
        %v2058 = vld [vmem:[#allocation7 + $0x1e78] sm:$0xff]
        %v2059 = vld [vmem:[#allocation7 + $0x1e80] sm:$0xff]
        %v2060 = vld [vmem:[#allocation7 + $0x1e88] sm:$0xff]
        %v2061 = vld [vmem:[#allocation7 + $0x1e90] sm:$0xff]
        %v2062 = vld [vmem:[#allocation7 + $0x1e98] sm:$0xff]
        %v2063 = vld [vmem:[#allocation7 + $0x1ea0] sm:$0xff]
        %v2064 = vld [vmem:[#allocation7 + $0x1ea8] sm:$0xff]
        %v2065 = vld [vmem:[#allocation7 + $0x1eb0] sm:$0xff]
        %v2066 = vld [vmem:[#allocation7 + $0x1eb8] sm:$0xff]
        %v2067 = vld [vmem:[#allocation7 + $0x1ec0] sm:$0xff]
        %v2068 = vld [vmem:[#allocation7 + $0x1ec8] sm:$0xff]
        %v2069 = vld [vmem:[#allocation7 + $0x1ed0] sm:$0xff]
        %v2070 = vld [vmem:[#allocation7 + $0x1ed8] sm:$0xff]
        %v2071 = vld [vmem:[#allocation7 + $0x1ee0] sm:$0xff]
        %v2072 = vld [vmem:[#allocation7 + $0x1ee8] sm:$0xff]
        %v2073 = vld [vmem:[#allocation7 + $0x1ef0] sm:$0xff]
        %v2074 = vld [vmem:[#allocation7 + $0x1ef8] sm:$0xff]
        %v2075 = vld [vmem:[#allocation7 + $0x1f00] sm:$0xff]
        %v2076 = vld [vmem:[#allocation7 + $0x1f08] sm:$0xff]
        %v2077 = vld [vmem:[#allocation7 + $0x1f10] sm:$0xff]
        %v2078 = vld [vmem:[#allocation7 + $0x1f18] sm:$0xff]
        %v2079 = vld [vmem:[#allocation7 + $0x1f20] sm:$0xff]
        %v2080 = vld [vmem:[#allocation7 + $0x1f28] sm:$0xff]
        %v2081 = vld [vmem:[#allocation7 + $0x1f30] sm:$0xff]
        %v2082 = vld [vmem:[#allocation7 + $0x1f38] sm:$0xff]
        %v2083 = vld [vmem:[#allocation7 + $0x1f40] sm:$0xff]
        %v2084 = vld [vmem:[#allocation7 + $0x1f48] sm:$0xff]
        %v2085 = vld [vmem:[#allocation7 + $0x1f50] sm:$0xff]
        %v2086 = vld [vmem:[#allocation7 + $0x1f58] sm:$0xff]
        %v2087 = vld [vmem:[#allocation7 + $0x1f60] sm:$0xff]
        %v2088 = vld [vmem:[#allocation7 + $0x1f68] sm:$0xff]
        %v2089 = vld [vmem:[#allocation7 + $0x1f70] sm:$0xff]
        %v2090 = vld [vmem:[#allocation7 + $0x1f78] sm:$0xff]
        %v2091 = vld [vmem:[#allocation7 + $0x1f80] sm:$0xff]
        %v2092 = vld [vmem:[#allocation7 + $0x1f88] sm:$0xff]
        %v2093 = vld [vmem:[#allocation7 + $0x1f90] sm:$0xff]
        %v2094 = vld [vmem:[#allocation7 + $0x1f98] sm:$0xff]
        %v2095 = vld [vmem:[#allocation7 + $0x1fa0] sm:$0xff]
        %v2096 = vld [vmem:[#allocation7 + $0x1fa8] sm:$0xff]
        %v2097 = vld [vmem:[#allocation7 + $0x1fb0] sm:$0xff]
        %v2098 = vld [vmem:[#allocation7 + $0x1fb8] sm:$0xff]
        %v2099 = vld [vmem:[#allocation7 + $0x1fc0] sm:$0xff]
        %v2100 = vld [vmem:[#allocation7 + $0x1fc8] sm:$0xff]
        %v2101 = vld [vmem:[#allocation7 + $0x1fd0] sm:$0xff]
        %v2102 = vld [vmem:[#allocation7 + $0x1fd8] sm:$0xff]
        %v2103 = vld [vmem:[#allocation7 + $0x1fe0] sm:$0xff]
        %v2104 = vld [vmem:[#allocation7 + $0x1fe8] sm:$0xff]
        %v2105 = vld [vmem:[#allocation7 + $0x1ff0] sm:$0xff]
        %v2106 = vld [vmem:[#allocation7 + $0x1ff8] sm:$0xff]
        %v2107 = vld [vmem:[#allocation8] sm:$0x1]
        %v2109 = vlaneseq
        %v2110 = vshrl.u32 %v2109, 7
        %v2111 = vsub.s32 0, %v2110
        %v2112 = vrot.slane %v2107, %v2111
        %v2178 = vcombine.low %v1019, %v1027
        %v2179 = vcombine.high %v1019, %v1027
        %v2180 = vcombine.low %v1035, %v1043
        %v2181 = vcombine.high %v1035, %v1043
        %v2182 = vcombine.low %v1051, %v1059
        %v2183 = vcombine.high %v1051, %v1059
        %v2184 = vcombine.low %v1067, %v1075
        %v2185 = vcombine.high %v1067, %v1075
        %v2187 = vunpack.c.l.s4 1966171168
        %v2188 = vunpack.c.0.s8 %v2187
        %v2189 = vlaneseq
        %v2190 = vshrl.u32 %v2189, 7
        %v2191 = vsub.s32 %v2188, %v2190
        %v2192 = vrot.slane %v2178, %v2191
        %v2194 = vunpack.c.l.s4 1966171168
        %v2195 = vunpack.c.0.s8 %v2194
        %v2196 = vlaneseq
        %v2197 = vshrl.u32 %v2196, 7
        %v2198 = vsub.s32 %v2195, %v2197
        %v2199 = vrot.slane %v2179, %v2198
        %v2201 = vunpack.c.l.s4 1966171168
        %v2202 = vunpack.c.0.s8 %v2201
        %v2203 = vlaneseq
        %v2204 = vshrl.u32 %v2203, 7
        %v2205 = vsub.s32 %v2202, %v2204
        %v2206 = vrot.slane %v2180, %v2205
        %v2208 = vunpack.c.l.s4 1966171168
        %v2209 = vunpack.c.0.s8 %v2208
        %v2210 = vlaneseq
        %v2211 = vshrl.u32 %v2210, 7
        %v2212 = vsub.s32 %v2209, %v2211
        %v2213 = vrot.slane %v2181, %v2212
        %v2215 = vunpack.c.l.s4 1966171168
        %v2216 = vunpack.c.0.s8 %v2215
        %v2217 = vlaneseq
        %v2218 = vshrl.u32 %v2217, 7
        %v2219 = vsub.s32 %v2216, %v2218
        %v2220 = vrot.slane %v2182, %v2219
        %v2222 = vunpack.c.l.s4 1966171168
        %v2223 = vunpack.c.0.s8 %v2222
        %v2224 = vlaneseq
        %v2225 = vshrl.u32 %v2224, 7
        %v2226 = vsub.s32 %v2223, %v2225
        %v2227 = vrot.slane %v2183, %v2226
        %v2229 = vunpack.c.l.s4 1966171168
        %v2230 = vunpack.c.0.s8 %v2229
        %v2231 = vlaneseq
        %v2232 = vshrl.u32 %v2231, 7
        %v2233 = vsub.s32 %v2230, %v2232
        %v2234 = vrot.slane %v2184, %v2233
        %v2236 = vunpack.c.l.s4 1966171168
        %v2237 = vunpack.c.0.s8 %v2236
        %v2238 = vlaneseq
        %v2239 = vshrl.u32 %v2238, 7
        %v2240 = vsub.s32 %v2237, %v2239
        %v2241 = vrot.slane %v2185, %v2240
        %v2242 = vcombine.low %v2192, %v2206
        %v2243 = vcombine.high %v2192, %v2206
        %v2244 = vcombine.low %v2199, %v2213
        %v2245 = vcombine.high %v2199, %v2213
        %v2246 = vcombine.low %v2220, %v2234
        %v2247 = vcombine.high %v2220, %v2234
        %v2248 = vcombine.low %v2227, %v2241
        %v2249 = vcombine.high %v2227, %v2241
        %v2251 = vunpack.c.l.s4 1966171168
        %v2252 = vunpack.c.0.s8 %v2251
        %v2253 = vlaneseq
        %v2254 = vshrl.u32 %v2253, 7
        %v2255 = vsub.s32 %v2252, %v2254
        %v2256 = vrot.slane %v2242, %v2255
        %v2258 = vunpack.c.l.s4 1966171168
        %v2259 = vunpack.c.0.s8 %v2258
        %v2260 = vlaneseq
        %v2261 = vshrl.u32 %v2260, 7
        %v2262 = vsub.s32 %v2259, %v2261
        %v2263 = vrot.slane %v2244, %v2262
        %v2265 = vunpack.c.l.s4 1966171168
        %v2266 = vunpack.c.0.s8 %v2265
        %v2267 = vlaneseq
        %v2268 = vshrl.u32 %v2267, 7
        %v2269 = vsub.s32 %v2266, %v2268
        %v2270 = vrot.slane %v2243, %v2269
        %v2272 = vunpack.c.l.s4 1966171168
        %v2273 = vunpack.c.0.s8 %v2272
        %v2274 = vlaneseq
        %v2275 = vshrl.u32 %v2274, 7
        %v2276 = vsub.s32 %v2273, %v2275
        %v2277 = vrot.slane %v2245, %v2276
        %v2279 = vunpack.c.l.s4 1966171168
        %v2280 = vunpack.c.0.s8 %v2279
        %v2281 = vlaneseq
        %v2282 = vshrl.u32 %v2281, 7
        %v2283 = vsub.s32 %v2280, %v2282
        %v2284 = vrot.slane %v2246, %v2283
        %v2286 = vunpack.c.l.s4 1966171168
        %v2287 = vunpack.c.0.s8 %v2286
        %v2288 = vlaneseq
        %v2289 = vshrl.u32 %v2288, 7
        %v2290 = vsub.s32 %v2287, %v2289
        %v2291 = vrot.slane %v2248, %v2290
        %v2293 = vunpack.c.l.s4 1966171168
        %v2294 = vunpack.c.0.s8 %v2293
        %v2295 = vlaneseq
        %v2296 = vshrl.u32 %v2295, 7
        %v2297 = vsub.s32 %v2294, %v2296
        %v2298 = vrot.slane %v2247, %v2297
        %v2300 = vunpack.c.l.s4 1966171168
        %v2301 = vunpack.c.0.s8 %v2300
        %v2302 = vlaneseq
        %v2303 = vshrl.u32 %v2302, 7
        %v2304 = vsub.s32 %v2301, %v2303
        %v2305 = vrot.slane %v2249, %v2304
        %v2306 = vcombine.low %v2256, %v2284
        %v2307 = vcombine.high %v2256, %v2284
        %v2308 = vcombine.low %v2263, %v2291
        %v2309 = vcombine.high %v2263, %v2291
        %v2310 = vcombine.low %v2270, %v2298
        %v2311 = vcombine.high %v2270, %v2298
        %v2312 = vcombine.low %v2277, %v2305
        %v2313 = vcombine.high %v2277, %v2305
        %v2314 = vcombine.low %v1020, %v1028
        %v2315 = vcombine.high %v1020, %v1028
        %v2316 = vcombine.low %v1036, %v1044
        %v2317 = vcombine.high %v1036, %v1044
        %v2318 = vcombine.low %v1052, %v1060
        %v2319 = vcombine.high %v1052, %v1060
        %v2320 = vcombine.low %v1068, %v1076
        %v2321 = vcombine.high %v1068, %v1076
        %v2323 = vunpack.c.l.s4 1966171168
        %v2324 = vunpack.c.0.s8 %v2323
        %v2325 = vlaneseq
        %v2326 = vshrl.u32 %v2325, 7
        %v2327 = vsub.s32 %v2324, %v2326
        %v2328 = vrot.slane %v2314, %v2327
        %v2330 = vunpack.c.l.s4 1966171168
        %v2331 = vunpack.c.0.s8 %v2330
        %v2332 = vlaneseq
        %v2333 = vshrl.u32 %v2332, 7
        %v2334 = vsub.s32 %v2331, %v2333
        %v2335 = vrot.slane %v2315, %v2334
        %v2337 = vunpack.c.l.s4 1966171168
        %v2338 = vunpack.c.0.s8 %v2337
        %v2339 = vlaneseq
        %v2340 = vshrl.u32 %v2339, 7
        %v2341 = vsub.s32 %v2338, %v2340
        %v2342 = vrot.slane %v2316, %v2341
        %v2344 = vunpack.c.l.s4 1966171168
        %v2345 = vunpack.c.0.s8 %v2344
        %v2346 = vlaneseq
        %v2347 = vshrl.u32 %v2346, 7
        %v2348 = vsub.s32 %v2345, %v2347
        %v2349 = vrot.slane %v2317, %v2348
        %v2351 = vunpack.c.l.s4 1966171168
        %v2352 = vunpack.c.0.s8 %v2351
        %v2353 = vlaneseq
        %v2354 = vshrl.u32 %v2353, 7
        %v2355 = vsub.s32 %v2352, %v2354
        %v2356 = vrot.slane %v2318, %v2355
        %v2358 = vunpack.c.l.s4 1966171168
        %v2359 = vunpack.c.0.s8 %v2358
        %v2360 = vlaneseq
        %v2361 = vshrl.u32 %v2360, 7
        %v2362 = vsub.s32 %v2359, %v2361
        %v2363 = vrot.slane %v2319, %v2362
        %v2365 = vunpack.c.l.s4 1966171168
        %v2366 = vunpack.c.0.s8 %v2365
        %v2367 = vlaneseq
        %v2368 = vshrl.u32 %v2367, 7
        %v2369 = vsub.s32 %v2366, %v2368
        %v2370 = vrot.slane %v2320, %v2369
        %v2372 = vunpack.c.l.s4 1966171168
        %v2373 = vunpack.c.0.s8 %v2372
        %v2374 = vlaneseq
        %v2375 = vshrl.u32 %v2374, 7
        %v2376 = vsub.s32 %v2373, %v2375
        %v2377 = vrot.slane %v2321, %v2376
        %v2378 = vcombine.low %v2328, %v2342
        %v2379 = vcombine.high %v2328, %v2342
        %v2380 = vcombine.low %v2335, %v2349
        %v2381 = vcombine.high %v2335, %v2349
        %v2382 = vcombine.low %v2356, %v2370
        %v2383 = vcombine.high %v2356, %v2370
        %v2384 = vcombine.low %v2363, %v2377
        %v2385 = vcombine.high %v2363, %v2377
        %v2387 = vunpack.c.l.s4 1966171168
        %v2388 = vunpack.c.0.s8 %v2387
        %v2389 = vlaneseq
        %v2390 = vshrl.u32 %v2389, 7
        %v2391 = vsub.s32 %v2388, %v2390
        %v2392 = vrot.slane %v2378, %v2391
        %v2394 = vunpack.c.l.s4 1966171168
        %v2395 = vunpack.c.0.s8 %v2394
        %v2396 = vlaneseq
        %v2397 = vshrl.u32 %v2396, 7
        %v2398 = vsub.s32 %v2395, %v2397
        %v2399 = vrot.slane %v2380, %v2398
        %v2401 = vunpack.c.l.s4 1966171168
        %v2402 = vunpack.c.0.s8 %v2401
        %v2403 = vlaneseq
        %v2404 = vshrl.u32 %v2403, 7
        %v2405 = vsub.s32 %v2402, %v2404
        %v2406 = vrot.slane %v2379, %v2405
        %v2408 = vunpack.c.l.s4 1966171168
        %v2409 = vunpack.c.0.s8 %v2408
        %v2410 = vlaneseq
        %v2411 = vshrl.u32 %v2410, 7
        %v2412 = vsub.s32 %v2409, %v2411
        %v2413 = vrot.slane %v2381, %v2412
        %v2415 = vunpack.c.l.s4 1966171168
        %v2416 = vunpack.c.0.s8 %v2415
        %v2417 = vlaneseq
        %v2418 = vshrl.u32 %v2417, 7
        %v2419 = vsub.s32 %v2416, %v2418
        %v2420 = vrot.slane %v2382, %v2419
        %v2422 = vunpack.c.l.s4 1966171168
        %v2423 = vunpack.c.0.s8 %v2422
        %v2424 = vlaneseq
        %v2425 = vshrl.u32 %v2424, 7
        %v2426 = vsub.s32 %v2423, %v2425
        %v2427 = vrot.slane %v2384, %v2426
        %v2429 = vunpack.c.l.s4 1966171168
        %v2430 = vunpack.c.0.s8 %v2429
        %v2431 = vlaneseq
        %v2432 = vshrl.u32 %v2431, 7
        %v2433 = vsub.s32 %v2430, %v2432
        %v2434 = vrot.slane %v2383, %v2433
        %v2436 = vunpack.c.l.s4 1966171168
        %v2437 = vunpack.c.0.s8 %v2436
        %v2438 = vlaneseq
        %v2439 = vshrl.u32 %v2438, 7
        %v2440 = vsub.s32 %v2437, %v2439
        %v2441 = vrot.slane %v2385, %v2440
        %v2442 = vcombine.low %v2392, %v2420
        %v2443 = vcombine.high %v2392, %v2420
        %v2444 = vcombine.low %v2399, %v2427
        %v2445 = vcombine.high %v2399, %v2427
        %v2446 = vcombine.low %v2406, %v2434
        %v2447 = vcombine.high %v2406, %v2434
        %v2448 = vcombine.low %v2413, %v2441
        %v2449 = vcombine.high %v2413, %v2441
        %v2450 = vcombine.low %v1021, %v1029
        %v2451 = vcombine.high %v1021, %v1029
        %v2452 = vcombine.low %v1037, %v1045
        %v2453 = vcombine.high %v1037, %v1045
        %v2454 = vcombine.low %v1053, %v1061
        %v2455 = vcombine.high %v1053, %v1061
        %v2456 = vcombine.low %v1069, %v1077
        %v2457 = vcombine.high %v1069, %v1077
        %v2459 = vunpack.c.l.s4 1966171168
        %v2460 = vunpack.c.0.s8 %v2459
        %v2461 = vlaneseq
        %v2462 = vshrl.u32 %v2461, 7
        %v2463 = vsub.s32 %v2460, %v2462
        %v2464 = vrot.slane %v2450, %v2463
        %v2466 = vunpack.c.l.s4 1966171168
        %v2467 = vunpack.c.0.s8 %v2466
        %v2468 = vlaneseq
        %v2469 = vshrl.u32 %v2468, 7
        %v2470 = vsub.s32 %v2467, %v2469
        %v2471 = vrot.slane %v2451, %v2470
        %v2473 = vunpack.c.l.s4 1966171168
        %v2474 = vunpack.c.0.s8 %v2473
        %v2475 = vlaneseq
        %v2476 = vshrl.u32 %v2475, 7
        %v2477 = vsub.s32 %v2474, %v2476
        %v2478 = vrot.slane %v2452, %v2477
        %v2480 = vunpack.c.l.s4 1966171168
        %v2481 = vunpack.c.0.s8 %v2480
        %v2482 = vlaneseq
        %v2483 = vshrl.u32 %v2482, 7
        %v2484 = vsub.s32 %v2481, %v2483
        %v2485 = vrot.slane %v2453, %v2484
        %v2487 = vunpack.c.l.s4 1966171168
        %v2488 = vunpack.c.0.s8 %v2487
        %v2489 = vlaneseq
        %v2490 = vshrl.u32 %v2489, 7
        %v2491 = vsub.s32 %v2488, %v2490
        %v2492 = vrot.slane %v2454, %v2491
        %v2494 = vunpack.c.l.s4 1966171168
        %v2495 = vunpack.c.0.s8 %v2494
        %v2496 = vlaneseq
        %v2497 = vshrl.u32 %v2496, 7
        %v2498 = vsub.s32 %v2495, %v2497
        %v2499 = vrot.slane %v2455, %v2498
        %v2501 = vunpack.c.l.s4 1966171168
        %v2502 = vunpack.c.0.s8 %v2501
        %v2503 = vlaneseq
        %v2504 = vshrl.u32 %v2503, 7
        %v2505 = vsub.s32 %v2502, %v2504
        %v2506 = vrot.slane %v2456, %v2505
        %v2508 = vunpack.c.l.s4 1966171168
        %v2509 = vunpack.c.0.s8 %v2508
        %v2510 = vlaneseq
        %v2511 = vshrl.u32 %v2510, 7
        %v2512 = vsub.s32 %v2509, %v2511
        %v2513 = vrot.slane %v2457, %v2512
        %v2514 = vcombine.low %v2464, %v2478
        %v2515 = vcombine.high %v2464, %v2478
        %v2516 = vcombine.low %v2471, %v2485
        %v2517 = vcombine.high %v2471, %v2485
        %v2518 = vcombine.low %v2492, %v2506
        %v2519 = vcombine.high %v2492, %v2506
        %v2520 = vcombine.low %v2499, %v2513
        %v2521 = vcombine.high %v2499, %v2513
        %v2523 = vunpack.c.l.s4 1966171168
        %v2524 = vunpack.c.0.s8 %v2523
        %v2525 = vlaneseq
        %v2526 = vshrl.u32 %v2525, 7
        %v2527 = vsub.s32 %v2524, %v2526
        %v2528 = vrot.slane %v2514, %v2527
        %v2530 = vunpack.c.l.s4 1966171168
        %v2531 = vunpack.c.0.s8 %v2530
        %v2532 = vlaneseq
        %v2533 = vshrl.u32 %v2532, 7
        %v2534 = vsub.s32 %v2531, %v2533
        %v2535 = vrot.slane %v2516, %v2534
        %v2537 = vunpack.c.l.s4 1966171168
        %v2538 = vunpack.c.0.s8 %v2537
        %v2539 = vlaneseq
        %v2540 = vshrl.u32 %v2539, 7
        %v2541 = vsub.s32 %v2538, %v2540
        %v2542 = vrot.slane %v2515, %v2541
        %v2544 = vunpack.c.l.s4 1966171168
        %v2545 = vunpack.c.0.s8 %v2544
        %v2546 = vlaneseq
        %v2547 = vshrl.u32 %v2546, 7
        %v2548 = vsub.s32 %v2545, %v2547
        %v2549 = vrot.slane %v2517, %v2548
        %v2551 = vunpack.c.l.s4 1966171168
        %v2552 = vunpack.c.0.s8 %v2551
        %v2553 = vlaneseq
        %v2554 = vshrl.u32 %v2553, 7
        %v2555 = vsub.s32 %v2552, %v2554
        %v2556 = vrot.slane %v2518, %v2555
        %v2558 = vunpack.c.l.s4 1966171168
        %v2559 = vunpack.c.0.s8 %v2558
        %v2560 = vlaneseq
        %v2561 = vshrl.u32 %v2560, 7
        %v2562 = vsub.s32 %v2559, %v2561
        %v2563 = vrot.slane %v2520, %v2562
        %v2565 = vunpack.c.l.s4 1966171168
        %v2566 = vunpack.c.0.s8 %v2565
        %v2567 = vlaneseq
        %v2568 = vshrl.u32 %v2567, 7
        %v2569 = vsub.s32 %v2566, %v2568
        %v2570 = vrot.slane %v2519, %v2569
        %v2572 = vunpack.c.l.s4 1966171168
        %v2573 = vunpack.c.0.s8 %v2572
        %v2574 = vlaneseq
        %v2575 = vshrl.u32 %v2574, 7
        %v2576 = vsub.s32 %v2573, %v2575
        %v2577 = vrot.slane %v2521, %v2576
        %v2578 = vcombine.low %v2528, %v2556
        %v2579 = vcombine.high %v2528, %v2556
        %v2580 = vcombine.low %v2535, %v2563
        %v2581 = vcombine.high %v2535, %v2563
        %v2582 = vcombine.low %v2542, %v2570
        %v2583 = vcombine.high %v2542, %v2570
        %v2584 = vcombine.low %v2549, %v2577
        %v2585 = vcombine.high %v2549, %v2577
        %v2586 = vcombine.low %v1022, %v1030
        %v2587 = vcombine.high %v1022, %v1030
        %v2588 = vcombine.low %v1038, %v1046
        %v2589 = vcombine.high %v1038, %v1046
        %v2590 = vcombine.low %v1054, %v1062
        %v2591 = vcombine.high %v1054, %v1062
        %v2592 = vcombine.low %v1070, %v1078
        %v2593 = vcombine.high %v1070, %v1078
        %v2595 = vunpack.c.l.s4 1966171168
        %v2596 = vunpack.c.0.s8 %v2595
        %v2597 = vlaneseq
        %v2598 = vshrl.u32 %v2597, 7
        %v2599 = vsub.s32 %v2596, %v2598
        %v2600 = vrot.slane %v2586, %v2599
        %v2602 = vunpack.c.l.s4 1966171168
        %v2603 = vunpack.c.0.s8 %v2602
        %v2604 = vlaneseq
        %v2605 = vshrl.u32 %v2604, 7
        %v2606 = vsub.s32 %v2603, %v2605
        %v2607 = vrot.slane %v2587, %v2606
        %v2609 = vunpack.c.l.s4 1966171168
        %v2610 = vunpack.c.0.s8 %v2609
        %v2611 = vlaneseq
        %v2612 = vshrl.u32 %v2611, 7
        %v2613 = vsub.s32 %v2610, %v2612
        %v2614 = vrot.slane %v2588, %v2613
        %v2616 = vunpack.c.l.s4 1966171168
        %v2617 = vunpack.c.0.s8 %v2616
        %v2618 = vlaneseq
        %v2619 = vshrl.u32 %v2618, 7
        %v2620 = vsub.s32 %v2617, %v2619
        %v2621 = vrot.slane %v2589, %v2620
        %v2623 = vunpack.c.l.s4 1966171168
        %v2624 = vunpack.c.0.s8 %v2623
        %v2625 = vlaneseq
        %v2626 = vshrl.u32 %v2625, 7
        %v2627 = vsub.s32 %v2624, %v2626
        %v2628 = vrot.slane %v2590, %v2627
        %v2630 = vunpack.c.l.s4 1966171168
        %v2631 = vunpack.c.0.s8 %v2630
        %v2632 = vlaneseq
        %v2633 = vshrl.u32 %v2632, 7
        %v2634 = vsub.s32 %v2631, %v2633
        %v2635 = vrot.slane %v2591, %v2634
        %v2637 = vunpack.c.l.s4 1966171168
        %v2638 = vunpack.c.0.s8 %v2637
        %v2639 = vlaneseq
        %v2640 = vshrl.u32 %v2639, 7
        %v2641 = vsub.s32 %v2638, %v2640
        %v2642 = vrot.slane %v2592, %v2641
        %v2644 = vunpack.c.l.s4 1966171168
        %v2645 = vunpack.c.0.s8 %v2644
        %v2646 = vlaneseq
        %v2647 = vshrl.u32 %v2646, 7
        %v2648 = vsub.s32 %v2645, %v2647
        %v2649 = vrot.slane %v2593, %v2648
        %v2650 = vcombine.low %v2600, %v2614
        %v2651 = vcombine.high %v2600, %v2614
        %v2652 = vcombine.low %v2607, %v2621
        %v2653 = vcombine.high %v2607, %v2621
        %v2654 = vcombine.low %v2628, %v2642
        %v2655 = vcombine.high %v2628, %v2642
        %v2656 = vcombine.low %v2635, %v2649
        %v2657 = vcombine.high %v2635, %v2649
        %v2659 = vunpack.c.l.s4 1966171168
        %v2660 = vunpack.c.0.s8 %v2659
        %v2661 = vlaneseq
        %v2662 = vshrl.u32 %v2661, 7
        %v2663 = vsub.s32 %v2660, %v2662
        %v2664 = vrot.slane %v2650, %v2663
        %v2666 = vunpack.c.l.s4 1966171168
        %v2667 = vunpack.c.0.s8 %v2666
        %v2668 = vlaneseq
        %v2669 = vshrl.u32 %v2668, 7
        %v2670 = vsub.s32 %v2667, %v2669
        %v2671 = vrot.slane %v2652, %v2670
        %v2673 = vunpack.c.l.s4 1966171168
        %v2674 = vunpack.c.0.s8 %v2673
        %v2675 = vlaneseq
        %v2676 = vshrl.u32 %v2675, 7
        %v2677 = vsub.s32 %v2674, %v2676
        %v2678 = vrot.slane %v2651, %v2677
        %v2680 = vunpack.c.l.s4 1966171168
        %v2681 = vunpack.c.0.s8 %v2680
        %v2682 = vlaneseq
        %v2683 = vshrl.u32 %v2682, 7
        %v2684 = vsub.s32 %v2681, %v2683
        %v2685 = vrot.slane %v2653, %v2684
        %v2687 = vunpack.c.l.s4 1966171168
        %v2688 = vunpack.c.0.s8 %v2687
        %v2689 = vlaneseq
        %v2690 = vshrl.u32 %v2689, 7
        %v2691 = vsub.s32 %v2688, %v2690
        %v2692 = vrot.slane %v2654, %v2691
        %v2694 = vunpack.c.l.s4 1966171168
        %v2695 = vunpack.c.0.s8 %v2694
        %v2696 = vlaneseq
        %v2697 = vshrl.u32 %v2696, 7
        %v2698 = vsub.s32 %v2695, %v2697
        %v2699 = vrot.slane %v2656, %v2698
        %v2701 = vunpack.c.l.s4 1966171168
        %v2702 = vunpack.c.0.s8 %v2701
        %v2703 = vlaneseq
        %v2704 = vshrl.u32 %v2703, 7
        %v2705 = vsub.s32 %v2702, %v2704
        %v2706 = vrot.slane %v2655, %v2705
        %v2708 = vunpack.c.l.s4 1966171168
        %v2709 = vunpack.c.0.s8 %v2708
        %v2710 = vlaneseq
        %v2711 = vshrl.u32 %v2710, 7
        %v2712 = vsub.s32 %v2709, %v2711
        %v2713 = vrot.slane %v2657, %v2712
        %v2714 = vcombine.low %v2664, %v2692
        %v2715 = vcombine.high %v2664, %v2692
        %v2716 = vcombine.low %v2671, %v2699
        %v2717 = vcombine.high %v2671, %v2699
        %v2718 = vcombine.low %v2678, %v2706
        %v2719 = vcombine.high %v2678, %v2706
        %v2720 = vcombine.low %v2685, %v2713
        %v2721 = vcombine.high %v2685, %v2713
        %v2722 = vcombine.low %v1023, %v1031
        %v2723 = vcombine.high %v1023, %v1031
        %v2724 = vcombine.low %v1039, %v1047
        %v2725 = vcombine.high %v1039, %v1047
        %v2726 = vcombine.low %v1055, %v1063
        %v2727 = vcombine.high %v1055, %v1063
        %v2728 = vcombine.low %v1071, %v1079
        %v2729 = vcombine.high %v1071, %v1079
        %v2731 = vunpack.c.l.s4 1966171168
        %v2732 = vunpack.c.0.s8 %v2731
        %v2733 = vlaneseq
        %v2734 = vshrl.u32 %v2733, 7
        %v2735 = vsub.s32 %v2732, %v2734
        %v2736 = vrot.slane %v2722, %v2735
        %v2738 = vunpack.c.l.s4 1966171168
        %v2739 = vunpack.c.0.s8 %v2738
        %v2740 = vlaneseq
        %v2741 = vshrl.u32 %v2740, 7
        %v2742 = vsub.s32 %v2739, %v2741
        %v2743 = vrot.slane %v2723, %v2742
        %v2745 = vunpack.c.l.s4 1966171168
        %v2746 = vunpack.c.0.s8 %v2745
        %v2747 = vlaneseq
        %v2748 = vshrl.u32 %v2747, 7
        %v2749 = vsub.s32 %v2746, %v2748
        %v2750 = vrot.slane %v2724, %v2749
        %v2752 = vunpack.c.l.s4 1966171168
        %v2753 = vunpack.c.0.s8 %v2752
        %v2754 = vlaneseq
        %v2755 = vshrl.u32 %v2754, 7
        %v2756 = vsub.s32 %v2753, %v2755
        %v2757 = vrot.slane %v2725, %v2756
        %v2759 = vunpack.c.l.s4 1966171168
        %v2760 = vunpack.c.0.s8 %v2759
        %v2761 = vlaneseq
        %v2762 = vshrl.u32 %v2761, 7
        %v2763 = vsub.s32 %v2760, %v2762
        %v2764 = vrot.slane %v2726, %v2763
        %v2766 = vunpack.c.l.s4 1966171168
        %v2767 = vunpack.c.0.s8 %v2766
        %v2768 = vlaneseq
        %v2769 = vshrl.u32 %v2768, 7
        %v2770 = vsub.s32 %v2767, %v2769
        %v2771 = vrot.slane %v2727, %v2770
        %v2773 = vunpack.c.l.s4 1966171168
        %v2774 = vunpack.c.0.s8 %v2773
        %v2775 = vlaneseq
        %v2776 = vshrl.u32 %v2775, 7
        %v2777 = vsub.s32 %v2774, %v2776
        %v2778 = vrot.slane %v2728, %v2777
        %v2780 = vunpack.c.l.s4 1966171168
        %v2781 = vunpack.c.0.s8 %v2780
        %v2782 = vlaneseq
        %v2783 = vshrl.u32 %v2782, 7
        %v2784 = vsub.s32 %v2781, %v2783
        %v2785 = vrot.slane %v2729, %v2784
        %v2786 = vcombine.low %v2736, %v2750
        %v2787 = vcombine.high %v2736, %v2750
        %v2788 = vcombine.low %v2743, %v2757
        %v2789 = vcombine.high %v2743, %v2757
        %v2790 = vcombine.low %v2764, %v2778
        %v2791 = vcombine.high %v2764, %v2778
        %v2792 = vcombine.low %v2771, %v2785
        %v2793 = vcombine.high %v2771, %v2785
        %v2795 = vunpack.c.l.s4 1966171168
        %v2796 = vunpack.c.0.s8 %v2795
        %v2797 = vlaneseq
        %v2798 = vshrl.u32 %v2797, 7
        %v2799 = vsub.s32 %v2796, %v2798
        %v2800 = vrot.slane %v2786, %v2799
        %v2802 = vunpack.c.l.s4 1966171168
        %v2803 = vunpack.c.0.s8 %v2802
        %v2804 = vlaneseq
        %v2805 = vshrl.u32 %v2804, 7
        %v2806 = vsub.s32 %v2803, %v2805
        %v2807 = vrot.slane %v2788, %v2806
        %v2809 = vunpack.c.l.s4 1966171168
        %v2810 = vunpack.c.0.s8 %v2809
        %v2811 = vlaneseq
        %v2812 = vshrl.u32 %v2811, 7
        %v2813 = vsub.s32 %v2810, %v2812
        %v2814 = vrot.slane %v2787, %v2813
        %v2816 = vunpack.c.l.s4 1966171168
        %v2817 = vunpack.c.0.s8 %v2816
        %v2818 = vlaneseq
        %v2819 = vshrl.u32 %v2818, 7
        %v2820 = vsub.s32 %v2817, %v2819
        %v2821 = vrot.slane %v2789, %v2820
        %v2823 = vunpack.c.l.s4 1966171168
        %v2824 = vunpack.c.0.s8 %v2823
        %v2825 = vlaneseq
        %v2826 = vshrl.u32 %v2825, 7
        %v2827 = vsub.s32 %v2824, %v2826
        %v2828 = vrot.slane %v2790, %v2827
        %v2830 = vunpack.c.l.s4 1966171168
        %v2831 = vunpack.c.0.s8 %v2830
        %v2832 = vlaneseq
        %v2833 = vshrl.u32 %v2832, 7
        %v2834 = vsub.s32 %v2831, %v2833
        %v2835 = vrot.slane %v2792, %v2834
        %v2837 = vunpack.c.l.s4 1966171168
        %v2838 = vunpack.c.0.s8 %v2837
        %v2839 = vlaneseq
        %v2840 = vshrl.u32 %v2839, 7
        %v2841 = vsub.s32 %v2838, %v2840
        %v2842 = vrot.slane %v2791, %v2841
        %v2844 = vunpack.c.l.s4 1966171168
        %v2845 = vunpack.c.0.s8 %v2844
        %v2846 = vlaneseq
        %v2847 = vshrl.u32 %v2846, 7
        %v2848 = vsub.s32 %v2845, %v2847
        %v2849 = vrot.slane %v2793, %v2848
        %v2850 = vcombine.low %v2800, %v2828
        %v2851 = vcombine.high %v2800, %v2828
        %v2852 = vcombine.low %v2807, %v2835
        %v2853 = vcombine.high %v2807, %v2835
        %v2854 = vcombine.low %v2814, %v2842
        %v2855 = vcombine.high %v2814, %v2842
        %v2856 = vcombine.low %v2821, %v2849
        %v2857 = vcombine.high %v2821, %v2849
        %v2858 = vcombine.low %v1024, %v1032
        %v2859 = vcombine.high %v1024, %v1032
        %v2860 = vcombine.low %v1040, %v1048
        %v2861 = vcombine.high %v1040, %v1048
        %v2862 = vcombine.low %v1056, %v1064
        %v2863 = vcombine.high %v1056, %v1064
        %v2864 = vcombine.low %v1072, %v1080
        %v2865 = vcombine.high %v1072, %v1080
        %v2867 = vunpack.c.l.s4 1966171168
        %v2868 = vunpack.c.0.s8 %v2867
        %v2869 = vlaneseq
        %v2870 = vshrl.u32 %v2869, 7
        %v2871 = vsub.s32 %v2868, %v2870
        %v2872 = vrot.slane %v2858, %v2871
        %v2874 = vunpack.c.l.s4 1966171168
        %v2875 = vunpack.c.0.s8 %v2874
        %v2876 = vlaneseq
        %v2877 = vshrl.u32 %v2876, 7
        %v2878 = vsub.s32 %v2875, %v2877
        %v2879 = vrot.slane %v2859, %v2878
        %v2881 = vunpack.c.l.s4 1966171168
        %v2882 = vunpack.c.0.s8 %v2881
        %v2883 = vlaneseq
        %v2884 = vshrl.u32 %v2883, 7
        %v2885 = vsub.s32 %v2882, %v2884
        %v2886 = vrot.slane %v2860, %v2885
        %v2888 = vunpack.c.l.s4 1966171168
        %v2889 = vunpack.c.0.s8 %v2888
        %v2890 = vlaneseq
        %v2891 = vshrl.u32 %v2890, 7
        %v2892 = vsub.s32 %v2889, %v2891
        %v2893 = vrot.slane %v2861, %v2892
        %v2895 = vunpack.c.l.s4 1966171168
        %v2896 = vunpack.c.0.s8 %v2895
        %v2897 = vlaneseq
        %v2898 = vshrl.u32 %v2897, 7
        %v2899 = vsub.s32 %v2896, %v2898
        %v2900 = vrot.slane %v2862, %v2899
        %v2902 = vunpack.c.l.s4 1966171168
        %v2903 = vunpack.c.0.s8 %v2902
        %v2904 = vlaneseq
        %v2905 = vshrl.u32 %v2904, 7
        %v2906 = vsub.s32 %v2903, %v2905
        %v2907 = vrot.slane %v2863, %v2906
        %v2909 = vunpack.c.l.s4 1966171168
        %v2910 = vunpack.c.0.s8 %v2909
        %v2911 = vlaneseq
        %v2912 = vshrl.u32 %v2911, 7
        %v2913 = vsub.s32 %v2910, %v2912
        %v2914 = vrot.slane %v2864, %v2913
        %v2916 = vunpack.c.l.s4 1966171168
        %v2917 = vunpack.c.0.s8 %v2916
        %v2918 = vlaneseq
        %v2919 = vshrl.u32 %v2918, 7
        %v2920 = vsub.s32 %v2917, %v2919
        %v2921 = vrot.slane %v2865, %v2920
        %v2922 = vcombine.low %v2872, %v2886
        %v2923 = vcombine.high %v2872, %v2886
        %v2924 = vcombine.low %v2879, %v2893
        %v2925 = vcombine.high %v2879, %v2893
        %v2926 = vcombine.low %v2900, %v2914
        %v2927 = vcombine.high %v2900, %v2914
        %v2928 = vcombine.low %v2907, %v2921
        %v2929 = vcombine.high %v2907, %v2921
        %v2931 = vunpack.c.l.s4 1966171168
        %v2932 = vunpack.c.0.s8 %v2931
        %v2933 = vlaneseq
        %v2934 = vshrl.u32 %v2933, 7
        %v2935 = vsub.s32 %v2932, %v2934
        %v2936 = vrot.slane %v2922, %v2935
        %v2938 = vunpack.c.l.s4 1966171168
        %v2939 = vunpack.c.0.s8 %v2938
        %v2940 = vlaneseq
        %v2941 = vshrl.u32 %v2940, 7
        %v2942 = vsub.s32 %v2939, %v2941
        %v2943 = vrot.slane %v2924, %v2942
        %v2945 = vunpack.c.l.s4 1966171168
        %v2946 = vunpack.c.0.s8 %v2945
        %v2947 = vlaneseq
        %v2948 = vshrl.u32 %v2947, 7
        %v2949 = vsub.s32 %v2946, %v2948
        %v2950 = vrot.slane %v2923, %v2949
        %v2952 = vunpack.c.l.s4 1966171168
        %v2953 = vunpack.c.0.s8 %v2952
        %v2954 = vlaneseq
        %v2955 = vshrl.u32 %v2954, 7
        %v2956 = vsub.s32 %v2953, %v2955
        %v2957 = vrot.slane %v2925, %v2956
        %v2959 = vunpack.c.l.s4 1966171168
        %v2960 = vunpack.c.0.s8 %v2959
        %v2961 = vlaneseq
        %v2962 = vshrl.u32 %v2961, 7
        %v2963 = vsub.s32 %v2960, %v2962
        %v2964 = vrot.slane %v2926, %v2963
        %v2966 = vunpack.c.l.s4 1966171168
        %v2967 = vunpack.c.0.s8 %v2966
        %v2968 = vlaneseq
        %v2969 = vshrl.u32 %v2968, 7
        %v2970 = vsub.s32 %v2967, %v2969
        %v2971 = vrot.slane %v2928, %v2970
        %v2973 = vunpack.c.l.s4 1966171168
        %v2974 = vunpack.c.0.s8 %v2973
        %v2975 = vlaneseq
        %v2976 = vshrl.u32 %v2975, 7
        %v2977 = vsub.s32 %v2974, %v2976
        %v2978 = vrot.slane %v2927, %v2977
        %v2980 = vunpack.c.l.s4 1966171168
        %v2981 = vunpack.c.0.s8 %v2980
        %v2982 = vlaneseq
        %v2983 = vshrl.u32 %v2982, 7
        %v2984 = vsub.s32 %v2981, %v2983
        %v2985 = vrot.slane %v2929, %v2984
        %v2986 = vcombine.low %v2936, %v2964
        %v2987 = vcombine.high %v2936, %v2964
        %v2988 = vcombine.low %v2943, %v2971
        %v2989 = vcombine.high %v2943, %v2971
        %v2990 = vcombine.low %v2950, %v2978
        %v2991 = vcombine.high %v2950, %v2978
        %v2992 = vcombine.low %v2957, %v2985
        %v2993 = vcombine.high %v2957, %v2985
        %v2994 = vcombine.low %v1025, %v1033
        %v2995 = vcombine.high %v1025, %v1033
        %v2996 = vcombine.low %v1041, %v1049
        %v2997 = vcombine.high %v1041, %v1049
        %v2998 = vcombine.low %v1057, %v1065
        %v2999 = vcombine.high %v1057, %v1065
        %v3000 = vcombine.low %v1073, %v1081
        %v3001 = vcombine.high %v1073, %v1081
        %v3003 = vunpack.c.l.s4 1966171168
        %v3004 = vunpack.c.0.s8 %v3003
        %v3005 = vlaneseq
        %v3006 = vshrl.u32 %v3005, 7
        %v3007 = vsub.s32 %v3004, %v3006
        %v3008 = vrot.slane %v2994, %v3007
        %v3010 = vunpack.c.l.s4 1966171168
        %v3011 = vunpack.c.0.s8 %v3010
        %v3012 = vlaneseq
        %v3013 = vshrl.u32 %v3012, 7
        %v3014 = vsub.s32 %v3011, %v3013
        %v3015 = vrot.slane %v2995, %v3014
        %v3017 = vunpack.c.l.s4 1966171168
        %v3018 = vunpack.c.0.s8 %v3017
        %v3019 = vlaneseq
        %v3020 = vshrl.u32 %v3019, 7
        %v3021 = vsub.s32 %v3018, %v3020
        %v3022 = vrot.slane %v2996, %v3021
        %v3024 = vunpack.c.l.s4 1966171168
        %v3025 = vunpack.c.0.s8 %v3024
        %v3026 = vlaneseq
        %v3027 = vshrl.u32 %v3026, 7
        %v3028 = vsub.s32 %v3025, %v3027
        %v3029 = vrot.slane %v2997, %v3028
        %v3031 = vunpack.c.l.s4 1966171168
        %v3032 = vunpack.c.0.s8 %v3031
        %v3033 = vlaneseq
        %v3034 = vshrl.u32 %v3033, 7
        %v3035 = vsub.s32 %v3032, %v3034
        %v3036 = vrot.slane %v2998, %v3035
        %v3038 = vunpack.c.l.s4 1966171168
        %v3039 = vunpack.c.0.s8 %v3038
        %v3040 = vlaneseq
        %v3041 = vshrl.u32 %v3040, 7
        %v3042 = vsub.s32 %v3039, %v3041
        %v3043 = vrot.slane %v2999, %v3042
        %v3045 = vunpack.c.l.s4 1966171168
        %v3046 = vunpack.c.0.s8 %v3045
        %v3047 = vlaneseq
        %v3048 = vshrl.u32 %v3047, 7
        %v3049 = vsub.s32 %v3046, %v3048
        %v3050 = vrot.slane %v3000, %v3049
        %v3052 = vunpack.c.l.s4 1966171168
        %v3053 = vunpack.c.0.s8 %v3052
        %v3054 = vlaneseq
        %v3055 = vshrl.u32 %v3054, 7
        %v3056 = vsub.s32 %v3053, %v3055
        %v3057 = vrot.slane %v3001, %v3056
        %v3058 = vcombine.low %v3008, %v3022
        %v3059 = vcombine.high %v3008, %v3022
        %v3060 = vcombine.low %v3015, %v3029
        %v3061 = vcombine.high %v3015, %v3029
        %v3062 = vcombine.low %v3036, %v3050
        %v3063 = vcombine.high %v3036, %v3050
        %v3064 = vcombine.low %v3043, %v3057
        %v3065 = vcombine.high %v3043, %v3057
        %v3067 = vunpack.c.l.s4 1966171168
        %v3068 = vunpack.c.0.s8 %v3067
        %v3069 = vlaneseq
        %v3070 = vshrl.u32 %v3069, 7
        %v3071 = vsub.s32 %v3068, %v3070
        %v3072 = vrot.slane %v3058, %v3071
        %v3074 = vunpack.c.l.s4 1966171168
        %v3075 = vunpack.c.0.s8 %v3074
        %v3076 = vlaneseq
        %v3077 = vshrl.u32 %v3076, 7
        %v3078 = vsub.s32 %v3075, %v3077
        %v3079 = vrot.slane %v3060, %v3078
        %v3081 = vunpack.c.l.s4 1966171168
        %v3082 = vunpack.c.0.s8 %v3081
        %v3083 = vlaneseq
        %v3084 = vshrl.u32 %v3083, 7
        %v3085 = vsub.s32 %v3082, %v3084
        %v3086 = vrot.slane %v3059, %v3085
        %v3088 = vunpack.c.l.s4 1966171168
        %v3089 = vunpack.c.0.s8 %v3088
        %v3090 = vlaneseq
        %v3091 = vshrl.u32 %v3090, 7
        %v3092 = vsub.s32 %v3089, %v3091
        %v3093 = vrot.slane %v3061, %v3092
        %v3095 = vunpack.c.l.s4 1966171168
        %v3096 = vunpack.c.0.s8 %v3095
        %v3097 = vlaneseq
        %v3098 = vshrl.u32 %v3097, 7
        %v3099 = vsub.s32 %v3096, %v3098
        %v3100 = vrot.slane %v3062, %v3099
        %v3102 = vunpack.c.l.s4 1966171168
        %v3103 = vunpack.c.0.s8 %v3102
        %v3104 = vlaneseq
        %v3105 = vshrl.u32 %v3104, 7
        %v3106 = vsub.s32 %v3103, %v3105
        %v3107 = vrot.slane %v3064, %v3106
        %v3109 = vunpack.c.l.s4 1966171168
        %v3110 = vunpack.c.0.s8 %v3109
        %v3111 = vlaneseq
        %v3112 = vshrl.u32 %v3111, 7
        %v3113 = vsub.s32 %v3110, %v3112
        %v3114 = vrot.slane %v3063, %v3113
        %v3116 = vunpack.c.l.s4 1966171168
        %v3117 = vunpack.c.0.s8 %v3116
        %v3118 = vlaneseq
        %v3119 = vshrl.u32 %v3118, 7
        %v3120 = vsub.s32 %v3117, %v3119
        %v3121 = vrot.slane %v3065, %v3120
        %v3122 = vcombine.low %v3072, %v3100
        %v3123 = vcombine.high %v3072, %v3100
        %v3124 = vcombine.low %v3079, %v3107
        %v3125 = vcombine.high %v3079, %v3107
        %v3126 = vcombine.low %v3086, %v3114
        %v3127 = vcombine.high %v3086, %v3114
        %v3128 = vcombine.low %v3093, %v3121
        %v3129 = vcombine.high %v3093, %v3121
        %v3130 = vcombine.low %v1026, %v1034
        %v3131 = vcombine.high %v1026, %v1034
        %v3132 = vcombine.low %v1042, %v1050
        %v3133 = vcombine.high %v1042, %v1050
        %v3134 = vcombine.low %v1058, %v1066
        %v3135 = vcombine.high %v1058, %v1066
        %v3136 = vcombine.low %v1074, %v1082
        %v3137 = vcombine.high %v1074, %v1082
        %v3139 = vunpack.c.l.s4 1966171168
        %v3140 = vunpack.c.0.s8 %v3139
        %v3141 = vlaneseq
        %v3142 = vshrl.u32 %v3141, 7
        %v3143 = vsub.s32 %v3140, %v3142
        %v3144 = vrot.slane %v3130, %v3143
        %v3146 = vunpack.c.l.s4 1966171168
        %v3147 = vunpack.c.0.s8 %v3146
        %v3148 = vlaneseq
        %v3149 = vshrl.u32 %v3148, 7
        %v3150 = vsub.s32 %v3147, %v3149
        %v3151 = vrot.slane %v3131, %v3150
        %v3153 = vunpack.c.l.s4 1966171168
        %v3154 = vunpack.c.0.s8 %v3153
        %v3155 = vlaneseq
        %v3156 = vshrl.u32 %v3155, 7
        %v3157 = vsub.s32 %v3154, %v3156
        %v3158 = vrot.slane %v3132, %v3157
        %v3160 = vunpack.c.l.s4 1966171168
        %v3161 = vunpack.c.0.s8 %v3160
        %v3162 = vlaneseq
        %v3163 = vshrl.u32 %v3162, 7
        %v3164 = vsub.s32 %v3161, %v3163
        %v3165 = vrot.slane %v3133, %v3164
        %v3167 = vunpack.c.l.s4 1966171168
        %v3168 = vunpack.c.0.s8 %v3167
        %v3169 = vlaneseq
        %v3170 = vshrl.u32 %v3169, 7
        %v3171 = vsub.s32 %v3168, %v3170
        %v3172 = vrot.slane %v3134, %v3171
        %v3174 = vunpack.c.l.s4 1966171168
        %v3175 = vunpack.c.0.s8 %v3174
        %v3176 = vlaneseq
        %v3177 = vshrl.u32 %v3176, 7
        %v3178 = vsub.s32 %v3175, %v3177
        %v3179 = vrot.slane %v3135, %v3178
        %v3181 = vunpack.c.l.s4 1966171168
        %v3182 = vunpack.c.0.s8 %v3181
        %v3183 = vlaneseq
        %v3184 = vshrl.u32 %v3183, 7
        %v3185 = vsub.s32 %v3182, %v3184
        %v3186 = vrot.slane %v3136, %v3185
        %v3188 = vunpack.c.l.s4 1966171168
        %v3189 = vunpack.c.0.s8 %v3188
        %v3190 = vlaneseq
        %v3191 = vshrl.u32 %v3190, 7
        %v3192 = vsub.s32 %v3189, %v3191
        %v3193 = vrot.slane %v3137, %v3192
        %v3194 = vcombine.low %v3144, %v3158
        %v3195 = vcombine.high %v3144, %v3158
        %v3196 = vcombine.low %v3151, %v3165
        %v3197 = vcombine.high %v3151, %v3165
        %v3198 = vcombine.low %v3172, %v3186
        %v3199 = vcombine.high %v3172, %v3186
        %v3200 = vcombine.low %v3179, %v3193
        %v3201 = vcombine.high %v3179, %v3193
        %v3203 = vunpack.c.l.s4 1966171168
        %v3204 = vunpack.c.0.s8 %v3203
        %v3205 = vlaneseq
        %v3206 = vshrl.u32 %v3205, 7
        %v3207 = vsub.s32 %v3204, %v3206
        %v3208 = vrot.slane %v3194, %v3207
        %v3210 = vunpack.c.l.s4 1966171168
        %v3211 = vunpack.c.0.s8 %v3210
        %v3212 = vlaneseq
        %v3213 = vshrl.u32 %v3212, 7
        %v3214 = vsub.s32 %v3211, %v3213
        %v3215 = vrot.slane %v3196, %v3214
        %v3217 = vunpack.c.l.s4 1966171168
        %v3218 = vunpack.c.0.s8 %v3217
        %v3219 = vlaneseq
        %v3220 = vshrl.u32 %v3219, 7
        %v3221 = vsub.s32 %v3218, %v3220
        %v3222 = vrot.slane %v3195, %v3221
        %v3224 = vunpack.c.l.s4 1966171168
        %v3225 = vunpack.c.0.s8 %v3224
        %v3226 = vlaneseq
        %v3227 = vshrl.u32 %v3226, 7
        %v3228 = vsub.s32 %v3225, %v3227
        %v3229 = vrot.slane %v3197, %v3228
        %v3231 = vunpack.c.l.s4 1966171168
        %v3232 = vunpack.c.0.s8 %v3231
        %v3233 = vlaneseq
        %v3234 = vshrl.u32 %v3233, 7
        %v3235 = vsub.s32 %v3232, %v3234
        %v3236 = vrot.slane %v3198, %v3235
        %v3238 = vunpack.c.l.s4 1966171168
        %v3239 = vunpack.c.0.s8 %v3238
        %v3240 = vlaneseq
        %v3241 = vshrl.u32 %v3240, 7
        %v3242 = vsub.s32 %v3239, %v3241
        %v3243 = vrot.slane %v3200, %v3242
        %v3245 = vunpack.c.l.s4 1966171168
        %v3246 = vunpack.c.0.s8 %v3245
        %v3247 = vlaneseq
        %v3248 = vshrl.u32 %v3247, 7
        %v3249 = vsub.s32 %v3246, %v3248
        %v3250 = vrot.slane %v3199, %v3249
        %v3252 = vunpack.c.l.s4 1966171168
        %v3253 = vunpack.c.0.s8 %v3252
        %v3254 = vlaneseq
        %v3255 = vshrl.u32 %v3254, 7
        %v3256 = vsub.s32 %v3253, %v3255
        %v3257 = vrot.slane %v3201, %v3256
        %v3258 = vcombine.low %v3208, %v3236
        %v3259 = vcombine.high %v3208, %v3236
        %v3260 = vcombine.low %v3215, %v3243
        %v3261 = vcombine.high %v3215, %v3243
        %v3262 = vcombine.low %v3222, %v3250
        %v3263 = vcombine.high %v3222, %v3250
        %v3264 = vcombine.low %v3229, %v3257
        %v3265 = vcombine.high %v3229, %v3257
        %3330 = vmatprep.subr.mxu0 0.0
        %3331 = vmatpush1.msra.mxu0 %v1083
        %3332 = vmatprep.subr.mxu0 0.0
        %3333 = vmatpush1.msra.mxu0 %v1084
        %3334 = vmatprep.subr.mxu0 0.0
        %3335 = vmatpush1.msra.mxu0 %v1085
        %3336 = vmatprep.subr.mxu0 0.0
        %3337 = vmatpush1.msra.mxu0 %v1086
        %3338 = vmatprep.subr.mxu0 0.0
        %3339 = vmatpush1.msra.mxu0 %v1087
        %3340 = vmatprep.subr.mxu0 0.0
        %3341 = vmatpush1.msra.mxu0 %v1088
        %3342 = vmatprep.subr.mxu0 0.0
        %3343 = vmatpush1.msra.mxu0 %v1089
        %3344 = vmatprep.subr.mxu0 0.0
        %3345 = vmatpush1.msra.mxu0 %v1090
        %3346 = vmatprep.subr.mxu0 0.0
        %3347 = vmatpush1.msra.mxu0 %v1091
        %3348 = vmatprep.subr.mxu0 0.0
        %3349 = vmatpush1.msra.mxu0 %v1092
        %3350 = vmatprep.subr.mxu0 0.0
        %3351 = vmatpush1.msra.mxu0 %v1093
        %3352 = vmatprep.subr.mxu0 0.0
        %3353 = vmatpush1.msra.mxu0 %v1094
        %3354 = vmatprep.subr.mxu0 0.0
        %3355 = vmatpush1.msra.mxu0 %v1095
        %3356 = vmatprep.subr.mxu0 0.0
        %3357 = vmatpush1.msra.mxu0 %v1096
        %3358 = vmatprep.subr.mxu0 0.0
        %3359 = vmatpush1.msra.mxu0 %v1097
        %3360 = vmatprep.subr.mxu0 0.0
        %3361 = vmatpush1.msra.mxu0 %v1098
        %3362 = vmatprep.subr.mxu0 0.0
        %3363 = vmatpush1.msra.mxu0 %v1099
        %3364 = vmatprep.subr.mxu0 0.0
        %3365 = vmatpush1.msra.mxu0 %v1100
        %3366 = vmatprep.subr.mxu0 0.0
        %3367 = vmatpush1.msra.mxu0 %v1101
        %3368 = vmatprep.subr.mxu0 0.0
        %3369 = vmatpush1.msra.mxu0 %v1102
        %3370 = vmatprep.subr.mxu0 0.0
        %3371 = vmatpush1.msra.mxu0 %v1103
        %3372 = vmatprep.subr.mxu0 0.0
        %3373 = vmatpush1.msra.mxu0 %v1104
        %3374 = vmatprep.subr.mxu0 0.0
        %3375 = vmatpush1.msra.mxu0 %v1105
        %3376 = vmatprep.subr.mxu0 0.0
        %3377 = vmatpush1.msra.mxu0 %v1106
        %3378 = vmatprep.subr.mxu0 0.0
        %3379 = vmatpush1.msra.mxu0 %v1107
        %3380 = vmatprep.subr.mxu0 0.0
        %3381 = vmatpush1.msra.mxu0 %v1108
        %3382 = vmatprep.subr.mxu0 0.0
        %3383 = vmatpush1.msra.mxu0 %v1109
        %3384 = vmatprep.subr.mxu0 0.0
        %3385 = vmatpush1.msra.mxu0 %v1110
        %3386 = vmatprep.subr.mxu0 0.0
        %3387 = vmatpush1.msra.mxu0 %v1111
        %3388 = vmatprep.subr.mxu0 0.0
        %3389 = vmatpush1.msra.mxu0 %v1112
        %3390 = vmatprep.subr.mxu0 0.0
        %3391 = vmatpush1.msra.mxu0 %v1113
        %3392 = vmatprep.subr.mxu0 0.0
        %3393 = vmatpush1.msra.mxu0 %v1114
        %3394 = vmatprep.mubr.f32.mxu0 %v2310
        %3395 = vmatmul.mubr.f32.gmra.mrb[0].mxu0 %v2306
        %v3396 = vpop.f32.mrb[0].mxu0
        %v3397 = vadd.f32 %v2112, %v3396
        %v3398 = vpop.f32.mrb[0].mxu0
        %3399 = vdwg.mxu0
        %3400 = vmatprep.subr.mxu0 0.0
        %3401 = vmatpush1.msra.mxu0 %v1115
        %3402 = vmatprep.subr.mxu0 0.0
        %3403 = vmatpush1.msra.mxu0 %v1116
        %3404 = vmatprep.subr.mxu0 0.0
        %3405 = vmatpush1.msra.mxu0 %v1117
        %3406 = vmatprep.subr.mxu0 0.0
        %3407 = vmatpush1.msra.mxu0 %v1118
        %3408 = vmatprep.subr.mxu0 0.0
        %3409 = vmatpush1.msra.mxu0 %v1119
        %3410 = vmatprep.subr.mxu0 0.0
        %3411 = vmatpush1.msra.mxu0 %v1120
        %3412 = vmatprep.subr.mxu0 0.0
        %3413 = vmatpush1.msra.mxu0 %v1121
        %3414 = vmatprep.subr.mxu0 0.0
        %3415 = vmatpush1.msra.mxu0 %v1122
        %3416 = vmatprep.subr.mxu0 0.0
        %3417 = vmatpush1.msra.mxu0 %v1123
        %3418 = vmatprep.subr.mxu0 0.0
        %3419 = vmatpush1.msra.mxu0 %v1124
        %3420 = vmatprep.subr.mxu0 0.0
        %3421 = vmatpush1.msra.mxu0 %v1125
        %3422 = vmatprep.subr.mxu0 0.0
        %3423 = vmatpush1.msra.mxu0 %v1126
        %3424 = vmatprep.subr.mxu0 0.0
        %3425 = vmatpush1.msra.mxu0 %v1127
        %3426 = vmatprep.subr.mxu0 0.0
        %3427 = vmatpush1.msra.mxu0 %v1128
        %3428 = vmatprep.subr.mxu0 0.0
        %3429 = vmatpush1.msra.mxu0 %v1129
        %3430 = vmatprep.subr.mxu0 0.0
        %3431 = vmatpush1.msra.mxu0 %v1130
        %3432 = vmatprep.subr.mxu0 0.0
        %3433 = vmatpush1.msra.mxu0 %v1131
        %3434 = vmatprep.subr.mxu0 0.0
        %3435 = vmatpush1.msra.mxu0 %v1132
        %3436 = vmatprep.subr.mxu0 0.0
        %3437 = vmatpush1.msra.mxu0 %v1133
        %3438 = vmatprep.subr.mxu0 0.0
        %3439 = vmatpush1.msra.mxu0 %v1134
        %3440 = vmatprep.subr.mxu0 0.0
        %3441 = vmatpush1.msra.mxu0 %v1135
        %3442 = vmatprep.subr.mxu0 0.0
        %3443 = vmatpush1.msra.mxu0 %v1136
        %3444 = vmatprep.subr.mxu0 0.0
        %3445 = vmatpush1.msra.mxu0 %v1137
        %3446 = vmatprep.subr.mxu0 0.0
        %3447 = vmatpush1.msra.mxu0 %v1138
        %3448 = vmatprep.subr.mxu0 0.0
        %3449 = vmatpush1.msra.mxu0 %v1139
        %3450 = vmatprep.subr.mxu0 0.0
        %3451 = vmatpush1.msra.mxu0 %v1140
        %3452 = vmatprep.subr.mxu0 0.0
        %3453 = vmatpush1.msra.mxu0 %v1141
        %3454 = vmatprep.subr.mxu0 0.0
        %3455 = vmatpush1.msra.mxu0 %v1142
        %3456 = vmatprep.subr.mxu0 0.0
        %3457 = vmatpush1.msra.mxu0 %v1143
        %3458 = vmatprep.subr.mxu0 0.0
        %3459 = vmatpush1.msra.mxu0 %v1144
        %3460 = vmatprep.subr.mxu0 0.0
        %3461 = vmatpush1.msra.mxu0 %v1145
        %3462 = vmatprep.subr.mxu0 0.0
        %3463 = vmatpush1.msra.mxu0 %v1146
        %3464 = vmatprep.mubr.f32.mxu0 %v2311
        %3465 = vmatmul.mubr.f32.gmra.mrb[0].mxu0 %v2307
        %v3466 = vpop.f32.mrb[0].mxu0
        %v3467 = vadd.f32 %v3397, %v3466
        %v3468 = vpop.f32.mrb[0].mxu0
        %3469 = vdwg.mxu0
        %3470 = vmatprep.subr.mxu0 0.0
        %3471 = vmatpush1.msra.mxu0 %v1147
        %3472 = vmatprep.subr.mxu0 0.0
        %3473 = vmatpush1.msra.mxu0 %v1148
        %3474 = vmatprep.subr.mxu0 0.0
        %3475 = vmatpush1.msra.mxu0 %v1149
        %3476 = vmatprep.subr.mxu0 0.0
        %3477 = vmatpush1.msra.mxu0 %v1150
        %3478 = vmatprep.subr.mxu0 0.0
        %3479 = vmatpush1.msra.mxu0 %v1151
        %3480 = vmatprep.subr.mxu0 0.0
        %3481 = vmatpush1.msra.mxu0 %v1152
        %3482 = vmatprep.subr.mxu0 0.0
        %3483 = vmatpush1.msra.mxu0 %v1153
        %3484 = vmatprep.subr.mxu0 0.0
        %3485 = vmatpush1.msra.mxu0 %v1154
        %3486 = vmatprep.subr.mxu0 0.0
        %3487 = vmatpush1.msra.mxu0 %v1155
        %3488 = vmatprep.subr.mxu0 0.0
        %3489 = vmatpush1.msra.mxu0 %v1156
        %3490 = vmatprep.subr.mxu0 0.0
        %3491 = vmatpush1.msra.mxu0 %v1157
        %3492 = vmatprep.subr.mxu0 0.0
        %3493 = vmatpush1.msra.mxu0 %v1158
        %3494 = vmatprep.subr.mxu0 0.0
        %3495 = vmatpush1.msra.mxu0 %v1159
        %3496 = vmatprep.subr.mxu0 0.0
        %3497 = vmatpush1.msra.mxu0 %v1160
        %3498 = vmatprep.subr.mxu0 0.0
        %3499 = vmatpush1.msra.mxu0 %v1161
        %3500 = vmatprep.subr.mxu0 0.0
        %3501 = vmatpush1.msra.mxu0 %v1162
        %3502 = vmatprep.subr.mxu0 0.0
        %3503 = vmatpush1.msra.mxu0 %v1163
        %3504 = vmatprep.subr.mxu0 0.0
        %3505 = vmatpush1.msra.mxu0 %v1164
        %3506 = vmatprep.subr.mxu0 0.0
        %3507 = vmatpush1.msra.mxu0 %v1165
        %3508 = vmatprep.subr.mxu0 0.0
        %3509 = vmatpush1.msra.mxu0 %v1166
        %3510 = vmatprep.subr.mxu0 0.0
        %3511 = vmatpush1.msra.mxu0 %v1167
        %3512 = vmatprep.subr.mxu0 0.0
        %3513 = vmatpush1.msra.mxu0 %v1168
        %3514 = vmatprep.subr.mxu0 0.0
        %3515 = vmatpush1.msra.mxu0 %v1169
        %3516 = vmatprep.subr.mxu0 0.0
        %3517 = vmatpush1.msra.mxu0 %v1170
        %3518 = vmatprep.subr.mxu0 0.0
        %3519 = vmatpush1.msra.mxu0 %v1171
        %3520 = vmatprep.subr.mxu0 0.0
        %3521 = vmatpush1.msra.mxu0 %v1172
        %3522 = vmatprep.subr.mxu0 0.0
        %3523 = vmatpush1.msra.mxu0 %v1173
        %3524 = vmatprep.subr.mxu0 0.0
        %3525 = vmatpush1.msra.mxu0 %v1174
        %3526 = vmatprep.subr.mxu0 0.0
        %3527 = vmatpush1.msra.mxu0 %v1175
        %3528 = vmatprep.subr.mxu0 0.0
        %3529 = vmatpush1.msra.mxu0 %v1176
        %3530 = vmatprep.subr.mxu0 0.0
        %3531 = vmatpush1.msra.mxu0 %v1177
        %3532 = vmatprep.subr.mxu0 0.0
        %3533 = vmatpush1.msra.mxu0 %v1178
        %3534 = vmatprep.mubr.f32.mxu0 %v2312
        %3535 = vmatmul.mubr.f32.gmra.mrb[0].mxu0 %v2308
        %v3536 = vpop.f32.mrb[0].mxu0
        %v3537 = vadd.f32 %v3467, %v3536
        %v3538 = vpop.f32.mrb[0].mxu0
        %3539 = vdwg.mxu0
        %3540 = vmatprep.subr.mxu0 0.0
        %3541 = vmatpush1.msra.mxu0 %v1179
        %3542 = vmatprep.subr.mxu0 0.0
        %3543 = vmatpush1.msra.mxu0 %v1180
        %3544 = vmatprep.subr.mxu0 0.0
        %3545 = vmatpush1.msra.mxu0 %v1181
        %3546 = vmatprep.subr.mxu0 0.0
        %3547 = vmatpush1.msra.mxu0 %v1182
        %3548 = vmatprep.subr.mxu0 0.0
        %3549 = vmatpush1.msra.mxu0 %v1183
        %3550 = vmatprep.subr.mxu0 0.0
        %3551 = vmatpush1.msra.mxu0 %v1184
        %3552 = vmatprep.subr.mxu0 0.0
        %3553 = vmatpush1.msra.mxu0 %v1185
        %3554 = vmatprep.subr.mxu0 0.0
        %3555 = vmatpush1.msra.mxu0 %v1186
        %3556 = vmatprep.subr.mxu0 0.0
        %3557 = vmatpush1.msra.mxu0 %v1187
        %3558 = vmatprep.subr.mxu0 0.0
        %3559 = vmatpush1.msra.mxu0 %v1188
        %3560 = vmatprep.subr.mxu0 0.0
        %3561 = vmatpush1.msra.mxu0 %v1189
        %3562 = vmatprep.subr.mxu0 0.0
        %3563 = vmatpush1.msra.mxu0 %v1190
        %3564 = vmatprep.subr.mxu0 0.0
        %3565 = vmatpush1.msra.mxu0 %v1191
        %3566 = vmatprep.subr.mxu0 0.0
        %3567 = vmatpush1.msra.mxu0 %v1192
        %3568 = vmatprep.subr.mxu0 0.0
        %3569 = vmatpush1.msra.mxu0 %v1193
        %3570 = vmatprep.subr.mxu0 0.0
        %3571 = vmatpush1.msra.mxu0 %v1194
        %3572 = vmatprep.subr.mxu0 0.0
        %3573 = vmatpush1.msra.mxu0 %v1195
        %3574 = vmatprep.subr.mxu0 0.0
        %3575 = vmatpush1.msra.mxu0 %v1196
        %3576 = vmatprep.subr.mxu0 0.0
        %3577 = vmatpush1.msra.mxu0 %v1197
        %3578 = vmatprep.subr.mxu0 0.0
        %3579 = vmatpush1.msra.mxu0 %v1198
        %3580 = vmatprep.subr.mxu0 0.0
        %3581 = vmatpush1.msra.mxu0 %v1199
        %3582 = vmatprep.subr.mxu0 0.0
        %3583 = vmatpush1.msra.mxu0 %v1200
        %3584 = vmatprep.subr.mxu0 0.0
        %3585 = vmatpush1.msra.mxu0 %v1201
        %3586 = vmatprep.subr.mxu0 0.0
        %3587 = vmatpush1.msra.mxu0 %v1202
        %3588 = vmatprep.subr.mxu0 0.0
        %3589 = vmatpush1.msra.mxu0 %v1203
        %3590 = vmatprep.subr.mxu0 0.0
        %3591 = vmatpush1.msra.mxu0 %v1204
        %3592 = vmatprep.subr.mxu0 0.0
        %3593 = vmatpush1.msra.mxu0 %v1205
        %3594 = vmatprep.subr.mxu0 0.0
        %3595 = vmatpush1.msra.mxu0 %v1206
        %3596 = vmatprep.subr.mxu0 0.0
        %3597 = vmatpush1.msra.mxu0 %v1207
        %3598 = vmatprep.subr.mxu0 0.0
        %3599 = vmatpush1.msra.mxu0 %v1208
        %3600 = vmatprep.subr.mxu0 0.0
        %3601 = vmatpush1.msra.mxu0 %v1209
        %3602 = vmatprep.subr.mxu0 0.0
        %3603 = vmatpush1.msra.mxu0 %v1210
        %3604 = vmatprep.mubr.f32.mxu0 %v2313
        %3605 = vmatmul.mubr.f32.gmra.mrb[0].mxu0 %v2309
        %v3606 = vpop.f32.mrb[0].mxu0
        %v3607 = vadd.f32 %v3537, %v3606
        %v3608 = vpop.f32.mrb[0].mxu0
        %3609 = vdwg.mxu0
        %3610 = vmatprep.subr.mxu0 0.0
        %3611 = vmatpush1.msra.mxu0 %v1211
        %3612 = vmatprep.subr.mxu0 0.0
        %3613 = vmatpush1.msra.mxu0 %v1212
        %3614 = vmatprep.subr.mxu0 0.0
        %3615 = vmatpush1.msra.mxu0 %v1213
        %3616 = vmatprep.subr.mxu0 0.0
        %3617 = vmatpush1.msra.mxu0 %v1214
        %3618 = vmatprep.subr.mxu0 0.0
        %3619 = vmatpush1.msra.mxu0 %v1215
        %3620 = vmatprep.subr.mxu0 0.0
        %3621 = vmatpush1.msra.mxu0 %v1216
        %3622 = vmatprep.subr.mxu0 0.0
        %3623 = vmatpush1.msra.mxu0 %v1217
        %3624 = vmatprep.subr.mxu0 0.0
        %3625 = vmatpush1.msra.mxu0 %v1218
        %3626 = vmatprep.subr.mxu0 0.0
        %3627 = vmatpush1.msra.mxu0 %v1219
        %3628 = vmatprep.subr.mxu0 0.0
        %3629 = vmatpush1.msra.mxu0 %v1220
        %3630 = vmatprep.subr.mxu0 0.0
        %3631 = vmatpush1.msra.mxu0 %v1221
        %3632 = vmatprep.subr.mxu0 0.0
        %3633 = vmatpush1.msra.mxu0 %v1222
        %3634 = vmatprep.subr.mxu0 0.0
        %3635 = vmatpush1.msra.mxu0 %v1223
        %3636 = vmatprep.subr.mxu0 0.0
        %3637 = vmatpush1.msra.mxu0 %v1224
        %3638 = vmatprep.subr.mxu0 0.0
        %3639 = vmatpush1.msra.mxu0 %v1225
        %3640 = vmatprep.subr.mxu0 0.0
        %3641 = vmatpush1.msra.mxu0 %v1226
        %3642 = vmatprep.subr.mxu0 0.0
        %3643 = vmatpush1.msra.mxu0 %v1227
        %3644 = vmatprep.subr.mxu0 0.0
        %3645 = vmatpush1.msra.mxu0 %v1228
        %3646 = vmatprep.subr.mxu0 0.0
        %3647 = vmatpush1.msra.mxu0 %v1229
        %3648 = vmatprep.subr.mxu0 0.0
        %3649 = vmatpush1.msra.mxu0 %v1230
        %3650 = vmatprep.subr.mxu0 0.0
        %3651 = vmatpush1.msra.mxu0 %v1231
        %3652 = vmatprep.subr.mxu0 0.0
        %3653 = vmatpush1.msra.mxu0 %v1232
        %3654 = vmatprep.subr.mxu0 0.0
        %3655 = vmatpush1.msra.mxu0 %v1233
        %3656 = vmatprep.subr.mxu0 0.0
        %3657 = vmatpush1.msra.mxu0 %v1234
        %3658 = vmatprep.subr.mxu0 0.0
        %3659 = vmatpush1.msra.mxu0 %v1235
        %3660 = vmatprep.subr.mxu0 0.0
        %3661 = vmatpush1.msra.mxu0 %v1236
        %3662 = vmatprep.subr.mxu0 0.0
        %3663 = vmatpush1.msra.mxu0 %v1237
        %3664 = vmatprep.subr.mxu0 0.0
        %3665 = vmatpush1.msra.mxu0 %v1238
        %3666 = vmatprep.subr.mxu0 0.0
        %3667 = vmatpush1.msra.mxu0 %v1239
        %3668 = vmatprep.subr.mxu0 0.0
        %3669 = vmatpush1.msra.mxu0 %v1240
        %3670 = vmatprep.subr.mxu0 0.0
        %3671 = vmatpush1.msra.mxu0 %v1241
        %3672 = vmatprep.subr.mxu0 0.0
        %3673 = vmatpush1.msra.mxu0 %v1242
        %3674 = vmatprep.mubr.f32.mxu0 %v2446
        %3675 = vmatmul.mubr.f32.gmra.mrb[0].mxu0 %v2442
        %v3676 = vpop.f32.mrb[0].mxu0
        %v3677 = vadd.f32 %v3607, %v3676
        %v3678 = vpop.f32.mrb[0].mxu0
        %3679 = vdwg.mxu0
        %3680 = vmatprep.subr.mxu0 0.0
        %3681 = vmatpush1.msra.mxu0 %v1243
        %3682 = vmatprep.subr.mxu0 0.0
        %3683 = vmatpush1.msra.mxu0 %v1244
        %3684 = vmatprep.subr.mxu0 0.0
        %3685 = vmatpush1.msra.mxu0 %v1245
        %3686 = vmatprep.subr.mxu0 0.0
        %3687 = vmatpush1.msra.mxu0 %v1246
        %3688 = vmatprep.subr.mxu0 0.0
        %3689 = vmatpush1.msra.mxu0 %v1247
        %3690 = vmatprep.subr.mxu0 0.0
        %3691 = vmatpush1.msra.mxu0 %v1248
        %3692 = vmatprep.subr.mxu0 0.0
        %3693 = vmatpush1.msra.mxu0 %v1249
        %3694 = vmatprep.subr.mxu0 0.0
        %3695 = vmatpush1.msra.mxu0 %v1250
        %3696 = vmatprep.subr.mxu0 0.0
        %3697 = vmatpush1.msra.mxu0 %v1251
        %3698 = vmatprep.subr.mxu0 0.0
        %3699 = vmatpush1.msra.mxu0 %v1252
        %3700 = vmatprep.subr.mxu0 0.0
        %3701 = vmatpush1.msra.mxu0 %v1253
        %3702 = vmatprep.subr.mxu0 0.0
        %3703 = vmatpush1.msra.mxu0 %v1254
        %3704 = vmatprep.subr.mxu0 0.0
        %3705 = vmatpush1.msra.mxu0 %v1255
        %3706 = vmatprep.subr.mxu0 0.0
        %3707 = vmatpush1.msra.mxu0 %v1256
        %3708 = vmatprep.subr.mxu0 0.0
        %3709 = vmatpush1.msra.mxu0 %v1257
        %3710 = vmatprep.subr.mxu0 0.0
        %3711 = vmatpush1.msra.mxu0 %v1258
        %3712 = vmatprep.subr.mxu0 0.0
        %3713 = vmatpush1.msra.mxu0 %v1259
        %3714 = vmatprep.subr.mxu0 0.0
        %3715 = vmatpush1.msra.mxu0 %v1260
        %3716 = vmatprep.subr.mxu0 0.0
        %3717 = vmatpush1.msra.mxu0 %v1261
        %3718 = vmatprep.subr.mxu0 0.0
        %3719 = vmatpush1.msra.mxu0 %v1262
        %3720 = vmatprep.subr.mxu0 0.0
        %3721 = vmatpush1.msra.mxu0 %v1263
        %3722 = vmatprep.subr.mxu0 0.0
        %3723 = vmatpush1.msra.mxu0 %v1264
        %3724 = vmatprep.subr.mxu0 0.0
        %3725 = vmatpush1.msra.mxu0 %v1265
        %3726 = vmatprep.subr.mxu0 0.0
        %3727 = vmatpush1.msra.mxu0 %v1266
        %3728 = vmatprep.subr.mxu0 0.0
        %3729 = vmatpush1.msra.mxu0 %v1267
        %3730 = vmatprep.subr.mxu0 0.0
        %3731 = vmatpush1.msra.mxu0 %v1268
        %3732 = vmatprep.subr.mxu0 0.0
        %3733 = vmatpush1.msra.mxu0 %v1269
        %3734 = vmatprep.subr.mxu0 0.0
        %3735 = vmatpush1.msra.mxu0 %v1270
        %3736 = vmatprep.subr.mxu0 0.0
        %3737 = vmatpush1.msra.mxu0 %v1271
        %3738 = vmatprep.subr.mxu0 0.0
        %3739 = vmatpush1.msra.mxu0 %v1272
        %3740 = vmatprep.subr.mxu0 0.0
        %3741 = vmatpush1.msra.mxu0 %v1273
        %3742 = vmatprep.subr.mxu0 0.0
        %3743 = vmatpush1.msra.mxu0 %v1274
        %3744 = vmatprep.mubr.f32.mxu0 %v2447
        %3745 = vmatmul.mubr.f32.gmra.mrb[0].mxu0 %v2443
        %v3746 = vpop.f32.mrb[0].mxu0
        %v3747 = vadd.f32 %v3677, %v3746
        %v3748 = vpop.f32.mrb[0].mxu0
        %3749 = vdwg.mxu0
        %3750 = vmatprep.subr.mxu0 0.0
        %3751 = vmatpush1.msra.mxu0 %v1275
        %3752 = vmatprep.subr.mxu0 0.0
        %3753 = vmatpush1.msra.mxu0 %v1276
        %3754 = vmatprep.subr.mxu0 0.0
        %3755 = vmatpush1.msra.mxu0 %v1277
        %3756 = vmatprep.subr.mxu0 0.0
        %3757 = vmatpush1.msra.mxu0 %v1278
        %3758 = vmatprep.subr.mxu0 0.0
        %3759 = vmatpush1.msra.mxu0 %v1279
        %3760 = vmatprep.subr.mxu0 0.0
        %3761 = vmatpush1.msra.mxu0 %v1280
        %3762 = vmatprep.subr.mxu0 0.0
        %3763 = vmatpush1.msra.mxu0 %v1281
        %3764 = vmatprep.subr.mxu0 0.0
        %3765 = vmatpush1.msra.mxu0 %v1282
        %3766 = vmatprep.subr.mxu0 0.0
        %3767 = vmatpush1.msra.mxu0 %v1283
        %3768 = vmatprep.subr.mxu0 0.0
        %3769 = vmatpush1.msra.mxu0 %v1284
        %3770 = vmatprep.subr.mxu0 0.0
        %3771 = vmatpush1.msra.mxu0 %v1285
        %3772 = vmatprep.subr.mxu0 0.0
        %3773 = vmatpush1.msra.mxu0 %v1286
        %3774 = vmatprep.subr.mxu0 0.0
        %3775 = vmatpush1.msra.mxu0 %v1287
        %3776 = vmatprep.subr.mxu0 0.0
        %3777 = vmatpush1.msra.mxu0 %v1288
        %3778 = vmatprep.subr.mxu0 0.0
        %3779 = vmatpush1.msra.mxu0 %v1289
        %3780 = vmatprep.subr.mxu0 0.0
        %3781 = vmatpush1.msra.mxu0 %v1290
        %3782 = vmatprep.subr.mxu0 0.0
        %3783 = vmatpush1.msra.mxu0 %v1291
        %3784 = vmatprep.subr.mxu0 0.0
        %3785 = vmatpush1.msra.mxu0 %v1292
        %3786 = vmatprep.subr.mxu0 0.0
        %3787 = vmatpush1.msra.mxu0 %v1293
        %3788 = vmatprep.subr.mxu0 0.0
        %3789 = vmatpush1.msra.mxu0 %v1294
        %3790 = vmatprep.subr.mxu0 0.0
        %3791 = vmatpush1.msra.mxu0 %v1295
        %3792 = vmatprep.subr.mxu0 0.0
        %3793 = vmatpush1.msra.mxu0 %v1296
        %3794 = vmatprep.subr.mxu0 0.0
        %3795 = vmatpush1.msra.mxu0 %v1297
        %3796 = vmatprep.subr.mxu0 0.0
        %3797 = vmatpush1.msra.mxu0 %v1298
        %3798 = vmatprep.subr.mxu0 0.0
        %3799 = vmatpush1.msra.mxu0 %v1299
        %3800 = vmatprep.subr.mxu0 0.0
        %3801 = vmatpush1.msra.mxu0 %v1300
        %3802 = vmatprep.subr.mxu0 0.0
        %3803 = vmatpush1.msra.mxu0 %v1301
        %3804 = vmatprep.subr.mxu0 0.0
        %3805 = vmatpush1.msra.mxu0 %v1302
        %3806 = vmatprep.subr.mxu0 0.0
        %3807 = vmatpush1.msra.mxu0 %v1303
        %3808 = vmatprep.subr.mxu0 0.0
        %3809 = vmatpush1.msra.mxu0 %v1304
        %3810 = vmatprep.subr.mxu0 0.0
        %3811 = vmatpush1.msra.mxu0 %v1305
        %3812 = vmatprep.subr.mxu0 0.0
        %3813 = vmatpush1.msra.mxu0 %v1306
        %3814 = vmatprep.mubr.f32.mxu0 %v2448
        %3815 = vmatmul.mubr.f32.gmra.mrb[0].mxu0 %v2444
        %v3816 = vpop.f32.mrb[0].mxu0
        %v3817 = vadd.f32 %v3747, %v3816
        %v3818 = vpop.f32.mrb[0].mxu0
        %3819 = vdwg.mxu0
        %3820 = vmatprep.subr.mxu0 0.0
        %3821 = vmatpush1.msra.mxu0 %v1307
        %3822 = vmatprep.subr.mxu0 0.0
        %3823 = vmatpush1.msra.mxu0 %v1308
        %3824 = vmatprep.subr.mxu0 0.0
        %3825 = vmatpush1.msra.mxu0 %v1309
        %3826 = vmatprep.subr.mxu0 0.0
        %3827 = vmatpush1.msra.mxu0 %v1310
        %3828 = vmatprep.subr.mxu0 0.0
        %3829 = vmatpush1.msra.mxu0 %v1311
        %3830 = vmatprep.subr.mxu0 0.0
        %3831 = vmatpush1.msra.mxu0 %v1312
        %3832 = vmatprep.subr.mxu0 0.0
        %3833 = vmatpush1.msra.mxu0 %v1313
        %3834 = vmatprep.subr.mxu0 0.0
        %3835 = vmatpush1.msra.mxu0 %v1314
        %3836 = vmatprep.subr.mxu0 0.0
        %3837 = vmatpush1.msra.mxu0 %v1315
        %3838 = vmatprep.subr.mxu0 0.0
        %3839 = vmatpush1.msra.mxu0 %v1316
        %3840 = vmatprep.subr.mxu0 0.0
        %3841 = vmatpush1.msra.mxu0 %v1317
        %3842 = vmatprep.subr.mxu0 0.0
        %3843 = vmatpush1.msra.mxu0 %v1318
        %3844 = vmatprep.subr.mxu0 0.0
        %3845 = vmatpush1.msra.mxu0 %v1319
        %3846 = vmatprep.subr.mxu0 0.0
        %3847 = vmatpush1.msra.mxu0 %v1320
        %3848 = vmatprep.subr.mxu0 0.0
        %3849 = vmatpush1.msra.mxu0 %v1321
        %3850 = vmatprep.subr.mxu0 0.0
        %3851 = vmatpush1.msra.mxu0 %v1322
        %3852 = vmatprep.subr.mxu0 0.0
        %3853 = vmatpush1.msra.mxu0 %v1323
        %3854 = vmatprep.subr.mxu0 0.0
        %3855 = vmatpush1.msra.mxu0 %v1324
        %3856 = vmatprep.subr.mxu0 0.0
        %3857 = vmatpush1.msra.mxu0 %v1325
        %3858 = vmatprep.subr.mxu0 0.0
        %3859 = vmatpush1.msra.mxu0 %v1326
        %3860 = vmatprep.subr.mxu0 0.0
        %3861 = vmatpush1.msra.mxu0 %v1327
        %3862 = vmatprep.subr.mxu0 0.0
        %3863 = vmatpush1.msra.mxu0 %v1328
        %3864 = vmatprep.subr.mxu0 0.0
        %3865 = vmatpush1.msra.mxu0 %v1329
        %3866 = vmatprep.subr.mxu0 0.0
        %3867 = vmatpush1.msra.mxu0 %v1330
        %3868 = vmatprep.subr.mxu0 0.0
        %3869 = vmatpush1.msra.mxu0 %v1331
        %3870 = vmatprep.subr.mxu0 0.0
        %3871 = vmatpush1.msra.mxu0 %v1332
        %3872 = vmatprep.subr.mxu0 0.0
        %3873 = vmatpush1.msra.mxu0 %v1333
        %3874 = vmatprep.subr.mxu0 0.0
        %3875 = vmatpush1.msra.mxu0 %v1334
        %3876 = vmatprep.subr.mxu0 0.0
        %3877 = vmatpush1.msra.mxu0 %v1335
        %3878 = vmatprep.subr.mxu0 0.0
        %3879 = vmatpush1.msra.mxu0 %v1336
        %3880 = vmatprep.subr.mxu0 0.0
        %3881 = vmatpush1.msra.mxu0 %v1337
        %3882 = vmatprep.subr.mxu0 0.0
        %3883 = vmatpush1.msra.mxu0 %v1338
        %3884 = vmatprep.mubr.f32.mxu0 %v2449
        %3885 = vmatmul.mubr.f32.gmra.mrb[0].mxu0 %v2445
        %v3886 = vpop.f32.mrb[0].mxu0
        %v3887 = vadd.f32 %v3817, %v3886
        %v3888 = vpop.f32.mrb[0].mxu0
        %3889 = vdwg.mxu0
        %3890 = vmatprep.subr.mxu0 0.0
        %3891 = vmatpush1.msra.mxu0 %v1339
        %3892 = vmatprep.subr.mxu0 0.0
        %3893 = vmatpush1.msra.mxu0 %v1340
        %3894 = vmatprep.subr.mxu0 0.0
        %3895 = vmatpush1.msra.mxu0 %v1341
        %3896 = vmatprep.subr.mxu0 0.0
        %3897 = vmatpush1.msra.mxu0 %v1342
        %3898 = vmatprep.subr.mxu0 0.0
        %3899 = vmatpush1.msra.mxu0 %v1343
        %3900 = vmatprep.subr.mxu0 0.0
        %3901 = vmatpush1.msra.mxu0 %v1344
        %3902 = vmatprep.subr.mxu0 0.0
        %3903 = vmatpush1.msra.mxu0 %v1345
        %3904 = vmatprep.subr.mxu0 0.0
        %3905 = vmatpush1.msra.mxu0 %v1346
        %3906 = vmatprep.subr.mxu0 0.0
        %3907 = vmatpush1.msra.mxu0 %v1347
        %3908 = vmatprep.subr.mxu0 0.0
        %3909 = vmatpush1.msra.mxu0 %v1348
        %3910 = vmatprep.subr.mxu0 0.0
        %3911 = vmatpush1.msra.mxu0 %v1349
        %3912 = vmatprep.subr.mxu0 0.0
        %3913 = vmatpush1.msra.mxu0 %v1350
        %3914 = vmatprep.subr.mxu0 0.0
        %3915 = vmatpush1.msra.mxu0 %v1351
        %3916 = vmatprep.subr.mxu0 0.0
        %3917 = vmatpush1.msra.mxu0 %v1352
        %3918 = vmatprep.subr.mxu0 0.0
        %3919 = vmatpush1.msra.mxu0 %v1353
        %3920 = vmatprep.subr.mxu0 0.0
        %3921 = vmatpush1.msra.mxu0 %v1354
        %3922 = vmatprep.subr.mxu0 0.0
        %3923 = vmatpush1.msra.mxu0 %v1355
        %3924 = vmatprep.subr.mxu0 0.0
        %3925 = vmatpush1.msra.mxu0 %v1356
        %3926 = vmatprep.subr.mxu0 0.0
        %3927 = vmatpush1.msra.mxu0 %v1357
        %3928 = vmatprep.subr.mxu0 0.0
        %3929 = vmatpush1.msra.mxu0 %v1358
        %3930 = vmatprep.subr.mxu0 0.0
        %3931 = vmatpush1.msra.mxu0 %v1359
        %3932 = vmatprep.subr.mxu0 0.0
        %3933 = vmatpush1.msra.mxu0 %v1360
        %3934 = vmatprep.subr.mxu0 0.0
        %3935 = vmatpush1.msra.mxu0 %v1361
        %3936 = vmatprep.subr.mxu0 0.0
        %3937 = vmatpush1.msra.mxu0 %v1362
        %3938 = vmatprep.subr.mxu0 0.0
        %3939 = vmatpush1.msra.mxu0 %v1363
        %3940 = vmatprep.subr.mxu0 0.0
        %3941 = vmatpush1.msra.mxu0 %v1364
        %3942 = vmatprep.subr.mxu0 0.0
        %3943 = vmatpush1.msra.mxu0 %v1365
        %3944 = vmatprep.subr.mxu0 0.0
        %3945 = vmatpush1.msra.mxu0 %v1366
        %3946 = vmatprep.subr.mxu0 0.0
        %3947 = vmatpush1.msra.mxu0 %v1367
        %3948 = vmatprep.subr.mxu0 0.0
        %3949 = vmatpush1.msra.mxu0 %v1368
        %3950 = vmatprep.subr.mxu0 0.0
        %3951 = vmatpush1.msra.mxu0 %v1369
        %3952 = vmatprep.subr.mxu0 0.0
        %3953 = vmatpush1.msra.mxu0 %v1370
        %3954 = vmatprep.mubr.f32.mxu0 %v2582
        %3955 = vmatmul.mubr.f32.gmra.mrb[0].mxu0 %v2578
        %v3956 = vpop.f32.mrb[0].mxu0
        %v3957 = vadd.f32 %v3887, %v3956
        %v3958 = vpop.f32.mrb[0].mxu0
        %3959 = vdwg.mxu0
        %3960 = vmatprep.subr.mxu0 0.0
        %3961 = vmatpush1.msra.mxu0 %v1371
        %3962 = vmatprep.subr.mxu0 0.0
        %3963 = vmatpush1.msra.mxu0 %v1372
        %3964 = vmatprep.subr.mxu0 0.0
        %3965 = vmatpush1.msra.mxu0 %v1373
        %3966 = vmatprep.subr.mxu0 0.0
        %3967 = vmatpush1.msra.mxu0 %v1374
        %3968 = vmatprep.subr.mxu0 0.0
        %3969 = vmatpush1.msra.mxu0 %v1375
        %3970 = vmatprep.subr.mxu0 0.0
        %3971 = vmatpush1.msra.mxu0 %v1376
        %3972 = vmatprep.subr.mxu0 0.0
        %3973 = vmatpush1.msra.mxu0 %v1377
        %3974 = vmatprep.subr.mxu0 0.0
        %3975 = vmatpush1.msra.mxu0 %v1378
        %3976 = vmatprep.subr.mxu0 0.0
        %3977 = vmatpush1.msra.mxu0 %v1379
        %3978 = vmatprep.subr.mxu0 0.0
        %3979 = vmatpush1.msra.mxu0 %v1380
        %3980 = vmatprep.subr.mxu0 0.0
        %3981 = vmatpush1.msra.mxu0 %v1381
        %3982 = vmatprep.subr.mxu0 0.0
        %3983 = vmatpush1.msra.mxu0 %v1382
        %3984 = vmatprep.subr.mxu0 0.0
        %3985 = vmatpush1.msra.mxu0 %v1383
        %3986 = vmatprep.subr.mxu0 0.0
        %3987 = vmatpush1.msra.mxu0 %v1384
        %3988 = vmatprep.subr.mxu0 0.0
        %3989 = vmatpush1.msra.mxu0 %v1385
        %3990 = vmatprep.subr.mxu0 0.0
        %3991 = vmatpush1.msra.mxu0 %v1386
        %3992 = vmatprep.subr.mxu0 0.0
        %3993 = vmatpush1.msra.mxu0 %v1387
        %3994 = vmatprep.subr.mxu0 0.0
        %3995 = vmatpush1.msra.mxu0 %v1388
        %3996 = vmatprep.subr.mxu0 0.0
        %3997 = vmatpush1.msra.mxu0 %v1389
        %3998 = vmatprep.subr.mxu0 0.0
        %3999 = vmatpush1.msra.mxu0 %v1390
        %4000 = vmatprep.subr.mxu0 0.0
        %4001 = vmatpush1.msra.mxu0 %v1391
        %4002 = vmatprep.subr.mxu0 0.0
        %4003 = vmatpush1.msra.mxu0 %v1392
        %4004 = vmatprep.subr.mxu0 0.0
        %4005 = vmatpush1.msra.mxu0 %v1393
        %4006 = vmatprep.subr.mxu0 0.0
        %4007 = vmatpush1.msra.mxu0 %v1394
        %4008 = vmatprep.subr.mxu0 0.0
        %4009 = vmatpush1.msra.mxu0 %v1395
        %4010 = vmatprep.subr.mxu0 0.0
        %4011 = vmatpush1.msra.mxu0 %v1396
        %4012 = vmatprep.subr.mxu0 0.0
        %4013 = vmatpush1.msra.mxu0 %v1397
        %4014 = vmatprep.subr.mxu0 0.0
        %4015 = vmatpush1.msra.mxu0 %v1398
        %4016 = vmatprep.subr.mxu0 0.0
        %4017 = vmatpush1.msra.mxu0 %v1399
        %4018 = vmatprep.subr.mxu0 0.0
        %4019 = vmatpush1.msra.mxu0 %v1400
        %4020 = vmatprep.subr.mxu0 0.0
        %4021 = vmatpush1.msra.mxu0 %v1401
        %4022 = vmatprep.subr.mxu0 0.0
        %4023 = vmatpush1.msra.mxu0 %v1402
        %4024 = vmatprep.mubr.f32.mxu0 %v2583
        %4025 = vmatmul.mubr.f32.gmra.mrb[0].mxu0 %v2579
        %v4026 = vpop.f32.mrb[0].mxu0
        %v4027 = vadd.f32 %v3957, %v4026
        %v4028 = vpop.f32.mrb[0].mxu0
        %4029 = vdwg.mxu0
        %4030 = vmatprep.subr.mxu0 0.0
        %4031 = vmatpush1.msra.mxu0 %v1403
        %4032 = vmatprep.subr.mxu0 0.0
        %4033 = vmatpush1.msra.mxu0 %v1404
        %4034 = vmatprep.subr.mxu0 0.0
        %4035 = vmatpush1.msra.mxu0 %v1405
        %4036 = vmatprep.subr.mxu0 0.0
        %4037 = vmatpush1.msra.mxu0 %v1406
        %4038 = vmatprep.subr.mxu0 0.0
        %4039 = vmatpush1.msra.mxu0 %v1407
        %4040 = vmatprep.subr.mxu0 0.0
        %4041 = vmatpush1.msra.mxu0 %v1408
        %4042 = vmatprep.subr.mxu0 0.0
        %4043 = vmatpush1.msra.mxu0 %v1409
        %4044 = vmatprep.subr.mxu0 0.0
        %4045 = vmatpush1.msra.mxu0 %v1410
        %4046 = vmatprep.subr.mxu0 0.0
        %4047 = vmatpush1.msra.mxu0 %v1411
        %4048 = vmatprep.subr.mxu0 0.0
        %4049 = vmatpush1.msra.mxu0 %v1412
        %4050 = vmatprep.subr.mxu0 0.0
        %4051 = vmatpush1.msra.mxu0 %v1413
        %4052 = vmatprep.subr.mxu0 0.0
        %4053 = vmatpush1.msra.mxu0 %v1414
        %4054 = vmatprep.subr.mxu0 0.0
        %4055 = vmatpush1.msra.mxu0 %v1415
        %4056 = vmatprep.subr.mxu0 0.0
        %4057 = vmatpush1.msra.mxu0 %v1416
        %4058 = vmatprep.subr.mxu0 0.0
        %4059 = vmatpush1.msra.mxu0 %v1417
        %4060 = vmatprep.subr.mxu0 0.0
        %4061 = vmatpush1.msra.mxu0 %v1418
        %4062 = vmatprep.subr.mxu0 0.0
        %4063 = vmatpush1.msra.mxu0 %v1419
        %4064 = vmatprep.subr.mxu0 0.0
        %4065 = vmatpush1.msra.mxu0 %v1420
        %4066 = vmatprep.subr.mxu0 0.0
        %4067 = vmatpush1.msra.mxu0 %v1421
        %4068 = vmatprep.subr.mxu0 0.0
        %4069 = vmatpush1.msra.mxu0 %v1422
        %4070 = vmatprep.subr.mxu0 0.0
        %4071 = vmatpush1.msra.mxu0 %v1423
        %4072 = vmatprep.subr.mxu0 0.0
        %4073 = vmatpush1.msra.mxu0 %v1424
        %4074 = vmatprep.subr.mxu0 0.0
        %4075 = vmatpush1.msra.mxu0 %v1425
        %4076 = vmatprep.subr.mxu0 0.0
        %4077 = vmatpush1.msra.mxu0 %v1426
        %4078 = vmatprep.subr.mxu0 0.0
        %4079 = vmatpush1.msra.mxu0 %v1427
        %4080 = vmatprep.subr.mxu0 0.0
        %4081 = vmatpush1.msra.mxu0 %v1428
        %4082 = vmatprep.subr.mxu0 0.0
        %4083 = vmatpush1.msra.mxu0 %v1429
        %4084 = vmatprep.subr.mxu0 0.0
        %4085 = vmatpush1.msra.mxu0 %v1430
        %4086 = vmatprep.subr.mxu0 0.0
        %4087 = vmatpush1.msra.mxu0 %v1431
        %4088 = vmatprep.subr.mxu0 0.0
        %4089 = vmatpush1.msra.mxu0 %v1432
        %4090 = vmatprep.subr.mxu0 0.0
        %4091 = vmatpush1.msra.mxu0 %v1433
        %4092 = vmatprep.subr.mxu0 0.0
        %4093 = vmatpush1.msra.mxu0 %v1434
        %4094 = vmatprep.mubr.f32.mxu0 %v2584
        %4095 = vmatmul.mubr.f32.gmra.mrb[0].mxu0 %v2580
        %v4096 = vpop.f32.mrb[0].mxu0
        %v4097 = vadd.f32 %v4027, %v4096
        %v4098 = vpop.f32.mrb[0].mxu0
        %4099 = vdwg.mxu0
        %4100 = vmatprep.subr.mxu0 0.0
        %4101 = vmatpush1.msra.mxu0 %v1435
        %4102 = vmatprep.subr.mxu0 0.0
        %4103 = vmatpush1.msra.mxu0 %v1436
        %4104 = vmatprep.subr.mxu0 0.0
        %4105 = vmatpush1.msra.mxu0 %v1437
        %4106 = vmatprep.subr.mxu0 0.0
        %4107 = vmatpush1.msra.mxu0 %v1438
        %4108 = vmatprep.subr.mxu0 0.0
        %4109 = vmatpush1.msra.mxu0 %v1439
        %4110 = vmatprep.subr.mxu0 0.0
        %4111 = vmatpush1.msra.mxu0 %v1440
        %4112 = vmatprep.subr.mxu0 0.0
        %4113 = vmatpush1.msra.mxu0 %v1441
        %4114 = vmatprep.subr.mxu0 0.0
        %4115 = vmatpush1.msra.mxu0 %v1442
        %4116 = vmatprep.subr.mxu0 0.0
        %4117 = vmatpush1.msra.mxu0 %v1443
        %4118 = vmatprep.subr.mxu0 0.0
        %4119 = vmatpush1.msra.mxu0 %v1444
        %4120 = vmatprep.subr.mxu0 0.0
        %4121 = vmatpush1.msra.mxu0 %v1445
        %4122 = vmatprep.subr.mxu0 0.0
        %4123 = vmatpush1.msra.mxu0 %v1446
        %4124 = vmatprep.subr.mxu0 0.0
        %4125 = vmatpush1.msra.mxu0 %v1447
        %4126 = vmatprep.subr.mxu0 0.0
        %4127 = vmatpush1.msra.mxu0 %v1448
        %4128 = vmatprep.subr.mxu0 0.0
        %4129 = vmatpush1.msra.mxu0 %v1449
        %4130 = vmatprep.subr.mxu0 0.0
        %4131 = vmatpush1.msra.mxu0 %v1450
        %4132 = vmatprep.subr.mxu0 0.0
        %4133 = vmatpush1.msra.mxu0 %v1451
        %4134 = vmatprep.subr.mxu0 0.0
        %4135 = vmatpush1.msra.mxu0 %v1452
        %4136 = vmatprep.subr.mxu0 0.0
        %4137 = vmatpush1.msra.mxu0 %v1453
        %4138 = vmatprep.subr.mxu0 0.0
        %4139 = vmatpush1.msra.mxu0 %v1454
        %4140 = vmatprep.subr.mxu0 0.0
        %4141 = vmatpush1.msra.mxu0 %v1455
        %4142 = vmatprep.subr.mxu0 0.0
        %4143 = vmatpush1.msra.mxu0 %v1456
        %4144 = vmatprep.subr.mxu0 0.0
        %4145 = vmatpush1.msra.mxu0 %v1457
        %4146 = vmatprep.subr.mxu0 0.0
        %4147 = vmatpush1.msra.mxu0 %v1458
        %4148 = vmatprep.subr.mxu0 0.0
        %4149 = vmatpush1.msra.mxu0 %v1459
        %4150 = vmatprep.subr.mxu0 0.0
        %4151 = vmatpush1.msra.mxu0 %v1460
        %4152 = vmatprep.subr.mxu0 0.0
        %4153 = vmatpush1.msra.mxu0 %v1461
        %4154 = vmatprep.subr.mxu0 0.0
        %4155 = vmatpush1.msra.mxu0 %v1462
        %4156 = vmatprep.subr.mxu0 0.0
        %4157 = vmatpush1.msra.mxu0 %v1463
        %4158 = vmatprep.subr.mxu0 0.0
        %4159 = vmatpush1.msra.mxu0 %v1464
        %4160 = vmatprep.subr.mxu0 0.0
        %4161 = vmatpush1.msra.mxu0 %v1465
        %4162 = vmatprep.subr.mxu0 0.0
        %4163 = vmatpush1.msra.mxu0 %v1466
        %4164 = vmatprep.mubr.f32.mxu0 %v2585
        %4165 = vmatmul.mubr.f32.gmra.mrb[0].mxu0 %v2581
        %v4166 = vpop.f32.mrb[0].mxu0
        %v4167 = vadd.f32 %v4097, %v4166
        %v4168 = vpop.f32.mrb[0].mxu0
        %4169 = vdwg.mxu0
        %4170 = vmatprep.subr.mxu0 0.0
        %4171 = vmatpush1.msra.mxu0 %v1467
        %4172 = vmatprep.subr.mxu0 0.0
        %4173 = vmatpush1.msra.mxu0 %v1468
        %4174 = vmatprep.subr.mxu0 0.0
        %4175 = vmatpush1.msra.mxu0 %v1469
        %4176 = vmatprep.subr.mxu0 0.0
        %4177 = vmatpush1.msra.mxu0 %v1470
        %4178 = vmatprep.subr.mxu0 0.0
        %4179 = vmatpush1.msra.mxu0 %v1471
        %4180 = vmatprep.subr.mxu0 0.0
        %4181 = vmatpush1.msra.mxu0 %v1472
        %4182 = vmatprep.subr.mxu0 0.0
        %4183 = vmatpush1.msra.mxu0 %v1473
        %4184 = vmatprep.subr.mxu0 0.0
        %4185 = vmatpush1.msra.mxu0 %v1474
        %4186 = vmatprep.subr.mxu0 0.0
        %4187 = vmatpush1.msra.mxu0 %v1475
        %4188 = vmatprep.subr.mxu0 0.0
        %4189 = vmatpush1.msra.mxu0 %v1476
        %4190 = vmatprep.subr.mxu0 0.0
        %4191 = vmatpush1.msra.mxu0 %v1477
        %4192 = vmatprep.subr.mxu0 0.0
        %4193 = vmatpush1.msra.mxu0 %v1478
        %4194 = vmatprep.subr.mxu0 0.0
        %4195 = vmatpush1.msra.mxu0 %v1479
        %4196 = vmatprep.subr.mxu0 0.0
        %4197 = vmatpush1.msra.mxu0 %v1480
        %4198 = vmatprep.subr.mxu0 0.0
        %4199 = vmatpush1.msra.mxu0 %v1481
        %4200 = vmatprep.subr.mxu0 0.0
        %4201 = vmatpush1.msra.mxu0 %v1482
        %4202 = vmatprep.subr.mxu0 0.0
        %4203 = vmatpush1.msra.mxu0 %v1483
        %4204 = vmatprep.subr.mxu0 0.0
        %4205 = vmatpush1.msra.mxu0 %v1484
        %4206 = vmatprep.subr.mxu0 0.0
        %4207 = vmatpush1.msra.mxu0 %v1485
        %4208 = vmatprep.subr.mxu0 0.0
        %4209 = vmatpush1.msra.mxu0 %v1486
        %4210 = vmatprep.subr.mxu0 0.0
        %4211 = vmatpush1.msra.mxu0 %v1487
        %4212 = vmatprep.subr.mxu0 0.0
        %4213 = vmatpush1.msra.mxu0 %v1488
        %4214 = vmatprep.subr.mxu0 0.0
        %4215 = vmatpush1.msra.mxu0 %v1489
        %4216 = vmatprep.subr.mxu0 0.0
        %4217 = vmatpush1.msra.mxu0 %v1490
        %4218 = vmatprep.subr.mxu0 0.0
        %4219 = vmatpush1.msra.mxu0 %v1491
        %4220 = vmatprep.subr.mxu0 0.0
        %4221 = vmatpush1.msra.mxu0 %v1492
        %4222 = vmatprep.subr.mxu0 0.0
        %4223 = vmatpush1.msra.mxu0 %v1493
        %4224 = vmatprep.subr.mxu0 0.0
        %4225 = vmatpush1.msra.mxu0 %v1494
        %4226 = vmatprep.subr.mxu0 0.0
        %4227 = vmatpush1.msra.mxu0 %v1495
        %4228 = vmatprep.subr.mxu0 0.0
        %4229 = vmatpush1.msra.mxu0 %v1496
        %4230 = vmatprep.subr.mxu0 0.0
        %4231 = vmatpush1.msra.mxu0 %v1497
        %4232 = vmatprep.subr.mxu0 0.0
        %4233 = vmatpush1.msra.mxu0 %v1498
        %4234 = vmatprep.mubr.f32.mxu0 %v2718
        %4235 = vmatmul.mubr.f32.gmra.mrb[0].mxu0 %v2714
        %v4236 = vpop.f32.mrb[0].mxu0
        %v4237 = vadd.f32 %v4167, %v4236
        %v4238 = vpop.f32.mrb[0].mxu0
        %4239 = vdwg.mxu0
        %4240 = vmatprep.subr.mxu0 0.0
        %4241 = vmatpush1.msra.mxu0 %v1499
        %4242 = vmatprep.subr.mxu0 0.0
        %4243 = vmatpush1.msra.mxu0 %v1500
        %4244 = vmatprep.subr.mxu0 0.0
        %4245 = vmatpush1.msra.mxu0 %v1501
        %4246 = vmatprep.subr.mxu0 0.0
        %4247 = vmatpush1.msra.mxu0 %v1502
        %4248 = vmatprep.subr.mxu0 0.0
        %4249 = vmatpush1.msra.mxu0 %v1503
        %4250 = vmatprep.subr.mxu0 0.0
        %4251 = vmatpush1.msra.mxu0 %v1504
        %4252 = vmatprep.subr.mxu0 0.0
        %4253 = vmatpush1.msra.mxu0 %v1505
        %4254 = vmatprep.subr.mxu0 0.0
        %4255 = vmatpush1.msra.mxu0 %v1506
        %4256 = vmatprep.subr.mxu0 0.0
        %4257 = vmatpush1.msra.mxu0 %v1507
        %4258 = vmatprep.subr.mxu0 0.0
        %4259 = vmatpush1.msra.mxu0 %v1508
        %4260 = vmatprep.subr.mxu0 0.0
        %4261 = vmatpush1.msra.mxu0 %v1509
        %4262 = vmatprep.subr.mxu0 0.0
        %4263 = vmatpush1.msra.mxu0 %v1510
        %4264 = vmatprep.subr.mxu0 0.0
        %4265 = vmatpush1.msra.mxu0 %v1511
        %4266 = vmatprep.subr.mxu0 0.0
        %4267 = vmatpush1.msra.mxu0 %v1512
        %4268 = vmatprep.subr.mxu0 0.0
        %4269 = vmatpush1.msra.mxu0 %v1513
        %4270 = vmatprep.subr.mxu0 0.0
        %4271 = vmatpush1.msra.mxu0 %v1514
        %4272 = vmatprep.subr.mxu0 0.0
        %4273 = vmatpush1.msra.mxu0 %v1515
        %4274 = vmatprep.subr.mxu0 0.0
        %4275 = vmatpush1.msra.mxu0 %v1516
        %4276 = vmatprep.subr.mxu0 0.0
        %4277 = vmatpush1.msra.mxu0 %v1517
        %4278 = vmatprep.subr.mxu0 0.0
        %4279 = vmatpush1.msra.mxu0 %v1518
        %4280 = vmatprep.subr.mxu0 0.0
        %4281 = vmatpush1.msra.mxu0 %v1519
        %4282 = vmatprep.subr.mxu0 0.0
        %4283 = vmatpush1.msra.mxu0 %v1520
        %4284 = vmatprep.subr.mxu0 0.0
        %4285 = vmatpush1.msra.mxu0 %v1521
        %4286 = vmatprep.subr.mxu0 0.0
        %4287 = vmatpush1.msra.mxu0 %v1522
        %4288 = vmatprep.subr.mxu0 0.0
        %4289 = vmatpush1.msra.mxu0 %v1523
        %4290 = vmatprep.subr.mxu0 0.0
        %4291 = vmatpush1.msra.mxu0 %v1524
        %4292 = vmatprep.subr.mxu0 0.0
        %4293 = vmatpush1.msra.mxu0 %v1525
        %4294 = vmatprep.subr.mxu0 0.0
        %4295 = vmatpush1.msra.mxu0 %v1526
        %4296 = vmatprep.subr.mxu0 0.0
        %4297 = vmatpush1.msra.mxu0 %v1527
        %4298 = vmatprep.subr.mxu0 0.0
        %4299 = vmatpush1.msra.mxu0 %v1528
        %4300 = vmatprep.subr.mxu0 0.0
        %4301 = vmatpush1.msra.mxu0 %v1529
        %4302 = vmatprep.subr.mxu0 0.0
        %4303 = vmatpush1.msra.mxu0 %v1530
        %4304 = vmatprep.mubr.f32.mxu0 %v2719
        %4305 = vmatmul.mubr.f32.gmra.mrb[0].mxu0 %v2715
        %v4306 = vpop.f32.mrb[0].mxu0
        %v4307 = vadd.f32 %v4237, %v4306
        %v4308 = vpop.f32.mrb[0].mxu0
        %4309 = vdwg.mxu0
        %4310 = vmatprep.subr.mxu0 0.0
        %4311 = vmatpush1.msra.mxu0 %v1531
        %4312 = vmatprep.subr.mxu0 0.0
        %4313 = vmatpush1.msra.mxu0 %v1532
        %4314 = vmatprep.subr.mxu0 0.0
        %4315 = vmatpush1.msra.mxu0 %v1533
        %4316 = vmatprep.subr.mxu0 0.0
        %4317 = vmatpush1.msra.mxu0 %v1534
        %4318 = vmatprep.subr.mxu0 0.0
        %4319 = vmatpush1.msra.mxu0 %v1535
        %4320 = vmatprep.subr.mxu0 0.0
        %4321 = vmatpush1.msra.mxu0 %v1536
        %4322 = vmatprep.subr.mxu0 0.0
        %4323 = vmatpush1.msra.mxu0 %v1537
        %4324 = vmatprep.subr.mxu0 0.0
        %4325 = vmatpush1.msra.mxu0 %v1538
        %4326 = vmatprep.subr.mxu0 0.0
        %4327 = vmatpush1.msra.mxu0 %v1539
        %4328 = vmatprep.subr.mxu0 0.0
        %4329 = vmatpush1.msra.mxu0 %v1540
        %4330 = vmatprep.subr.mxu0 0.0
        %4331 = vmatpush1.msra.mxu0 %v1541
        %4332 = vmatprep.subr.mxu0 0.0
        %4333 = vmatpush1.msra.mxu0 %v1542
        %4334 = vmatprep.subr.mxu0 0.0
        %4335 = vmatpush1.msra.mxu0 %v1543
        %4336 = vmatprep.subr.mxu0 0.0
        %4337 = vmatpush1.msra.mxu0 %v1544
        %4338 = vmatprep.subr.mxu0 0.0
        %4339 = vmatpush1.msra.mxu0 %v1545
        %4340 = vmatprep.subr.mxu0 0.0
        %4341 = vmatpush1.msra.mxu0 %v1546
        %4342 = vmatprep.subr.mxu0 0.0
        %4343 = vmatpush1.msra.mxu0 %v1547
        %4344 = vmatprep.subr.mxu0 0.0
        %4345 = vmatpush1.msra.mxu0 %v1548
        %4346 = vmatprep.subr.mxu0 0.0
        %4347 = vmatpush1.msra.mxu0 %v1549
        %4348 = vmatprep.subr.mxu0 0.0
        %4349 = vmatpush1.msra.mxu0 %v1550
        %4350 = vmatprep.subr.mxu0 0.0
        %4351 = vmatpush1.msra.mxu0 %v1551
        %4352 = vmatprep.subr.mxu0 0.0
        %4353 = vmatpush1.msra.mxu0 %v1552
        %4354 = vmatprep.subr.mxu0 0.0
        %4355 = vmatpush1.msra.mxu0 %v1553
        %4356 = vmatprep.subr.mxu0 0.0
        %4357 = vmatpush1.msra.mxu0 %v1554
        %4358 = vmatprep.subr.mxu0 0.0
        %4359 = vmatpush1.msra.mxu0 %v1555
        %4360 = vmatprep.subr.mxu0 0.0
        %4361 = vmatpush1.msra.mxu0 %v1556
        %4362 = vmatprep.subr.mxu0 0.0
        %4363 = vmatpush1.msra.mxu0 %v1557
        %4364 = vmatprep.subr.mxu0 0.0
        %4365 = vmatpush1.msra.mxu0 %v1558
        %4366 = vmatprep.subr.mxu0 0.0
        %4367 = vmatpush1.msra.mxu0 %v1559
        %4368 = vmatprep.subr.mxu0 0.0
        %4369 = vmatpush1.msra.mxu0 %v1560
        %4370 = vmatprep.subr.mxu0 0.0
        %4371 = vmatpush1.msra.mxu0 %v1561
        %4372 = vmatprep.subr.mxu0 0.0
        %4373 = vmatpush1.msra.mxu0 %v1562
        %4374 = vmatprep.mubr.f32.mxu0 %v2720
        %4375 = vmatmul.mubr.f32.gmra.mrb[0].mxu0 %v2716
        %v4376 = vpop.f32.mrb[0].mxu0
        %v4377 = vadd.f32 %v4307, %v4376
        %v4378 = vpop.f32.mrb[0].mxu0
        %4379 = vdwg.mxu0
        %4380 = vmatprep.subr.mxu0 0.0
        %4381 = vmatpush1.msra.mxu0 %v1563
        %4382 = vmatprep.subr.mxu0 0.0
        %4383 = vmatpush1.msra.mxu0 %v1564
        %4384 = vmatprep.subr.mxu0 0.0
        %4385 = vmatpush1.msra.mxu0 %v1565
        %4386 = vmatprep.subr.mxu0 0.0
        %4387 = vmatpush1.msra.mxu0 %v1566
        %4388 = vmatprep.subr.mxu0 0.0
        %4389 = vmatpush1.msra.mxu0 %v1567
        %4390 = vmatprep.subr.mxu0 0.0
        %4391 = vmatpush1.msra.mxu0 %v1568
        %4392 = vmatprep.subr.mxu0 0.0
        %4393 = vmatpush1.msra.mxu0 %v1569
        %4394 = vmatprep.subr.mxu0 0.0
        %4395 = vmatpush1.msra.mxu0 %v1570
        %4396 = vmatprep.subr.mxu0 0.0
        %4397 = vmatpush1.msra.mxu0 %v1571
        %4398 = vmatprep.subr.mxu0 0.0
        %4399 = vmatpush1.msra.mxu0 %v1572
        %4400 = vmatprep.subr.mxu0 0.0
        %4401 = vmatpush1.msra.mxu0 %v1573
        %4402 = vmatprep.subr.mxu0 0.0
        %4403 = vmatpush1.msra.mxu0 %v1574
        %4404 = vmatprep.subr.mxu0 0.0
        %4405 = vmatpush1.msra.mxu0 %v1575
        %4406 = vmatprep.subr.mxu0 0.0
        %4407 = vmatpush1.msra.mxu0 %v1576
        %4408 = vmatprep.subr.mxu0 0.0
        %4409 = vmatpush1.msra.mxu0 %v1577
        %4410 = vmatprep.subr.mxu0 0.0
        %4411 = vmatpush1.msra.mxu0 %v1578
        %4412 = vmatprep.subr.mxu0 0.0
        %4413 = vmatpush1.msra.mxu0 %v1579
        %4414 = vmatprep.subr.mxu0 0.0
        %4415 = vmatpush1.msra.mxu0 %v1580
        %4416 = vmatprep.subr.mxu0 0.0
        %4417 = vmatpush1.msra.mxu0 %v1581
        %4418 = vmatprep.subr.mxu0 0.0
        %4419 = vmatpush1.msra.mxu0 %v1582
        %4420 = vmatprep.subr.mxu0 0.0
        %4421 = vmatpush1.msra.mxu0 %v1583
        %4422 = vmatprep.subr.mxu0 0.0
        %4423 = vmatpush1.msra.mxu0 %v1584
        %4424 = vmatprep.subr.mxu0 0.0
        %4425 = vmatpush1.msra.mxu0 %v1585
        %4426 = vmatprep.subr.mxu0 0.0
        %4427 = vmatpush1.msra.mxu0 %v1586
        %4428 = vmatprep.subr.mxu0 0.0
        %4429 = vmatpush1.msra.mxu0 %v1587
        %4430 = vmatprep.subr.mxu0 0.0
        %4431 = vmatpush1.msra.mxu0 %v1588
        %4432 = vmatprep.subr.mxu0 0.0
        %4433 = vmatpush1.msra.mxu0 %v1589
        %4434 = vmatprep.subr.mxu0 0.0
        %4435 = vmatpush1.msra.mxu0 %v1590
        %4436 = vmatprep.subr.mxu0 0.0
        %4437 = vmatpush1.msra.mxu0 %v1591
        %4438 = vmatprep.subr.mxu0 0.0
        %4439 = vmatpush1.msra.mxu0 %v1592
        %4440 = vmatprep.subr.mxu0 0.0
        %4441 = vmatpush1.msra.mxu0 %v1593
        %4442 = vmatprep.subr.mxu0 0.0
        %4443 = vmatpush1.msra.mxu0 %v1594
        %4444 = vmatprep.mubr.f32.mxu0 %v2721
        %4445 = vmatmul.mubr.f32.gmra.mrb[0].mxu0 %v2717
        %v4446 = vpop.f32.mrb[0].mxu0
        %v4447 = vadd.f32 %v4377, %v4446
        %v4448 = vpop.f32.mrb[0].mxu0
        %4449 = vdwg.mxu0
        %4450 = vmatprep.subr.mxu0 0.0
        %4451 = vmatpush1.msra.mxu0 %v1595
        %4452 = vmatprep.subr.mxu0 0.0
        %4453 = vmatpush1.msra.mxu0 %v1596
        %4454 = vmatprep.subr.mxu0 0.0
        %4455 = vmatpush1.msra.mxu0 %v1597
        %4456 = vmatprep.subr.mxu0 0.0
        %4457 = vmatpush1.msra.mxu0 %v1598
        %4458 = vmatprep.subr.mxu0 0.0
        %4459 = vmatpush1.msra.mxu0 %v1599
        %4460 = vmatprep.subr.mxu0 0.0
        %4461 = vmatpush1.msra.mxu0 %v1600
        %4462 = vmatprep.subr.mxu0 0.0
        %4463 = vmatpush1.msra.mxu0 %v1601
        %4464 = vmatprep.subr.mxu0 0.0
        %4465 = vmatpush1.msra.mxu0 %v1602
        %4466 = vmatprep.subr.mxu0 0.0
        %4467 = vmatpush1.msra.mxu0 %v1603
        %4468 = vmatprep.subr.mxu0 0.0
        %4469 = vmatpush1.msra.mxu0 %v1604
        %4470 = vmatprep.subr.mxu0 0.0
        %4471 = vmatpush1.msra.mxu0 %v1605
        %4472 = vmatprep.subr.mxu0 0.0
        %4473 = vmatpush1.msra.mxu0 %v1606
        %4474 = vmatprep.subr.mxu0 0.0
        %4475 = vmatpush1.msra.mxu0 %v1607
        %4476 = vmatprep.subr.mxu0 0.0
        %4477 = vmatpush1.msra.mxu0 %v1608
        %4478 = vmatprep.subr.mxu0 0.0
        %4479 = vmatpush1.msra.mxu0 %v1609
        %4480 = vmatprep.subr.mxu0 0.0
        %4481 = vmatpush1.msra.mxu0 %v1610
        %4482 = vmatprep.subr.mxu0 0.0
        %4483 = vmatpush1.msra.mxu0 %v1611
        %4484 = vmatprep.subr.mxu0 0.0
        %4485 = vmatpush1.msra.mxu0 %v1612
        %4486 = vmatprep.subr.mxu0 0.0
        %4487 = vmatpush1.msra.mxu0 %v1613
        %4488 = vmatprep.subr.mxu0 0.0
        %4489 = vmatpush1.msra.mxu0 %v1614
        %4490 = vmatprep.subr.mxu0 0.0
        %4491 = vmatpush1.msra.mxu0 %v1615
        %4492 = vmatprep.subr.mxu0 0.0
        %4493 = vmatpush1.msra.mxu0 %v1616
        %4494 = vmatprep.subr.mxu0 0.0
        %4495 = vmatpush1.msra.mxu0 %v1617
        %4496 = vmatprep.subr.mxu0 0.0
        %4497 = vmatpush1.msra.mxu0 %v1618
        %4498 = vmatprep.subr.mxu0 0.0
        %4499 = vmatpush1.msra.mxu0 %v1619
        %4500 = vmatprep.subr.mxu0 0.0
        %4501 = vmatpush1.msra.mxu0 %v1620
        %4502 = vmatprep.subr.mxu0 0.0
        %4503 = vmatpush1.msra.mxu0 %v1621
        %4504 = vmatprep.subr.mxu0 0.0
        %4505 = vmatpush1.msra.mxu0 %v1622
        %4506 = vmatprep.subr.mxu0 0.0
        %4507 = vmatpush1.msra.mxu0 %v1623
        %4508 = vmatprep.subr.mxu0 0.0
        %4509 = vmatpush1.msra.mxu0 %v1624
        %4510 = vmatprep.subr.mxu0 0.0
        %4511 = vmatpush1.msra.mxu0 %v1625
        %4512 = vmatprep.subr.mxu0 0.0
        %4513 = vmatpush1.msra.mxu0 %v1626
        %4514 = vmatprep.mubr.f32.mxu0 %v2854
        %4515 = vmatmul.mubr.f32.gmra.mrb[0].mxu0 %v2850
        %v4516 = vpop.f32.mrb[0].mxu0
        %v4517 = vadd.f32 %v4447, %v4516
        %v4518 = vpop.f32.mrb[0].mxu0
        %4519 = vdwg.mxu0
        %4520 = vmatprep.subr.mxu0 0.0
        %4521 = vmatpush1.msra.mxu0 %v1627
        %4522 = vmatprep.subr.mxu0 0.0
        %4523 = vmatpush1.msra.mxu0 %v1628
        %4524 = vmatprep.subr.mxu0 0.0
        %4525 = vmatpush1.msra.mxu0 %v1629
        %4526 = vmatprep.subr.mxu0 0.0
        %4527 = vmatpush1.msra.mxu0 %v1630
        %4528 = vmatprep.subr.mxu0 0.0
        %4529 = vmatpush1.msra.mxu0 %v1631
        %4530 = vmatprep.subr.mxu0 0.0
        %4531 = vmatpush1.msra.mxu0 %v1632
        %4532 = vmatprep.subr.mxu0 0.0
        %4533 = vmatpush1.msra.mxu0 %v1633
        %4534 = vmatprep.subr.mxu0 0.0
        %4535 = vmatpush1.msra.mxu0 %v1634
        %4536 = vmatprep.subr.mxu0 0.0
        %4537 = vmatpush1.msra.mxu0 %v1635
        %4538 = vmatprep.subr.mxu0 0.0
        %4539 = vmatpush1.msra.mxu0 %v1636
        %4540 = vmatprep.subr.mxu0 0.0
        %4541 = vmatpush1.msra.mxu0 %v1637
        %4542 = vmatprep.subr.mxu0 0.0
        %4543 = vmatpush1.msra.mxu0 %v1638
        %4544 = vmatprep.subr.mxu0 0.0
        %4545 = vmatpush1.msra.mxu0 %v1639
        %4546 = vmatprep.subr.mxu0 0.0
        %4547 = vmatpush1.msra.mxu0 %v1640
        %4548 = vmatprep.subr.mxu0 0.0
        %4549 = vmatpush1.msra.mxu0 %v1641
        %4550 = vmatprep.subr.mxu0 0.0
        %4551 = vmatpush1.msra.mxu0 %v1642
        %4552 = vmatprep.subr.mxu0 0.0
        %4553 = vmatpush1.msra.mxu0 %v1643
        %4554 = vmatprep.subr.mxu0 0.0
        %4555 = vmatpush1.msra.mxu0 %v1644
        %4556 = vmatprep.subr.mxu0 0.0
        %4557 = vmatpush1.msra.mxu0 %v1645
        %4558 = vmatprep.subr.mxu0 0.0
        %4559 = vmatpush1.msra.mxu0 %v1646
        %4560 = vmatprep.subr.mxu0 0.0
        %4561 = vmatpush1.msra.mxu0 %v1647
        %4562 = vmatprep.subr.mxu0 0.0
        %4563 = vmatpush1.msra.mxu0 %v1648
        %4564 = vmatprep.subr.mxu0 0.0
        %4565 = vmatpush1.msra.mxu0 %v1649
        %4566 = vmatprep.subr.mxu0 0.0
        %4567 = vmatpush1.msra.mxu0 %v1650
        %4568 = vmatprep.subr.mxu0 0.0
        %4569 = vmatpush1.msra.mxu0 %v1651
        %4570 = vmatprep.subr.mxu0 0.0
        %4571 = vmatpush1.msra.mxu0 %v1652
        %4572 = vmatprep.subr.mxu0 0.0
        %4573 = vmatpush1.msra.mxu0 %v1653
        %4574 = vmatprep.subr.mxu0 0.0
        %4575 = vmatpush1.msra.mxu0 %v1654
        %4576 = vmatprep.subr.mxu0 0.0
        %4577 = vmatpush1.msra.mxu0 %v1655
        %4578 = vmatprep.subr.mxu0 0.0
        %4579 = vmatpush1.msra.mxu0 %v1656
        %4580 = vmatprep.subr.mxu0 0.0
        %4581 = vmatpush1.msra.mxu0 %v1657
        %4582 = vmatprep.subr.mxu0 0.0
        %4583 = vmatpush1.msra.mxu0 %v1658
        %4584 = vmatprep.mubr.f32.mxu0 %v2855
        %4585 = vmatmul.mubr.f32.gmra.mrb[0].mxu0 %v2851
        %v4586 = vpop.f32.mrb[0].mxu0
        %v4587 = vadd.f32 %v4517, %v4586
        %v4588 = vpop.f32.mrb[0].mxu0
        %4589 = vdwg.mxu0
        %4590 = vmatprep.subr.mxu0 0.0
        %4591 = vmatpush1.msra.mxu0 %v1659
        %4592 = vmatprep.subr.mxu0 0.0
        %4593 = vmatpush1.msra.mxu0 %v1660
        %4594 = vmatprep.subr.mxu0 0.0
        %4595 = vmatpush1.msra.mxu0 %v1661
        %4596 = vmatprep.subr.mxu0 0.0
        %4597 = vmatpush1.msra.mxu0 %v1662
        %4598 = vmatprep.subr.mxu0 0.0
        %4599 = vmatpush1.msra.mxu0 %v1663
        %4600 = vmatprep.subr.mxu0 0.0
        %4601 = vmatpush1.msra.mxu0 %v1664
        %4602 = vmatprep.subr.mxu0 0.0
        %4603 = vmatpush1.msra.mxu0 %v1665
        %4604 = vmatprep.subr.mxu0 0.0
        %4605 = vmatpush1.msra.mxu0 %v1666
        %4606 = vmatprep.subr.mxu0 0.0
        %4607 = vmatpush1.msra.mxu0 %v1667
        %4608 = vmatprep.subr.mxu0 0.0
        %4609 = vmatpush1.msra.mxu0 %v1668
        %4610 = vmatprep.subr.mxu0 0.0
        %4611 = vmatpush1.msra.mxu0 %v1669
        %4612 = vmatprep.subr.mxu0 0.0
        %4613 = vmatpush1.msra.mxu0 %v1670
        %4614 = vmatprep.subr.mxu0 0.0
        %4615 = vmatpush1.msra.mxu0 %v1671
        %4616 = vmatprep.subr.mxu0 0.0
        %4617 = vmatpush1.msra.mxu0 %v1672
        %4618 = vmatprep.subr.mxu0 0.0
        %4619 = vmatpush1.msra.mxu0 %v1673
        %4620 = vmatprep.subr.mxu0 0.0
        %4621 = vmatpush1.msra.mxu0 %v1674
        %4622 = vmatprep.subr.mxu0 0.0
        %4623 = vmatpush1.msra.mxu0 %v1675
        %4624 = vmatprep.subr.mxu0 0.0
        %4625 = vmatpush1.msra.mxu0 %v1676
        %4626 = vmatprep.subr.mxu0 0.0
        %4627 = vmatpush1.msra.mxu0 %v1677
        %4628 = vmatprep.subr.mxu0 0.0
        %4629 = vmatpush1.msra.mxu0 %v1678
        %4630 = vmatprep.subr.mxu0 0.0
        %4631 = vmatpush1.msra.mxu0 %v1679
        %4632 = vmatprep.subr.mxu0 0.0
        %4633 = vmatpush1.msra.mxu0 %v1680
        %4634 = vmatprep.subr.mxu0 0.0
        %4635 = vmatpush1.msra.mxu0 %v1681
        %4636 = vmatprep.subr.mxu0 0.0
        %4637 = vmatpush1.msra.mxu0 %v1682
        %4638 = vmatprep.subr.mxu0 0.0
        %4639 = vmatpush1.msra.mxu0 %v1683
        %4640 = vmatprep.subr.mxu0 0.0
        %4641 = vmatpush1.msra.mxu0 %v1684
        %4642 = vmatprep.subr.mxu0 0.0
        %4643 = vmatpush1.msra.mxu0 %v1685
        %4644 = vmatprep.subr.mxu0 0.0
        %4645 = vmatpush1.msra.mxu0 %v1686
        %4646 = vmatprep.subr.mxu0 0.0
        %4647 = vmatpush1.msra.mxu0 %v1687
        %4648 = vmatprep.subr.mxu0 0.0
        %4649 = vmatpush1.msra.mxu0 %v1688
        %4650 = vmatprep.subr.mxu0 0.0
        %4651 = vmatpush1.msra.mxu0 %v1689
        %4652 = vmatprep.subr.mxu0 0.0
        %4653 = vmatpush1.msra.mxu0 %v1690
        %4654 = vmatprep.mubr.f32.mxu0 %v2856
        %4655 = vmatmul.mubr.f32.gmra.mrb[0].mxu0 %v2852
        %v4656 = vpop.f32.mrb[0].mxu0
        %v4657 = vadd.f32 %v4587, %v4656
        %v4658 = vpop.f32.mrb[0].mxu0
        %4659 = vdwg.mxu0
        %4660 = vmatprep.subr.mxu0 0.0
        %4661 = vmatpush1.msra.mxu0 %v1691
        %4662 = vmatprep.subr.mxu0 0.0
        %4663 = vmatpush1.msra.mxu0 %v1692
        %4664 = vmatprep.subr.mxu0 0.0
        %4665 = vmatpush1.msra.mxu0 %v1693
        %4666 = vmatprep.subr.mxu0 0.0
        %4667 = vmatpush1.msra.mxu0 %v1694
        %4668 = vmatprep.subr.mxu0 0.0
        %4669 = vmatpush1.msra.mxu0 %v1695
        %4670 = vmatprep.subr.mxu0 0.0
        %4671 = vmatpush1.msra.mxu0 %v1696
        %4672 = vmatprep.subr.mxu0 0.0
        %4673 = vmatpush1.msra.mxu0 %v1697
        %4674 = vmatprep.subr.mxu0 0.0
        %4675 = vmatpush1.msra.mxu0 %v1698
        %4676 = vmatprep.subr.mxu0 0.0
        %4677 = vmatpush1.msra.mxu0 %v1699
        %4678 = vmatprep.subr.mxu0 0.0
        %4679 = vmatpush1.msra.mxu0 %v1700
        %4680 = vmatprep.subr.mxu0 0.0
        %4681 = vmatpush1.msra.mxu0 %v1701
        %4682 = vmatprep.subr.mxu0 0.0
        %4683 = vmatpush1.msra.mxu0 %v1702
        %4684 = vmatprep.subr.mxu0 0.0
        %4685 = vmatpush1.msra.mxu0 %v1703
        %4686 = vmatprep.subr.mxu0 0.0
        %4687 = vmatpush1.msra.mxu0 %v1704
        %4688 = vmatprep.subr.mxu0 0.0
        %4689 = vmatpush1.msra.mxu0 %v1705
        %4690 = vmatprep.subr.mxu0 0.0
        %4691 = vmatpush1.msra.mxu0 %v1706
        %4692 = vmatprep.subr.mxu0 0.0
        %4693 = vmatpush1.msra.mxu0 %v1707
        %4694 = vmatprep.subr.mxu0 0.0
        %4695 = vmatpush1.msra.mxu0 %v1708
        %4696 = vmatprep.subr.mxu0 0.0
        %4697 = vmatpush1.msra.mxu0 %v1709
        %4698 = vmatprep.subr.mxu0 0.0
        %4699 = vmatpush1.msra.mxu0 %v1710
        %4700 = vmatprep.subr.mxu0 0.0
        %4701 = vmatpush1.msra.mxu0 %v1711
        %4702 = vmatprep.subr.mxu0 0.0
        %4703 = vmatpush1.msra.mxu0 %v1712
        %4704 = vmatprep.subr.mxu0 0.0
        %4705 = vmatpush1.msra.mxu0 %v1713
        %4706 = vmatprep.subr.mxu0 0.0
        %4707 = vmatpush1.msra.mxu0 %v1714
        %4708 = vmatprep.subr.mxu0 0.0
        %4709 = vmatpush1.msra.mxu0 %v1715
        %4710 = vmatprep.subr.mxu0 0.0
        %4711 = vmatpush1.msra.mxu0 %v1716
        %4712 = vmatprep.subr.mxu0 0.0
        %4713 = vmatpush1.msra.mxu0 %v1717
        %4714 = vmatprep.subr.mxu0 0.0
        %4715 = vmatpush1.msra.mxu0 %v1718
        %4716 = vmatprep.subr.mxu0 0.0
        %4717 = vmatpush1.msra.mxu0 %v1719
        %4718 = vmatprep.subr.mxu0 0.0
        %4719 = vmatpush1.msra.mxu0 %v1720
        %4720 = vmatprep.subr.mxu0 0.0
        %4721 = vmatpush1.msra.mxu0 %v1721
        %4722 = vmatprep.subr.mxu0 0.0
        %4723 = vmatpush1.msra.mxu0 %v1722
        %4724 = vmatprep.mubr.f32.mxu0 %v2857
        %4725 = vmatmul.mubr.f32.gmra.mrb[0].mxu0 %v2853
        %v4726 = vpop.f32.mrb[0].mxu0
        %v4727 = vadd.f32 %v4657, %v4726
        %v4728 = vpop.f32.mrb[0].mxu0
        %4729 = vdwg.mxu0
        %4730 = vmatprep.subr.mxu0 0.0
        %4731 = vmatpush1.msra.mxu0 %v1723
        %4732 = vmatprep.subr.mxu0 0.0
        %4733 = vmatpush1.msra.mxu0 %v1724
        %4734 = vmatprep.subr.mxu0 0.0
        %4735 = vmatpush1.msra.mxu0 %v1725
        %4736 = vmatprep.subr.mxu0 0.0
        %4737 = vmatpush1.msra.mxu0 %v1726
        %4738 = vmatprep.subr.mxu0 0.0
        %4739 = vmatpush1.msra.mxu0 %v1727
        %4740 = vmatprep.subr.mxu0 0.0
        %4741 = vmatpush1.msra.mxu0 %v1728
        %4742 = vmatprep.subr.mxu0 0.0
        %4743 = vmatpush1.msra.mxu0 %v1729
        %4744 = vmatprep.subr.mxu0 0.0
        %4745 = vmatpush1.msra.mxu0 %v1730
        %4746 = vmatprep.subr.mxu0 0.0
        %4747 = vmatpush1.msra.mxu0 %v1731
        %4748 = vmatprep.subr.mxu0 0.0
        %4749 = vmatpush1.msra.mxu0 %v1732
        %4750 = vmatprep.subr.mxu0 0.0
        %4751 = vmatpush1.msra.mxu0 %v1733
        %4752 = vmatprep.subr.mxu0 0.0
        %4753 = vmatpush1.msra.mxu0 %v1734
        %4754 = vmatprep.subr.mxu0 0.0
        %4755 = vmatpush1.msra.mxu0 %v1735
        %4756 = vmatprep.subr.mxu0 0.0
        %4757 = vmatpush1.msra.mxu0 %v1736
        %4758 = vmatprep.subr.mxu0 0.0
        %4759 = vmatpush1.msra.mxu0 %v1737
        %4760 = vmatprep.subr.mxu0 0.0
        %4761 = vmatpush1.msra.mxu0 %v1738
        %4762 = vmatprep.subr.mxu0 0.0
        %4763 = vmatpush1.msra.mxu0 %v1739
        %4764 = vmatprep.subr.mxu0 0.0
        %4765 = vmatpush1.msra.mxu0 %v1740
        %4766 = vmatprep.subr.mxu0 0.0
        %4767 = vmatpush1.msra.mxu0 %v1741
        %4768 = vmatprep.subr.mxu0 0.0
        %4769 = vmatpush1.msra.mxu0 %v1742
        %4770 = vmatprep.subr.mxu0 0.0
        %4771 = vmatpush1.msra.mxu0 %v1743
        %4772 = vmatprep.subr.mxu0 0.0
        %4773 = vmatpush1.msra.mxu0 %v1744
        %4774 = vmatprep.subr.mxu0 0.0
        %4775 = vmatpush1.msra.mxu0 %v1745
        %4776 = vmatprep.subr.mxu0 0.0
        %4777 = vmatpush1.msra.mxu0 %v1746
        %4778 = vmatprep.subr.mxu0 0.0
        %4779 = vmatpush1.msra.mxu0 %v1747
        %4780 = vmatprep.subr.mxu0 0.0
        %4781 = vmatpush1.msra.mxu0 %v1748
        %4782 = vmatprep.subr.mxu0 0.0
        %4783 = vmatpush1.msra.mxu0 %v1749
        %4784 = vmatprep.subr.mxu0 0.0
        %4785 = vmatpush1.msra.mxu0 %v1750
        %4786 = vmatprep.subr.mxu0 0.0
        %4787 = vmatpush1.msra.mxu0 %v1751
        %4788 = vmatprep.subr.mxu0 0.0
        %4789 = vmatpush1.msra.mxu0 %v1752
        %4790 = vmatprep.subr.mxu0 0.0
        %4791 = vmatpush1.msra.mxu0 %v1753
        %4792 = vmatprep.subr.mxu0 0.0
        %4793 = vmatpush1.msra.mxu0 %v1754
        %4794 = vmatprep.mubr.f32.mxu0 %v2990
        %4795 = vmatmul.mubr.f32.gmra.mrb[0].mxu0 %v2986
        %v4796 = vpop.f32.mrb[0].mxu0
        %v4797 = vadd.f32 %v4727, %v4796
        %v4798 = vpop.f32.mrb[0].mxu0
        %4799 = vdwg.mxu0
        %4800 = vmatprep.subr.mxu0 0.0
        %4801 = vmatpush1.msra.mxu0 %v1755
        %4802 = vmatprep.subr.mxu0 0.0
        %4803 = vmatpush1.msra.mxu0 %v1756
        %4804 = vmatprep.subr.mxu0 0.0
        %4805 = vmatpush1.msra.mxu0 %v1757
        %4806 = vmatprep.subr.mxu0 0.0
        %4807 = vmatpush1.msra.mxu0 %v1758
        %4808 = vmatprep.subr.mxu0 0.0
        %4809 = vmatpush1.msra.mxu0 %v1759
        %4810 = vmatprep.subr.mxu0 0.0
        %4811 = vmatpush1.msra.mxu0 %v1760
        %4812 = vmatprep.subr.mxu0 0.0
        %4813 = vmatpush1.msra.mxu0 %v1761
        %4814 = vmatprep.subr.mxu0 0.0
        %4815 = vmatpush1.msra.mxu0 %v1762
        %4816 = vmatprep.subr.mxu0 0.0
        %4817 = vmatpush1.msra.mxu0 %v1763
        %4818 = vmatprep.subr.mxu0 0.0
        %4819 = vmatpush1.msra.mxu0 %v1764
        %4820 = vmatprep.subr.mxu0 0.0
        %4821 = vmatpush1.msra.mxu0 %v1765
        %4822 = vmatprep.subr.mxu0 0.0
        %4823 = vmatpush1.msra.mxu0 %v1766
        %4824 = vmatprep.subr.mxu0 0.0
        %4825 = vmatpush1.msra.mxu0 %v1767
        %4826 = vmatprep.subr.mxu0 0.0
        %4827 = vmatpush1.msra.mxu0 %v1768
        %4828 = vmatprep.subr.mxu0 0.0
        %4829 = vmatpush1.msra.mxu0 %v1769
        %4830 = vmatprep.subr.mxu0 0.0
        %4831 = vmatpush1.msra.mxu0 %v1770
        %4832 = vmatprep.subr.mxu0 0.0
        %4833 = vmatpush1.msra.mxu0 %v1771
        %4834 = vmatprep.subr.mxu0 0.0
        %4835 = vmatpush1.msra.mxu0 %v1772
        %4836 = vmatprep.subr.mxu0 0.0
        %4837 = vmatpush1.msra.mxu0 %v1773
        %4838 = vmatprep.subr.mxu0 0.0
        %4839 = vmatpush1.msra.mxu0 %v1774
        %4840 = vmatprep.subr.mxu0 0.0
        %4841 = vmatpush1.msra.mxu0 %v1775
        %4842 = vmatprep.subr.mxu0 0.0
        %4843 = vmatpush1.msra.mxu0 %v1776
        %4844 = vmatprep.subr.mxu0 0.0
        %4845 = vmatpush1.msra.mxu0 %v1777
        %4846 = vmatprep.subr.mxu0 0.0
        %4847 = vmatpush1.msra.mxu0 %v1778
        %4848 = vmatprep.subr.mxu0 0.0
        %4849 = vmatpush1.msra.mxu0 %v1779
        %4850 = vmatprep.subr.mxu0 0.0
        %4851 = vmatpush1.msra.mxu0 %v1780
        %4852 = vmatprep.subr.mxu0 0.0
        %4853 = vmatpush1.msra.mxu0 %v1781
        %4854 = vmatprep.subr.mxu0 0.0
        %4855 = vmatpush1.msra.mxu0 %v1782
        %4856 = vmatprep.subr.mxu0 0.0
        %4857 = vmatpush1.msra.mxu0 %v1783
        %4858 = vmatprep.subr.mxu0 0.0
        %4859 = vmatpush1.msra.mxu0 %v1784
        %4860 = vmatprep.subr.mxu0 0.0
        %4861 = vmatpush1.msra.mxu0 %v1785
        %4862 = vmatprep.subr.mxu0 0.0
        %4863 = vmatpush1.msra.mxu0 %v1786
        %4864 = vmatprep.mubr.f32.mxu0 %v2991
        %4865 = vmatmul.mubr.f32.gmra.mrb[0].mxu0 %v2987
        %v4866 = vpop.f32.mrb[0].mxu0
        %v4867 = vadd.f32 %v4797, %v4866
        %v4868 = vpop.f32.mrb[0].mxu0
        %4869 = vdwg.mxu0
        %4870 = vmatprep.subr.mxu0 0.0
        %4871 = vmatpush1.msra.mxu0 %v1787
        %4872 = vmatprep.subr.mxu0 0.0
        %4873 = vmatpush1.msra.mxu0 %v1788
        %4874 = vmatprep.subr.mxu0 0.0
        %4875 = vmatpush1.msra.mxu0 %v1789
        %4876 = vmatprep.subr.mxu0 0.0
        %4877 = vmatpush1.msra.mxu0 %v1790
        %4878 = vmatprep.subr.mxu0 0.0
        %4879 = vmatpush1.msra.mxu0 %v1791
        %4880 = vmatprep.subr.mxu0 0.0
        %4881 = vmatpush1.msra.mxu0 %v1792
        %4882 = vmatprep.subr.mxu0 0.0
        %4883 = vmatpush1.msra.mxu0 %v1793
        %4884 = vmatprep.subr.mxu0 0.0
        %4885 = vmatpush1.msra.mxu0 %v1794
        %4886 = vmatprep.subr.mxu0 0.0
        %4887 = vmatpush1.msra.mxu0 %v1795
        %4888 = vmatprep.subr.mxu0 0.0
        %4889 = vmatpush1.msra.mxu0 %v1796
        %4890 = vmatprep.subr.mxu0 0.0
        %4891 = vmatpush1.msra.mxu0 %v1797
        %4892 = vmatprep.subr.mxu0 0.0
        %4893 = vmatpush1.msra.mxu0 %v1798
        %4894 = vmatprep.subr.mxu0 0.0
        %4895 = vmatpush1.msra.mxu0 %v1799
        %4896 = vmatprep.subr.mxu0 0.0
        %4897 = vmatpush1.msra.mxu0 %v1800
        %4898 = vmatprep.subr.mxu0 0.0
        %4899 = vmatpush1.msra.mxu0 %v1801
        %4900 = vmatprep.subr.mxu0 0.0
        %4901 = vmatpush1.msra.mxu0 %v1802
        %4902 = vmatprep.subr.mxu0 0.0
        %4903 = vmatpush1.msra.mxu0 %v1803
        %4904 = vmatprep.subr.mxu0 0.0
        %4905 = vmatpush1.msra.mxu0 %v1804
        %4906 = vmatprep.subr.mxu0 0.0
        %4907 = vmatpush1.msra.mxu0 %v1805
        %4908 = vmatprep.subr.mxu0 0.0
        %4909 = vmatpush1.msra.mxu0 %v1806
        %4910 = vmatprep.subr.mxu0 0.0
        %4911 = vmatpush1.msra.mxu0 %v1807
        %4912 = vmatprep.subr.mxu0 0.0
        %4913 = vmatpush1.msra.mxu0 %v1808
        %4914 = vmatprep.subr.mxu0 0.0
        %4915 = vmatpush1.msra.mxu0 %v1809
        %4916 = vmatprep.subr.mxu0 0.0
        %4917 = vmatpush1.msra.mxu0 %v1810
        %4918 = vmatprep.subr.mxu0 0.0
        %4919 = vmatpush1.msra.mxu0 %v1811
        %4920 = vmatprep.subr.mxu0 0.0
        %4921 = vmatpush1.msra.mxu0 %v1812
        %4922 = vmatprep.subr.mxu0 0.0
        %4923 = vmatpush1.msra.mxu0 %v1813
        %4924 = vmatprep.subr.mxu0 0.0
        %4925 = vmatpush1.msra.mxu0 %v1814
        %4926 = vmatprep.subr.mxu0 0.0
        %4927 = vmatpush1.msra.mxu0 %v1815
        %4928 = vmatprep.subr.mxu0 0.0
        %4929 = vmatpush1.msra.mxu0 %v1816
        %4930 = vmatprep.subr.mxu0 0.0
        %4931 = vmatpush1.msra.mxu0 %v1817
        %4932 = vmatprep.subr.mxu0 0.0
        %4933 = vmatpush1.msra.mxu0 %v1818
        %4934 = vmatprep.mubr.f32.mxu0 %v2992
        %4935 = vmatmul.mubr.f32.gmra.mrb[0].mxu0 %v2988
        %v4936 = vpop.f32.mrb[0].mxu0
        %v4937 = vadd.f32 %v4867, %v4936
        %v4938 = vpop.f32.mrb[0].mxu0
        %4939 = vdwg.mxu0
        %4940 = vmatprep.subr.mxu0 0.0
        %4941 = vmatpush1.msra.mxu0 %v1819
        %4942 = vmatprep.subr.mxu0 0.0
        %4943 = vmatpush1.msra.mxu0 %v1820
        %4944 = vmatprep.subr.mxu0 0.0
        %4945 = vmatpush1.msra.mxu0 %v1821
        %4946 = vmatprep.subr.mxu0 0.0
        %4947 = vmatpush1.msra.mxu0 %v1822
        %4948 = vmatprep.subr.mxu0 0.0
        %4949 = vmatpush1.msra.mxu0 %v1823
        %4950 = vmatprep.subr.mxu0 0.0
        %4951 = vmatpush1.msra.mxu0 %v1824
        %4952 = vmatprep.subr.mxu0 0.0
        %4953 = vmatpush1.msra.mxu0 %v1825
        %4954 = vmatprep.subr.mxu0 0.0
        %4955 = vmatpush1.msra.mxu0 %v1826
        %4956 = vmatprep.subr.mxu0 0.0
        %4957 = vmatpush1.msra.mxu0 %v1827
        %4958 = vmatprep.subr.mxu0 0.0
        %4959 = vmatpush1.msra.mxu0 %v1828
        %4960 = vmatprep.subr.mxu0 0.0
        %4961 = vmatpush1.msra.mxu0 %v1829
        %4962 = vmatprep.subr.mxu0 0.0
        %4963 = vmatpush1.msra.mxu0 %v1830
        %4964 = vmatprep.subr.mxu0 0.0
        %4965 = vmatpush1.msra.mxu0 %v1831
        %4966 = vmatprep.subr.mxu0 0.0
        %4967 = vmatpush1.msra.mxu0 %v1832
        %4968 = vmatprep.subr.mxu0 0.0
        %4969 = vmatpush1.msra.mxu0 %v1833
        %4970 = vmatprep.subr.mxu0 0.0
        %4971 = vmatpush1.msra.mxu0 %v1834
        %4972 = vmatprep.subr.mxu0 0.0
        %4973 = vmatpush1.msra.mxu0 %v1835
        %4974 = vmatprep.subr.mxu0 0.0
        %4975 = vmatpush1.msra.mxu0 %v1836
        %4976 = vmatprep.subr.mxu0 0.0
        %4977 = vmatpush1.msra.mxu0 %v1837
        %4978 = vmatprep.subr.mxu0 0.0
        %4979 = vmatpush1.msra.mxu0 %v1838
        %4980 = vmatprep.subr.mxu0 0.0
        %4981 = vmatpush1.msra.mxu0 %v1839
        %4982 = vmatprep.subr.mxu0 0.0
        %4983 = vmatpush1.msra.mxu0 %v1840
        %4984 = vmatprep.subr.mxu0 0.0
        %4985 = vmatpush1.msra.mxu0 %v1841
        %4986 = vmatprep.subr.mxu0 0.0
        %4987 = vmatpush1.msra.mxu0 %v1842
        %4988 = vmatprep.subr.mxu0 0.0
        %4989 = vmatpush1.msra.mxu0 %v1843
        %4990 = vmatprep.subr.mxu0 0.0
        %4991 = vmatpush1.msra.mxu0 %v1844
        %4992 = vmatprep.subr.mxu0 0.0
        %4993 = vmatpush1.msra.mxu0 %v1845
        %4994 = vmatprep.subr.mxu0 0.0
        %4995 = vmatpush1.msra.mxu0 %v1846
        %4996 = vmatprep.subr.mxu0 0.0
        %4997 = vmatpush1.msra.mxu0 %v1847
        %4998 = vmatprep.subr.mxu0 0.0
        %4999 = vmatpush1.msra.mxu0 %v1848
        %5000 = vmatprep.subr.mxu0 0.0
        %5001 = vmatpush1.msra.mxu0 %v1849
        %5002 = vmatprep.subr.mxu0 0.0
        %5003 = vmatpush1.msra.mxu0 %v1850
        %5004 = vmatprep.mubr.f32.mxu0 %v2993
        %5005 = vmatmul.mubr.f32.gmra.mrb[0].mxu0 %v2989
        %v5006 = vpop.f32.mrb[0].mxu0
        %v5007 = vadd.f32 %v4937, %v5006
        %v5008 = vpop.f32.mrb[0].mxu0
        %5009 = vdwg.mxu0
        %5010 = vmatprep.subr.mxu0 0.0
        %5011 = vmatpush1.msra.mxu0 %v1851
        %5012 = vmatprep.subr.mxu0 0.0
        %5013 = vmatpush1.msra.mxu0 %v1852
        %5014 = vmatprep.subr.mxu0 0.0
        %5015 = vmatpush1.msra.mxu0 %v1853
        %5016 = vmatprep.subr.mxu0 0.0
        %5017 = vmatpush1.msra.mxu0 %v1854
        %5018 = vmatprep.subr.mxu0 0.0
        %5019 = vmatpush1.msra.mxu0 %v1855
        %5020 = vmatprep.subr.mxu0 0.0
        %5021 = vmatpush1.msra.mxu0 %v1856
        %5022 = vmatprep.subr.mxu0 0.0
        %5023 = vmatpush1.msra.mxu0 %v1857
        %5024 = vmatprep.subr.mxu0 0.0
        %5025 = vmatpush1.msra.mxu0 %v1858
        %5026 = vmatprep.subr.mxu0 0.0
        %5027 = vmatpush1.msra.mxu0 %v1859
        %5028 = vmatprep.subr.mxu0 0.0
        %5029 = vmatpush1.msra.mxu0 %v1860
        %5030 = vmatprep.subr.mxu0 0.0
        %5031 = vmatpush1.msra.mxu0 %v1861
        %5032 = vmatprep.subr.mxu0 0.0
        %5033 = vmatpush1.msra.mxu0 %v1862
        %5034 = vmatprep.subr.mxu0 0.0
        %5035 = vmatpush1.msra.mxu0 %v1863
        %5036 = vmatprep.subr.mxu0 0.0
        %5037 = vmatpush1.msra.mxu0 %v1864
        %5038 = vmatprep.subr.mxu0 0.0
        %5039 = vmatpush1.msra.mxu0 %v1865
        %5040 = vmatprep.subr.mxu0 0.0
        %5041 = vmatpush1.msra.mxu0 %v1866
        %5042 = vmatprep.subr.mxu0 0.0
        %5043 = vmatpush1.msra.mxu0 %v1867
        %5044 = vmatprep.subr.mxu0 0.0
        %5045 = vmatpush1.msra.mxu0 %v1868
        %5046 = vmatprep.subr.mxu0 0.0
        %5047 = vmatpush1.msra.mxu0 %v1869
        %5048 = vmatprep.subr.mxu0 0.0
        %5049 = vmatpush1.msra.mxu0 %v1870
        %5050 = vmatprep.subr.mxu0 0.0
        %5051 = vmatpush1.msra.mxu0 %v1871
        %5052 = vmatprep.subr.mxu0 0.0
        %5053 = vmatpush1.msra.mxu0 %v1872
        %5054 = vmatprep.subr.mxu0 0.0
        %5055 = vmatpush1.msra.mxu0 %v1873
        %5056 = vmatprep.subr.mxu0 0.0
        %5057 = vmatpush1.msra.mxu0 %v1874
        %5058 = vmatprep.subr.mxu0 0.0
        %5059 = vmatpush1.msra.mxu0 %v1875
        %5060 = vmatprep.subr.mxu0 0.0
        %5061 = vmatpush1.msra.mxu0 %v1876
        %5062 = vmatprep.subr.mxu0 0.0
        %5063 = vmatpush1.msra.mxu0 %v1877
        %5064 = vmatprep.subr.mxu0 0.0
        %5065 = vmatpush1.msra.mxu0 %v1878
        %5066 = vmatprep.subr.mxu0 0.0
        %5067 = vmatpush1.msra.mxu0 %v1879
        %5068 = vmatprep.subr.mxu0 0.0
        %5069 = vmatpush1.msra.mxu0 %v1880
        %5070 = vmatprep.subr.mxu0 0.0
        %5071 = vmatpush1.msra.mxu0 %v1881
        %5072 = vmatprep.subr.mxu0 0.0
        %5073 = vmatpush1.msra.mxu0 %v1882
        %5074 = vmatprep.mubr.f32.mxu0 %v3126
        %5075 = vmatmul.mubr.f32.gmra.mrb[0].mxu0 %v3122
        %v5076 = vpop.f32.mrb[0].mxu0
        %v5077 = vadd.f32 %v5007, %v5076
        %v5078 = vpop.f32.mrb[0].mxu0
        %5079 = vdwg.mxu0
        %5080 = vmatprep.subr.mxu0 0.0
        %5081 = vmatpush1.msra.mxu0 %v1883
        %5082 = vmatprep.subr.mxu0 0.0
        %5083 = vmatpush1.msra.mxu0 %v1884
        %5084 = vmatprep.subr.mxu0 0.0
        %5085 = vmatpush1.msra.mxu0 %v1885
        %5086 = vmatprep.subr.mxu0 0.0
        %5087 = vmatpush1.msra.mxu0 %v1886
        %5088 = vmatprep.subr.mxu0 0.0
        %5089 = vmatpush1.msra.mxu0 %v1887
        %5090 = vmatprep.subr.mxu0 0.0
        %5091 = vmatpush1.msra.mxu0 %v1888
        %5092 = vmatprep.subr.mxu0 0.0
        %5093 = vmatpush1.msra.mxu0 %v1889
        %5094 = vmatprep.subr.mxu0 0.0
        %5095 = vmatpush1.msra.mxu0 %v1890
        %5096 = vmatprep.subr.mxu0 0.0
        %5097 = vmatpush1.msra.mxu0 %v1891
        %5098 = vmatprep.subr.mxu0 0.0
        %5099 = vmatpush1.msra.mxu0 %v1892
        %5100 = vmatprep.subr.mxu0 0.0
        %5101 = vmatpush1.msra.mxu0 %v1893
        %5102 = vmatprep.subr.mxu0 0.0
        %5103 = vmatpush1.msra.mxu0 %v1894
        %5104 = vmatprep.subr.mxu0 0.0
        %5105 = vmatpush1.msra.mxu0 %v1895
        %5106 = vmatprep.subr.mxu0 0.0
        %5107 = vmatpush1.msra.mxu0 %v1896
        %5108 = vmatprep.subr.mxu0 0.0
        %5109 = vmatpush1.msra.mxu0 %v1897
        %5110 = vmatprep.subr.mxu0 0.0
        %5111 = vmatpush1.msra.mxu0 %v1898
        %5112 = vmatprep.subr.mxu0 0.0
        %5113 = vmatpush1.msra.mxu0 %v1899
        %5114 = vmatprep.subr.mxu0 0.0
        %5115 = vmatpush1.msra.mxu0 %v1900
        %5116 = vmatprep.subr.mxu0 0.0
        %5117 = vmatpush1.msra.mxu0 %v1901
        %5118 = vmatprep.subr.mxu0 0.0
        %5119 = vmatpush1.msra.mxu0 %v1902
        %5120 = vmatprep.subr.mxu0 0.0
        %5121 = vmatpush1.msra.mxu0 %v1903
        %5122 = vmatprep.subr.mxu0 0.0
        %5123 = vmatpush1.msra.mxu0 %v1904
        %5124 = vmatprep.subr.mxu0 0.0
        %5125 = vmatpush1.msra.mxu0 %v1905
        %5126 = vmatprep.subr.mxu0 0.0
        %5127 = vmatpush1.msra.mxu0 %v1906
        %5128 = vmatprep.subr.mxu0 0.0
        %5129 = vmatpush1.msra.mxu0 %v1907
        %5130 = vmatprep.subr.mxu0 0.0
        %5131 = vmatpush1.msra.mxu0 %v1908
        %5132 = vmatprep.subr.mxu0 0.0
        %5133 = vmatpush1.msra.mxu0 %v1909
        %5134 = vmatprep.subr.mxu0 0.0
        %5135 = vmatpush1.msra.mxu0 %v1910
        %5136 = vmatprep.subr.mxu0 0.0
        %5137 = vmatpush1.msra.mxu0 %v1911
        %5138 = vmatprep.subr.mxu0 0.0
        %5139 = vmatpush1.msra.mxu0 %v1912
        %5140 = vmatprep.subr.mxu0 0.0
        %5141 = vmatpush1.msra.mxu0 %v1913
        %5142 = vmatprep.subr.mxu0 0.0
        %5143 = vmatpush1.msra.mxu0 %v1914
        %5144 = vmatprep.mubr.f32.mxu0 %v3127
        %5145 = vmatmul.mubr.f32.gmra.mrb[0].mxu0 %v3123
        %v5146 = vpop.f32.mrb[0].mxu0
        %v5147 = vadd.f32 %v5077, %v5146
        %v5148 = vpop.f32.mrb[0].mxu0
        %5149 = vdwg.mxu0
        %5150 = vmatprep.subr.mxu0 0.0
        %5151 = vmatpush1.msra.mxu0 %v1915
        %5152 = vmatprep.subr.mxu0 0.0
        %5153 = vmatpush1.msra.mxu0 %v1916
        %5154 = vmatprep.subr.mxu0 0.0
        %5155 = vmatpush1.msra.mxu0 %v1917
        %5156 = vmatprep.subr.mxu0 0.0
        %5157 = vmatpush1.msra.mxu0 %v1918
        %5158 = vmatprep.subr.mxu0 0.0
        %5159 = vmatpush1.msra.mxu0 %v1919
        %5160 = vmatprep.subr.mxu0 0.0
        %5161 = vmatpush1.msra.mxu0 %v1920
        %5162 = vmatprep.subr.mxu0 0.0
        %5163 = vmatpush1.msra.mxu0 %v1921
        %5164 = vmatprep.subr.mxu0 0.0
        %5165 = vmatpush1.msra.mxu0 %v1922
        %5166 = vmatprep.subr.mxu0 0.0
        %5167 = vmatpush1.msra.mxu0 %v1923
        %5168 = vmatprep.subr.mxu0 0.0
        %5169 = vmatpush1.msra.mxu0 %v1924
        %5170 = vmatprep.subr.mxu0 0.0
        %5171 = vmatpush1.msra.mxu0 %v1925
        %5172 = vmatprep.subr.mxu0 0.0
        %5173 = vmatpush1.msra.mxu0 %v1926
        %5174 = vmatprep.subr.mxu0 0.0
        %5175 = vmatpush1.msra.mxu0 %v1927
        %5176 = vmatprep.subr.mxu0 0.0
        %5177 = vmatpush1.msra.mxu0 %v1928
        %5178 = vmatprep.subr.mxu0 0.0
        %5179 = vmatpush1.msra.mxu0 %v1929
        %5180 = vmatprep.subr.mxu0 0.0
        %5181 = vmatpush1.msra.mxu0 %v1930
        %5182 = vmatprep.subr.mxu0 0.0
        %5183 = vmatpush1.msra.mxu0 %v1931
        %5184 = vmatprep.subr.mxu0 0.0
        %5185 = vmatpush1.msra.mxu0 %v1932
        %5186 = vmatprep.subr.mxu0 0.0
        %5187 = vmatpush1.msra.mxu0 %v1933
        %5188 = vmatprep.subr.mxu0 0.0
        %5189 = vmatpush1.msra.mxu0 %v1934
        %5190 = vmatprep.subr.mxu0 0.0
        %5191 = vmatpush1.msra.mxu0 %v1935
        %5192 = vmatprep.subr.mxu0 0.0
        %5193 = vmatpush1.msra.mxu0 %v1936
        %5194 = vmatprep.subr.mxu0 0.0
        %5195 = vmatpush1.msra.mxu0 %v1937
        %5196 = vmatprep.subr.mxu0 0.0
        %5197 = vmatpush1.msra.mxu0 %v1938
        %5198 = vmatprep.subr.mxu0 0.0
        %5199 = vmatpush1.msra.mxu0 %v1939
        %5200 = vmatprep.subr.mxu0 0.0
        %5201 = vmatpush1.msra.mxu0 %v1940
        %5202 = vmatprep.subr.mxu0 0.0
        %5203 = vmatpush1.msra.mxu0 %v1941
        %5204 = vmatprep.subr.mxu0 0.0
        %5205 = vmatpush1.msra.mxu0 %v1942
        %5206 = vmatprep.subr.mxu0 0.0
        %5207 = vmatpush1.msra.mxu0 %v1943
        %5208 = vmatprep.subr.mxu0 0.0
        %5209 = vmatpush1.msra.mxu0 %v1944
        %5210 = vmatprep.subr.mxu0 0.0
        %5211 = vmatpush1.msra.mxu0 %v1945
        %5212 = vmatprep.subr.mxu0 0.0
        %5213 = vmatpush1.msra.mxu0 %v1946
        %5214 = vmatprep.mubr.f32.mxu0 %v3128
        %5215 = vmatmul.mubr.f32.gmra.mrb[0].mxu0 %v3124
        %v5216 = vpop.f32.mrb[0].mxu0
        %v5217 = vadd.f32 %v5147, %v5216
        %v5218 = vpop.f32.mrb[0].mxu0
        %5219 = vdwg.mxu0
        %5220 = vmatprep.subr.mxu0 0.0
        %5221 = vmatpush1.msra.mxu0 %v1947
        %5222 = vmatprep.subr.mxu0 0.0
        %5223 = vmatpush1.msra.mxu0 %v1948
        %5224 = vmatprep.subr.mxu0 0.0
        %5225 = vmatpush1.msra.mxu0 %v1949
        %5226 = vmatprep.subr.mxu0 0.0
        %5227 = vmatpush1.msra.mxu0 %v1950
        %5228 = vmatprep.subr.mxu0 0.0
        %5229 = vmatpush1.msra.mxu0 %v1951
        %5230 = vmatprep.subr.mxu0 0.0
        %5231 = vmatpush1.msra.mxu0 %v1952
        %5232 = vmatprep.subr.mxu0 0.0
        %5233 = vmatpush1.msra.mxu0 %v1953
        %5234 = vmatprep.subr.mxu0 0.0
        %5235 = vmatpush1.msra.mxu0 %v1954
        %5236 = vmatprep.subr.mxu0 0.0
        %5237 = vmatpush1.msra.mxu0 %v1955
        %5238 = vmatprep.subr.mxu0 0.0
        %5239 = vmatpush1.msra.mxu0 %v1956
        %5240 = vmatprep.subr.mxu0 0.0
        %5241 = vmatpush1.msra.mxu0 %v1957
        %5242 = vmatprep.subr.mxu0 0.0
        %5243 = vmatpush1.msra.mxu0 %v1958
        %5244 = vmatprep.subr.mxu0 0.0
        %5245 = vmatpush1.msra.mxu0 %v1959
        %5246 = vmatprep.subr.mxu0 0.0
        %5247 = vmatpush1.msra.mxu0 %v1960
        %5248 = vmatprep.subr.mxu0 0.0
        %5249 = vmatpush1.msra.mxu0 %v1961
        %5250 = vmatprep.subr.mxu0 0.0
        %5251 = vmatpush1.msra.mxu0 %v1962
        %5252 = vmatprep.subr.mxu0 0.0
        %5253 = vmatpush1.msra.mxu0 %v1963
        %5254 = vmatprep.subr.mxu0 0.0
        %5255 = vmatpush1.msra.mxu0 %v1964
        %5256 = vmatprep.subr.mxu0 0.0
        %5257 = vmatpush1.msra.mxu0 %v1965
        %5258 = vmatprep.subr.mxu0 0.0
        %5259 = vmatpush1.msra.mxu0 %v1966
        %5260 = vmatprep.subr.mxu0 0.0
        %5261 = vmatpush1.msra.mxu0 %v1967
        %5262 = vmatprep.subr.mxu0 0.0
        %5263 = vmatpush1.msra.mxu0 %v1968
        %5264 = vmatprep.subr.mxu0 0.0
        %5265 = vmatpush1.msra.mxu0 %v1969
        %5266 = vmatprep.subr.mxu0 0.0
        %5267 = vmatpush1.msra.mxu0 %v1970
        %5268 = vmatprep.subr.mxu0 0.0
        %5269 = vmatpush1.msra.mxu0 %v1971
        %5270 = vmatprep.subr.mxu0 0.0
        %5271 = vmatpush1.msra.mxu0 %v1972
        %5272 = vmatprep.subr.mxu0 0.0
        %5273 = vmatpush1.msra.mxu0 %v1973
        %5274 = vmatprep.subr.mxu0 0.0
        %5275 = vmatpush1.msra.mxu0 %v1974
        %5276 = vmatprep.subr.mxu0 0.0
        %5277 = vmatpush1.msra.mxu0 %v1975
        %5278 = vmatprep.subr.mxu0 0.0
        %5279 = vmatpush1.msra.mxu0 %v1976
        %5280 = vmatprep.subr.mxu0 0.0
        %5281 = vmatpush1.msra.mxu0 %v1977
        %5282 = vmatprep.subr.mxu0 0.0
        %5283 = vmatpush1.msra.mxu0 %v1978
        %5284 = vmatprep.mubr.f32.mxu0 %v3129
        %5285 = vmatmul.mubr.f32.gmra.mrb[0].mxu0 %v3125
        %v5286 = vpop.f32.mrb[0].mxu0
        %v5287 = vadd.f32 %v5217, %v5286
        %v5288 = vpop.f32.mrb[0].mxu0
        %5289 = vdwg.mxu0
        %5290 = vmatprep.subr.mxu0 0.0
        %5291 = vmatpush1.msra.mxu0 %v1979
        %5292 = vmatprep.subr.mxu0 0.0
        %5293 = vmatpush1.msra.mxu0 %v1980
        %5294 = vmatprep.subr.mxu0 0.0
        %5295 = vmatpush1.msra.mxu0 %v1981
        %5296 = vmatprep.subr.mxu0 0.0
        %5297 = vmatpush1.msra.mxu0 %v1982
        %5298 = vmatprep.subr.mxu0 0.0
        %5299 = vmatpush1.msra.mxu0 %v1983
        %5300 = vmatprep.subr.mxu0 0.0
        %5301 = vmatpush1.msra.mxu0 %v1984
        %5302 = vmatprep.subr.mxu0 0.0
        %5303 = vmatpush1.msra.mxu0 %v1985
        %5304 = vmatprep.subr.mxu0 0.0
        %5305 = vmatpush1.msra.mxu0 %v1986
        %5306 = vmatprep.subr.mxu0 0.0
        %5307 = vmatpush1.msra.mxu0 %v1987
        %5308 = vmatprep.subr.mxu0 0.0
        %5309 = vmatpush1.msra.mxu0 %v1988
        %5310 = vmatprep.subr.mxu0 0.0
        %5311 = vmatpush1.msra.mxu0 %v1989
        %5312 = vmatprep.subr.mxu0 0.0
        %5313 = vmatpush1.msra.mxu0 %v1990
        %5314 = vmatprep.subr.mxu0 0.0
        %5315 = vmatpush1.msra.mxu0 %v1991
        %5316 = vmatprep.subr.mxu0 0.0
        %5317 = vmatpush1.msra.mxu0 %v1992
        %5318 = vmatprep.subr.mxu0 0.0
        %5319 = vmatpush1.msra.mxu0 %v1993
        %5320 = vmatprep.subr.mxu0 0.0
        %5321 = vmatpush1.msra.mxu0 %v1994
        %5322 = vmatprep.subr.mxu0 0.0
        %5323 = vmatpush1.msra.mxu0 %v1995
        %5324 = vmatprep.subr.mxu0 0.0
        %5325 = vmatpush1.msra.mxu0 %v1996
        %5326 = vmatprep.subr.mxu0 0.0
        %5327 = vmatpush1.msra.mxu0 %v1997
        %5328 = vmatprep.subr.mxu0 0.0
        %5329 = vmatpush1.msra.mxu0 %v1998
        %5330 = vmatprep.subr.mxu0 0.0
        %5331 = vmatpush1.msra.mxu0 %v1999
        %5332 = vmatprep.subr.mxu0 0.0
        %5333 = vmatpush1.msra.mxu0 %v2000
        %5334 = vmatprep.subr.mxu0 0.0
        %5335 = vmatpush1.msra.mxu0 %v2001
        %5336 = vmatprep.subr.mxu0 0.0
        %5337 = vmatpush1.msra.mxu0 %v2002
        %5338 = vmatprep.subr.mxu0 0.0
        %5339 = vmatpush1.msra.mxu0 %v2003
        %5340 = vmatprep.subr.mxu0 0.0
        %5341 = vmatpush1.msra.mxu0 %v2004
        %5342 = vmatprep.subr.mxu0 0.0
        %5343 = vmatpush1.msra.mxu0 %v2005
        %5344 = vmatprep.subr.mxu0 0.0
        %5345 = vmatpush1.msra.mxu0 %v2006
        %5346 = vmatprep.subr.mxu0 0.0
        %5347 = vmatpush1.msra.mxu0 %v2007
        %5348 = vmatprep.subr.mxu0 0.0
        %5349 = vmatpush1.msra.mxu0 %v2008
        %5350 = vmatprep.subr.mxu0 0.0
        %5351 = vmatpush1.msra.mxu0 %v2009
        %5352 = vmatprep.subr.mxu0 0.0
        %5353 = vmatpush1.msra.mxu0 %v2010
        %5354 = vmatprep.mubr.f32.mxu0 %v3262
        %5355 = vmatmul.mubr.f32.gmra.mrb[0].mxu0 %v3258
        %v5356 = vpop.f32.mrb[0].mxu0
        %v5357 = vadd.f32 %v5287, %v5356
        %v5358 = vpop.f32.mrb[0].mxu0
        %5359 = vdwg.mxu0
        %5360 = vmatprep.subr.mxu0 0.0
        %5361 = vmatpush1.msra.mxu0 %v2011
        %5362 = vmatprep.subr.mxu0 0.0
        %5363 = vmatpush1.msra.mxu0 %v2012
        %5364 = vmatprep.subr.mxu0 0.0
        %5365 = vmatpush1.msra.mxu0 %v2013
        %5366 = vmatprep.subr.mxu0 0.0
        %5367 = vmatpush1.msra.mxu0 %v2014
        %5368 = vmatprep.subr.mxu0 0.0
        %5369 = vmatpush1.msra.mxu0 %v2015
        %5370 = vmatprep.subr.mxu0 0.0
        %5371 = vmatpush1.msra.mxu0 %v2016
        %5372 = vmatprep.subr.mxu0 0.0
        %5373 = vmatpush1.msra.mxu0 %v2017
        %5374 = vmatprep.subr.mxu0 0.0
        %5375 = vmatpush1.msra.mxu0 %v2018
        %5376 = vmatprep.subr.mxu0 0.0
        %5377 = vmatpush1.msra.mxu0 %v2019
        %5378 = vmatprep.subr.mxu0 0.0
        %5379 = vmatpush1.msra.mxu0 %v2020
        %5380 = vmatprep.subr.mxu0 0.0
        %5381 = vmatpush1.msra.mxu0 %v2021
        %5382 = vmatprep.subr.mxu0 0.0
        %5383 = vmatpush1.msra.mxu0 %v2022
        %5384 = vmatprep.subr.mxu0 0.0
        %5385 = vmatpush1.msra.mxu0 %v2023
        %5386 = vmatprep.subr.mxu0 0.0
        %5387 = vmatpush1.msra.mxu0 %v2024
        %5388 = vmatprep.subr.mxu0 0.0
        %5389 = vmatpush1.msra.mxu0 %v2025
        %5390 = vmatprep.subr.mxu0 0.0
        %5391 = vmatpush1.msra.mxu0 %v2026
        %5392 = vmatprep.subr.mxu0 0.0
        %5393 = vmatpush1.msra.mxu0 %v2027
        %5394 = vmatprep.subr.mxu0 0.0
        %5395 = vmatpush1.msra.mxu0 %v2028
        %5396 = vmatprep.subr.mxu0 0.0
        %5397 = vmatpush1.msra.mxu0 %v2029
        %5398 = vmatprep.subr.mxu0 0.0
        %5399 = vmatpush1.msra.mxu0 %v2030
        %5400 = vmatprep.subr.mxu0 0.0
        %5401 = vmatpush1.msra.mxu0 %v2031
        %5402 = vmatprep.subr.mxu0 0.0
        %5403 = vmatpush1.msra.mxu0 %v2032
        %5404 = vmatprep.subr.mxu0 0.0
        %5405 = vmatpush1.msra.mxu0 %v2033
        %5406 = vmatprep.subr.mxu0 0.0
        %5407 = vmatpush1.msra.mxu0 %v2034
        %5408 = vmatprep.subr.mxu0 0.0
        %5409 = vmatpush1.msra.mxu0 %v2035
        %5410 = vmatprep.subr.mxu0 0.0
        %5411 = vmatpush1.msra.mxu0 %v2036
        %5412 = vmatprep.subr.mxu0 0.0
        %5413 = vmatpush1.msra.mxu0 %v2037
        %5414 = vmatprep.subr.mxu0 0.0
        %5415 = vmatpush1.msra.mxu0 %v2038
        %5416 = vmatprep.subr.mxu0 0.0
        %5417 = vmatpush1.msra.mxu0 %v2039
        %5418 = vmatprep.subr.mxu0 0.0
        %5419 = vmatpush1.msra.mxu0 %v2040
        %5420 = vmatprep.subr.mxu0 0.0
        %5421 = vmatpush1.msra.mxu0 %v2041
        %5422 = vmatprep.subr.mxu0 0.0
        %5423 = vmatpush1.msra.mxu0 %v2042
        %5424 = vmatprep.mubr.f32.mxu0 %v3263
        %5425 = vmatmul.mubr.f32.gmra.mrb[0].mxu0 %v3259
        %v5426 = vpop.f32.mrb[0].mxu0
        %v5427 = vadd.f32 %v5357, %v5426
        %v5428 = vpop.f32.mrb[0].mxu0
        %5429 = vdwg.mxu0
        %5430 = vmatprep.subr.mxu0 0.0
        %5431 = vmatpush1.msra.mxu0 %v2043
        %5432 = vmatprep.subr.mxu0 0.0
        %5433 = vmatpush1.msra.mxu0 %v2044
        %5434 = vmatprep.subr.mxu0 0.0
        %5435 = vmatpush1.msra.mxu0 %v2045
        %5436 = vmatprep.subr.mxu0 0.0
        %5437 = vmatpush1.msra.mxu0 %v2046
        %5438 = vmatprep.subr.mxu0 0.0
        %5439 = vmatpush1.msra.mxu0 %v2047
        %5440 = vmatprep.subr.mxu0 0.0
        %5441 = vmatpush1.msra.mxu0 %v2048
        %5442 = vmatprep.subr.mxu0 0.0
        %5443 = vmatpush1.msra.mxu0 %v2049
        %5444 = vmatprep.subr.mxu0 0.0
        %5445 = vmatpush1.msra.mxu0 %v2050
        %5446 = vmatprep.subr.mxu0 0.0
        %5447 = vmatpush1.msra.mxu0 %v2051
        %5448 = vmatprep.subr.mxu0 0.0
        %5449 = vmatpush1.msra.mxu0 %v2052
        %5450 = vmatprep.subr.mxu0 0.0
        %5451 = vmatpush1.msra.mxu0 %v2053
        %5452 = vmatprep.subr.mxu0 0.0
        %5453 = vmatpush1.msra.mxu0 %v2054
        %5454 = vmatprep.subr.mxu0 0.0
        %5455 = vmatpush1.msra.mxu0 %v2055
        %5456 = vmatprep.subr.mxu0 0.0
        %5457 = vmatpush1.msra.mxu0 %v2056
        %5458 = vmatprep.subr.mxu0 0.0
        %5459 = vmatpush1.msra.mxu0 %v2057
        %5460 = vmatprep.subr.mxu0 0.0
        %5461 = vmatpush1.msra.mxu0 %v2058
        %5462 = vmatprep.subr.mxu0 0.0
        %5463 = vmatpush1.msra.mxu0 %v2059
        %5464 = vmatprep.subr.mxu0 0.0
        %5465 = vmatpush1.msra.mxu0 %v2060
        %5466 = vmatprep.subr.mxu0 0.0
        %5467 = vmatpush1.msra.mxu0 %v2061
        %5468 = vmatprep.subr.mxu0 0.0
        %5469 = vmatpush1.msra.mxu0 %v2062
        %5470 = vmatprep.subr.mxu0 0.0
        %5471 = vmatpush1.msra.mxu0 %v2063
        %5472 = vmatprep.subr.mxu0 0.0
        %5473 = vmatpush1.msra.mxu0 %v2064
        %5474 = vmatprep.subr.mxu0 0.0
        %5475 = vmatpush1.msra.mxu0 %v2065
        %5476 = vmatprep.subr.mxu0 0.0
        %5477 = vmatpush1.msra.mxu0 %v2066
        %5478 = vmatprep.subr.mxu0 0.0
        %5479 = vmatpush1.msra.mxu0 %v2067
        %5480 = vmatprep.subr.mxu0 0.0
        %5481 = vmatpush1.msra.mxu0 %v2068
        %5482 = vmatprep.subr.mxu0 0.0
        %5483 = vmatpush1.msra.mxu0 %v2069
        %5484 = vmatprep.subr.mxu0 0.0
        %5485 = vmatpush1.msra.mxu0 %v2070
        %5486 = vmatprep.subr.mxu0 0.0
        %5487 = vmatpush1.msra.mxu0 %v2071
        %5488 = vmatprep.subr.mxu0 0.0
        %5489 = vmatpush1.msra.mxu0 %v2072
        %5490 = vmatprep.subr.mxu0 0.0
        %5491 = vmatpush1.msra.mxu0 %v2073
        %5492 = vmatprep.subr.mxu0 0.0
        %5493 = vmatpush1.msra.mxu0 %v2074
        %5494 = vmatprep.mubr.f32.mxu0 %v3264
        %5495 = vmatmul.mubr.f32.gmra.mrb[0].mxu0 %v3260
        %v5496 = vpop.f32.mrb[0].mxu0
        %v5497 = vadd.f32 %v5427, %v5496
        %v5498 = vpop.f32.mrb[0].mxu0
        %5499 = vdwg.mxu0
        %5500 = vmatprep.subr.mxu0 0.0
        %5501 = vmatpush1.msra.mxu0 %v2075
        %5502 = vmatprep.subr.mxu0 0.0
        %5503 = vmatpush1.msra.mxu0 %v2076
        %5504 = vmatprep.subr.mxu0 0.0
        %5505 = vmatpush1.msra.mxu0 %v2077
        %5506 = vmatprep.subr.mxu0 0.0
        %5507 = vmatpush1.msra.mxu0 %v2078
        %5508 = vmatprep.subr.mxu0 0.0
        %5509 = vmatpush1.msra.mxu0 %v2079
        %5510 = vmatprep.subr.mxu0 0.0
        %5511 = vmatpush1.msra.mxu0 %v2080
        %5512 = vmatprep.subr.mxu0 0.0
        %5513 = vmatpush1.msra.mxu0 %v2081
        %5514 = vmatprep.subr.mxu0 0.0
        %5515 = vmatpush1.msra.mxu0 %v2082
        %5516 = vmatprep.subr.mxu0 0.0
        %5517 = vmatpush1.msra.mxu0 %v2083
        %5518 = vmatprep.subr.mxu0 0.0
        %5519 = vmatpush1.msra.mxu0 %v2084
        %5520 = vmatprep.subr.mxu0 0.0
        %5521 = vmatpush1.msra.mxu0 %v2085
        %5522 = vmatprep.subr.mxu0 0.0
        %5523 = vmatpush1.msra.mxu0 %v2086
        %5524 = vmatprep.subr.mxu0 0.0
        %5525 = vmatpush1.msra.mxu0 %v2087
        %5526 = vmatprep.subr.mxu0 0.0
        %5527 = vmatpush1.msra.mxu0 %v2088
        %5528 = vmatprep.subr.mxu0 0.0
        %5529 = vmatpush1.msra.mxu0 %v2089
        %5530 = vmatprep.subr.mxu0 0.0
        %5531 = vmatpush1.msra.mxu0 %v2090
        %5532 = vmatprep.subr.mxu0 0.0
        %5533 = vmatpush1.msra.mxu0 %v2091
        %5534 = vmatprep.subr.mxu0 0.0
        %5535 = vmatpush1.msra.mxu0 %v2092
        %5536 = vmatprep.subr.mxu0 0.0
        %5537 = vmatpush1.msra.mxu0 %v2093
        %5538 = vmatprep.subr.mxu0 0.0
        %5539 = vmatpush1.msra.mxu0 %v2094
        %5540 = vmatprep.subr.mxu0 0.0
        %5541 = vmatpush1.msra.mxu0 %v2095
        %5542 = vmatprep.subr.mxu0 0.0
        %5543 = vmatpush1.msra.mxu0 %v2096
        %5544 = vmatprep.subr.mxu0 0.0
        %5545 = vmatpush1.msra.mxu0 %v2097
        %5546 = vmatprep.subr.mxu0 0.0
        %5547 = vmatpush1.msra.mxu0 %v2098
        %5548 = vmatprep.subr.mxu0 0.0
        %5549 = vmatpush1.msra.mxu0 %v2099
        %5550 = vmatprep.subr.mxu0 0.0
        %5551 = vmatpush1.msra.mxu0 %v2100
        %5552 = vmatprep.subr.mxu0 0.0
        %5553 = vmatpush1.msra.mxu0 %v2101
        %5554 = vmatprep.subr.mxu0 0.0
        %5555 = vmatpush1.msra.mxu0 %v2102
        %5556 = vmatprep.subr.mxu0 0.0
        %5557 = vmatpush1.msra.mxu0 %v2103
        %5558 = vmatprep.subr.mxu0 0.0
        %5559 = vmatpush1.msra.mxu0 %v2104
        %5560 = vmatprep.subr.mxu0 0.0
        %5561 = vmatpush1.msra.mxu0 %v2105
        %5562 = vmatprep.subr.mxu0 0.0
        %5563 = vmatpush1.msra.mxu0 %v2106
        %5564 = vmatprep.mubr.f32.mxu0 %v3265
        %5565 = vmatmul.mubr.f32.gmra.mrb[0].mxu0 %v3261
        %v5566 = vpop.f32.mrb[0].mxu0
        %v5567 = vadd.f32 %v5497, %v5566
        %v5568 = vpop.f32.mrb[0].mxu0
        %5569 = vdwg.mxu0
        %v5570 = vmax.f32 %v5567, 0.0
        %v5571 = vld [vmem:[#allocation10] sm:$0xff]
        %v5572 = vld [vmem:[#allocation10 + $0x8] sm:$0xff]
        %v5573 = vld [vmem:[#allocation10 + $0x10] sm:$0xff]
        %v5574 = vld [vmem:[#allocation10 + $0x18] sm:$0xff]
        %v5575 = vld [vmem:[#allocation10 + $0x20] sm:$0xff]
        %v5576 = vld [vmem:[#allocation10 + $0x28] sm:$0xff]
        %v5577 = vld [vmem:[#allocation10 + $0x30] sm:$0xff]
        %v5578 = vld [vmem:[#allocation10 + $0x38] sm:$0xff]
        %v5579 = vld [vmem:[#allocation10 + $0x40] sm:$0xff]
        %v5580 = vld [vmem:[#allocation10 + $0x48] sm:$0xff]
        %v5581 = vld [vmem:[#allocation10 + $0x50] sm:$0xff]
        %v5582 = vld [vmem:[#allocation10 + $0x58] sm:$0xff]
        %v5583 = vld [vmem:[#allocation10 + $0x60] sm:$0xff]
        %v5584 = vld [vmem:[#allocation10 + $0x68] sm:$0xff]
        %v5585 = vld [vmem:[#allocation10 + $0x70] sm:$0xff]
        %v5586 = vld [vmem:[#allocation10 + $0x78] sm:$0xff]
        %v5587 = vld [vmem:[#allocation11] sm:$0x1]
        %v5589 = vlaneseq
        %v5590 = vshrl.u32 %v5589, 7
        %v5591 = vsub.s32 0, %v5590
        %v5592 = vrot.slane %v5587, %v5591
        %5594 = vmatprep.subr.mxu0 0.0
        %5595 = vmatpush1.msra.mxu0 %v5571
        %5596 = vmatprep.subr.mxu0 0.0
        %5597 = vmatpush1.msra.mxu0 %v5572
        %5598 = vmatprep.subr.mxu0 0.0
        %5599 = vmatpush1.msra.mxu0 %v5573
        %5600 = vmatprep.subr.mxu0 0.0
        %5601 = vmatpush1.msra.mxu0 %v5574
        %5602 = vmatprep.subr.mxu0 0.0
        %5603 = vmatpush1.msra.mxu0 %v5575
        %5604 = vmatprep.subr.mxu0 0.0
        %5605 = vmatpush1.msra.mxu0 %v5576
        %5606 = vmatprep.subr.mxu0 0.0
        %5607 = vmatpush1.msra.mxu0 %v5577
        %5608 = vmatprep.subr.mxu0 0.0
        %5609 = vmatpush1.msra.mxu0 %v5578
        %5610 = vmatprep.subr.mxu0 0.0
        %5611 = vmatpush1.msra.mxu0 %v5579
        %5612 = vmatprep.subr.mxu0 0.0
        %5613 = vmatpush1.msra.mxu0 %v5580
        %5614 = vmatprep.subr.mxu0 0.0
        %5615 = vmatpush1.msra.mxu0 %v5581
        %5616 = vmatprep.subr.mxu0 0.0
        %5617 = vmatpush1.msra.mxu0 %v5582
        %5618 = vmatprep.subr.mxu0 0.0
        %5619 = vmatpush1.msra.mxu0 %v5583
        %5620 = vmatprep.subr.mxu0 0.0
        %5621 = vmatpush1.msra.mxu0 %v5584
        %5622 = vmatprep.subr.mxu0 0.0
        %5623 = vmatpush1.msra.mxu0 %v5585
        %5624 = vmatprep.subr.mxu0 0.0
        %5625 = vmatpush1.msra.mxu0 %v5586
        %5626 = vmatprep.subr.mxu0 0.0
        %5627 = vmatpush1.msra.mxu0 0.0
        %5628 = vmatprep.subr.mxu0 0.0
        %5629 = vmatpush1.msra.mxu0 0.0
        %5630 = vmatprep.subr.mxu0 0.0
        %5631 = vmatpush1.msra.mxu0 0.0
        %5632 = vmatprep.subr.mxu0 0.0
        %5633 = vmatpush1.msra.mxu0 0.0
        %5634 = vmatprep.subr.mxu0 0.0
        %5635 = vmatpush1.msra.mxu0 0.0
        %5636 = vmatprep.subr.mxu0 0.0
        %5637 = vmatpush1.msra.mxu0 0.0
        %5638 = vmatprep.subr.mxu0 0.0
        %5639 = vmatpush1.msra.mxu0 0.0
        %5640 = vmatprep.subr.mxu0 0.0
        %5641 = vmatpush1.msra.mxu0 0.0
        %5642 = vmatprep.subr.mxu0 0.0
        %5643 = vmatpush1.msra.mxu0 0.0
        %5644 = vmatprep.subr.mxu0 0.0
        %5645 = vmatpush1.msra.mxu0 0.0
        %5646 = vmatprep.subr.mxu0 0.0
        %5647 = vmatpush1.msra.mxu0 0.0
        %5648 = vmatprep.subr.mxu0 0.0
        %5649 = vmatpush1.msra.mxu0 0.0
        %5650 = vmatprep.subr.mxu0 0.0
        %5651 = vmatpush1.msra.mxu0 0.0
        %5652 = vmatprep.subr.mxu0 0.0
        %5653 = vmatpush1.msra.mxu0 0.0
        %5654 = vmatprep.subr.mxu0 0.0
        %5655 = vmatpush1.msra.mxu0 0.0
        %5656 = vmatprep.subr.mxu0 0.0
        %5657 = vmatpush1.msra.mxu0 0.0
        %5658 = vmatprep.mubr.f32.mxu0 0.0
        %5659 = vmatmul.mubr.f32.gmra.mrb[0].mxu0 %v5570
        %v5660 = vpop.f32.mrb[0].mxu0
        %v5661 = vadd.f32 %v5592, %v5660
        %v5662 = vpop.f32.mrb[0].mxu0
        %5663 = vdwg.mxu0
        %5664 = vst [vmem:[%s354] sm:$0xff] %v5661
        %s5665 = sand.u32 %s185, 1
        %s5666 = scalar_lea.sflag [#allocation4], %s5665
        %s5667 = sand.u32 %s185, 1
        %s5668 = smul.addr %s5667, 8
        %s5669 = scalar_lea.vmem [#allocation13], %s5668
        // Predicated region
        $region73: #{tpu_custom_call.1} parent=47 // pred_check
          %p5670 = pneg %p195
        $region74: #{tpu_custom_call.1} parent=47 // pred_check_branch
          %5672 = sbr.rel (%p5670) target = $region76
        $region75: #{tpu_custom_call.1} parent=47 // pred_region
          %s5674 = ssub.s32 128, 128
          %5675 = vsyncadd %s5666, %s5674
          %s5676 = smul.addr %s25, 128
          %s5677 = scalar_lea.hbm %s7, %s5676
          %s5679 = sshll.u32 %s5669, 4
          %s5680 = int_to_ptr.vmem [resolvable:$true] %s5679
          %5682 = dma.vmem_to_hbm [thread:$0]  %s5680, 128, %s5677, %s5666
        $region76: #{tpu_custom_call.1} parent=47 // pred_fallthru
          _
      $region48: #{tpu_custom_call.1} parent=5 // pred_fallthru
        _
      %p5683 = scmp.le.s32.totalorder 2, %s20
      // Predicated region
      $region77: #{tpu_custom_call.1} parent=5 // pred_check
        %p5684 = pneg %p5683
      $region78: #{tpu_custom_call.1} parent=5 // pred_check_branch
        %5686 = sbr.rel (%p5684) target = $region80
      $region79: #{tpu_custom_call.1} parent=5 // pred_region
        %s5687 = ssub.s32 %s20, 2
        // Predicated region
        $region81: #{tpu_custom_call.1} parent=79 // pred_check
          %p5688 = pneg %p201
        $region82: #{tpu_custom_call.1} parent=79 // pred_check_branch
          %5690 = sbr.rel (%p5688) target = $region84
        $region83: #{tpu_custom_call.1} parent=79 // pred_region
          %s5691 = sand.u32 %s186, 1
          %s5692 = scalar_lea.sflag [#allocation4], %s5691
          %s5693 = sand.u32 %s186, 1
          %s5694 = smul.addr %s5693, 8
          %s5695 = scalar_lea.vmem [#allocation13], %s5694
          %5696 = dma.done %s5692, 128
        $region84: #{tpu_custom_call.1} parent=79 // pred_fallthru
          _
      $region80: #{tpu_custom_call.1} parent=5 // pred_fallthru
        _
    $region6: #{tpu_custom_call.1} parent=1 // loop_footer
      %s24 = sadd.s32 1, %s20
    $region7: #{tpu_custom_call.1} parent=1 // loop_footer_branch
      %19 = sbr.rel target = $region3
    $region8: #{tpu_custom_call.1} parent=1 // loop_exit
      _
    %5697 = vsyncpa [#allocation3], 1
    %s5698 = scalar_lea.sflag [#allocation3], 1
    %5699 = vsyncpa %s5698, 1
    %5700 = vsyncpa [#allocation6], 1
    %5701 = vsyncpa [#allocation9], 1
    %5702 = vsyncpa [#allocation12], 1
    %5703 = vsyncpa [#allocation4], 1
    %s5704 = scalar_lea.sflag [#allocation4], 1
    %5705 = vsyncpa %s5704, 1

</llo_original>
